<compile_context>
chip_gen: v7x
topology: tpu7x:2x2x1
jax: 0.10.0
libtpu: 0.0.40
codegen_flags: <defaults>
</compile_context>

<pallas_src>
import functools

import jax
import jax.numpy as jnp
from jax.experimental import pallas as pl
from jax.experimental.pallas import tpu as pltpu


def _patchtst_kernel(x_ref, posb_ref, bias_ref,
                     w_emb_ref,
                     wqkv_ref, bqkv_ref, wo_ref, bo_ref,
                     ln1w_ref, ln1b_ref, ln2w_ref, ln2b_ref,
                     w1_ref, b1_ref, w2_ref, b2_ref,
                     wrec_t_ref, brec_t_ref,
                     out_ref,
                     *, n_layers, n_heads):
    f32 = jnp.float32
    bf16 = jnp.bfloat16

    # x_ref block: (1, S*N, P); already masked in the wrapper.
    x = x_ref[0].astype(bf16)                                   # (SN, P)

    # Patch embedding + (pos embed + embed bias), all token rows at once.
    tok = (jnp.dot(x, w_emb_ref[...], preferred_element_type=f32)
           + posb_ref[...])                                     # (SN, D) f32

    rows, d_model = tok.shape
    dh = d_model // n_heads

    # Block-diagonal additive bias (precomputed in the wrapper, grid-invariant):
    # tokens attend only within their own packed sequence.
    attn_bias = bias_ref[...]                                   # (SN, SN) f32

    def layer_norm(y, w, b, eps=1e-5):
        mu = jnp.mean(y, axis=-1, keepdims=True)
        var = jnp.mean((y - mu) ** 2, axis=-1, keepdims=True)
        return (y - mu) * jax.lax.rsqrt(var + eps) * w + b

    # A @ B^T (contract the last dim of both operands) -- native MXU form.
    nt_dims = (((1,), (1,)), ((), ()))

    # n_layers is small here; keep the Python unroll.
    # TODO(synk): switch to lax.fori_loop with dynamic wqkv_ref[l] indexing if
    # n_layers grows beyond ~3 (keeps vreg live ranges bounded).
    for l in range(n_layers):
        # ---- self attention (post-norm TransformerEncoderLayer) ----
        tok_bf = tok.astype(bf16)
        qkv = (jnp.dot(tok_bf, wqkv_ref[l], preferred_element_type=f32)
               + bqkv_ref[l])                                   # (SN, 3D) f32
        wo_l = wo_ref[l]                                        # (D, D) bf16

        attn = jnp.zeros((rows, d_model), f32)
        for h in range(n_heads):
            # 1/sqrt(dh) already folded into the Q columns of wqkv/bqkv.
            q = qkv[:, h * dh:(h + 1) * dh].astype(bf16)
            k = qkv[:, d_model + h * dh: d_model + (h + 1) * dh].astype(bf16)
            v = qkv[:, 2 * d_model + h * dh: 2 * d_model + (h + 1) * dh].astype(bf16)

            s = jax.lax.dot_general(q, k, nt_dims,
                                    preferred_element_type=f32)  # (SN, SN)
            s = s + attn_bias
            s = s - jnp.max(s, axis=-1, keepdims=True)
            p = jnp.exp(s)
            denom = jnp.sum(p, axis=-1, keepdims=True)           # (SN, 1)
            # Deferred softmax normalization: scale the small (SN, dh) result
            # instead of the (SN, SN) probability matrix.
            head = (jnp.dot(p.astype(bf16), v, preferred_element_type=f32)
                    * pl.reciprocal(denom, approx=True))         # (SN, dh)
            # Per-head accumulation into the output projection: wo row slice
            # h*dh:(h+1)*dh is sublane-aligned (dh multiple of 8); no lane
            # concatenate / relayout.
            attn = attn + jnp.dot(head.astype(bf16),
                                  wo_l[h * dh:(h + 1) * dh, :],
                                  preferred_element_type=f32)

        attn = attn + bo_ref[l]
        tok = layer_norm(tok + attn, ln1w_ref[l], ln1b_ref[l])

        # ---- feed forward (ReLU) ----
        hmid = (jnp.dot(tok.astype(bf16), w1_ref[l],
                        preferred_element_type=f32) + b1_ref[l])
        hmid = jnp.maximum(hmid, 0.0)
        ff = (jnp.dot(hmid.astype(bf16), w2_ref[l],
                      preferred_element_type=f32) + b2_ref[l])
        tok = layer_norm(tok + ff, ln2w_ref[l], ln2b_ref[l])

    # ---- reconstruction head, transposed so the store is lane-dense ----
    # (P, D) x (SN, D)^T -> (P, SN); last (lane) dim = SN, not patch_len.
    rec_t = (jax.lax.dot_general(wrec_t_ref[...], tok.astype(bf16), nt_dims,
                                 preferred_element_type=f32)
             + brec_t_ref[...])
    out_ref[0] = rec_t


def _device_hint():
    """(num_tensorcores_per_chip, max_rows) — best-effort, never raises."""
    try:
        kind = jax.devices()[0].device_kind.lower()
    except Exception:
        return 1, 512
    if "v7" in kind:
        return 2, 512          # 2 TCs/chip; keep grid even when possible
    if "v5 lite" in kind or "v5lite" in kind or "v5e" in kind:
        return 1, 256          # 128-wide MXUs already filled; shrink SN^2 work
    return 1, 512


def _choose_seqs_per_block(bv, n_tokens):
    """Pick S (sequences packed per grid step) dividing bv.

    Caps SN = S*n_tokens to bound the (SN)^2 block-diagonal softmax waste,
    prefers SN % 128 == 0 (unmasked lane-dense stores), then SN % 16 == 0
    (bf16 sublane packing).  On multi-TC chips prefer a grid that keeps both
    cores busy; on single-TC chips take the fewest grid steps.
    """
    num_tc, max_rows = _device_hint()
    cap = min(max_rows, max(128, 8 * n_tokens))
    divisors = [d for d in range(1, bv + 1) if bv % d == 0]
    cands = [d for d in divisors if d * n_tokens <= cap] or [1]

    def tier(d):
        sn = d * n_tokens
        if sn % 128 == 0:
            return 2
        if sn % 16 == 0:
            return 1
        return 0

    best = max(tier(d) for d in cands)
    cands = [d for d in cands if tier(d) == best]
    if num_tc >= 2:
        balanced = [d for d in cands
                    if (bv // d) >= num_tc and (bv // d) % num_tc == 0]
        if balanced:
            return max(balanced)
    return max(cands)


def init_params(key, *, patch_len, n_patches, d_model, n_heads, n_layers,
                dim_ff):
    del n_heads
    ks = jax.random.split(key, 8)

    def lin(k, fan_in, shape):
        w = (jax.random.normal(k, shape, jnp.float32)
             * (1.0 / jnp.sqrt(jnp.float32(fan_in))))
        return w.astype(jnp.bfloat16)   # bf16 weights -> native MXU on v6e/v7x

    return dict(
        w_emb=lin(ks[0], patch_len, (patch_len, d_model)),
        b_emb=jnp.zeros((1, d_model), jnp.float32),
        pos=jax.random.normal(ks[1], (n_patches, d_model), jnp.float32),
        wqkv=lin(ks[2], d_model, (n_layers, d_model, 3 * d_model)),
        bqkv=jnp.zeros((n_layers, 1, 3 * d_model), jnp.float32),
        wo=lin(ks[3], d_model, (n_layers, d_model, d_model)),
        bo=jnp.zeros((n_layers, 1, d_model), jnp.float32),
        ln1w=jnp.ones((n_layers, 1, d_model), jnp.float32),
        ln1b=jnp.zeros((n_layers, 1, d_model), jnp.float32),
        ln2w=jnp.ones((n_layers, 1, d_model), jnp.float32),
        ln2b=jnp.zeros((n_layers, 1, d_model), jnp.float32),
        w1=lin(ks[4], d_model, (n_layers, d_model, dim_ff)),
        b1=jnp.zeros((n_layers, 1, dim_ff), jnp.float32),
        w2=lin(ks[5], dim_ff, (n_layers, dim_ff, d_model)),
        b2=jnp.zeros((n_layers, 1, d_model), jnp.float32),
        # Reconstruction head stored transposed: (P, D) and (P, 1).
        wrec_t=lin(ks[6], d_model, (patch_len, d_model)),
        brec_t=jnp.zeros((patch_len, 1), jnp.float32),
    )


def patchtst_self_supervised_forward(x, params, mask_key, *, patch_len, stride,
                                     n_heads, n_layers, mask_ratio,
                                     seqs_per_block=None):
    """x: (batch, nvars, input_length) float32.

    Returns (reconstructed, patches, mask) matching the PyTorch module.
    """
    B, V, T = x.shape
    P = patch_len
    N = (T - P) // stride + 1
    d_model = params['pos'].shape[-1]
    dh = d_model // n_heads

    # RevIN 'norm': per-(batch, var) instance norm over the time axis.
    mu = jnp.mean(x, axis=-1, keepdims=True)
    var = jnp.var(x, axis=-1, keepdims=True)
    xn = (x - mu) / jnp.sqrt(var + 1e-5)

    # unfold(dim=-1, size=P, step=stride) -> (B, V, N, P)
    idx = (jnp.arange(N) * stride)[:, None] + jnp.arange(P)[None, :]
    patches = xn[:, :, idx]                                     # (B, V, N, P)

    # Random mask (torch.rand(B, V, N) < mask_ratio); masked_fill applied here
    # so the kernel never sees the near-empty mask tile.
    mask = jax.random.uniform(mask_key, (B, V, N)) < mask_ratio  # bool
    masked = patches * (1.0 - mask[..., None].astype(patches.dtype))

    BV = B * V
    S = seqs_per_block if seqs_per_block is not None else _choose_seqs_per_block(BV, N)
    assert BV % S == 0, "seqs_per_block must divide batch*nvars"
    G = BV // S
    SN = S * N

    x_blocks = masked.reshape(G, SN, P).astype(jnp.float32)      # (G, SN, P)

    # Pre-combine embed bias + positional embedding, tiled to all S sequences.
    pos_bias = jnp.tile(params['pos'] + params['b_emb'], (S, 1)).astype(jnp.float32)

    # Block-diagonal attention bias (grid-invariant): one-time wrapper cost,
    # replaces per-step iota / integer-divide / compare / where in the kernel.
    seq_ids = jnp.repeat(jnp.arange(S, dtype=jnp.int32), N)
    attn_bias = jnp.where(seq_ids[:, None] == seq_ids[None, :],
                          0.0, -1e30).astype(jnp.float32)        # (SN, SN)

    # Fold the 1/sqrt(dh) attention scale into the Q columns of wqkv / bqkv
    # (weight-space transform; removes a per-head VALU multiply in the kernel).
    scale = 1.0 / (dh ** 0.5)
    q_scale = jnp.concatenate([jnp.full((d_model,), scale, jnp.float32),
                               jnp.ones((2 * d_model,), jnp.float32)])
    wqkv = (params['wqkv'].astype(jnp.float32) * q_scale).astype(params['wqkv'].dtype)
    bqkv = params['bqkv'] * q_scale

    weight_args = [params['w_emb'], wqkv, bqkv, params['wo'], params['bo'],
                   params['ln1w'], params['ln1b'], params['ln2w'], params['ln2b'],
                   params['w1'], params['b1'], params['w2'], params['b2'],
                   params['wrec_t'], params['brec_t']]

    def full_spec(arr):
        nd = arr.ndim
        # Grid-invariant: block == full array, constant block index.
        # TODO(synk): single-buffer these via pipeline_mode=pl.Buffered(1) when
        # scaling the config to v7x's 64 MiB VMEM; at these sizes it is moot.
        return pl.BlockSpec(arr.shape, lambda i, _nd=nd: (0,) * _nd)

    kernel = functools.partial(_patchtst_kernel, n_layers=n_layers,
                               n_heads=n_heads)

    out_t = pl.pallas_call(
        kernel,
        out_shape=jax.ShapeDtypeStruct((G, P, SN), jnp.float32),
        grid=(G,),
        in_specs=[pl.BlockSpec((1, SN, P), lambda i: (i, 0, 0)),
                  full_spec(pos_bias),
                  full_spec(attn_bias)]
                 + [full_spec(w) for w in weight_args],
        out_specs=pl.BlockSpec((1, P, SN), lambda i: (i, 0, 0)),
        compiler_params=pltpu.CompilerParams(
            dimension_semantics=("parallel",),
            vmem_limit_bytes=32 * 1024 * 1024),
    )(x_blocks, pos_bias, attn_bias, *weight_args)

    # (G, P, SN) -> (G, SN, P) -> (B, V, N, P); cheap host-graph transpose.
    reconstructed = jnp.transpose(out_t, (0, 2, 1)).reshape(B, V, N, P)
    return reconstructed, patches, mask


if __name__ == "__main__":
    # Small config consistent with the module's forward.
    B, V = 2, 4
    input_length = 16
    patch_len, stride = 4, 4
    d_model, n_heads, n_layers = 32, 4, 2
    dim_ff = 64
    mask_ratio = 0.4
    n_patches = (input_length - patch_len) // stride + 1

    root = jax.random.PRNGKey(0)
    k_x, k_params, k_mask = jax.random.split(root, 3)

    x = jax.random.normal(k_x, (B, V, input_length), jnp.float32)
    params = init_params(k_params, patch_len=patch_len, n_patches=n_patches,
                         d_model=d_model, n_heads=n_heads, n_layers=n_layers,
                         dim_ff=dim_ff)

    reconstructed, patches, mask = patchtst_self_supervised_forward(
        x, params, k_mask, patch_len=patch_len, stride=stride,
        n_heads=n_heads, n_layers=n_layers, mask_ratio=mask_ratio)

    jax.block_until_ready((reconstructed, patches, mask))
    assert reconstructed.shape == (B, V, n_patches, patch_len)
    assert patches.shape == (B, V, n_patches, patch_len)
    assert mask.shape == (B, V, n_patches)
    assert bool(jnp.all(jnp.isfinite(reconstructed)))
    print("KERNEL_OK")
</pallas_src>

<mosaic_0001>
module attributes {stable_mosaic.version = 11 : i64} {
  func.func @_patchtst_kernel(%arg0: i32, %arg1: memref<1x32x4xf32, #tpu.memory_space<vmem>>, %arg2: memref<32x32xf32, #tpu.memory_space<vmem>>, %arg3: memref<32x32xf32, #tpu.memory_space<vmem>>, %arg4: memref<4x32xbf16, #tpu.memory_space<vmem>>, %arg5: memref<2x32x96xbf16, #tpu.memory_space<vmem>>, %arg6: memref<2x1x96xf32, #tpu.memory_space<vmem>>, %arg7: memref<2x32x32xbf16, #tpu.memory_space<vmem>>, %arg8: memref<2x1x32xf32, #tpu.memory_space<vmem>>, %arg9: memref<2x1x32xf32, #tpu.memory_space<vmem>>, %arg10: memref<2x1x32xf32, #tpu.memory_space<vmem>>, %arg11: memref<2x1x32xf32, #tpu.memory_space<vmem>>, %arg12: memref<2x1x32xf32, #tpu.memory_space<vmem>>, %arg13: memref<2x32x64xbf16, #tpu.memory_space<vmem>>, %arg14: memref<2x1x64xf32, #tpu.memory_space<vmem>>, %arg15: memref<2x64x32xbf16, #tpu.memory_space<vmem>>, %arg16: memref<2x1x32xf32, #tpu.memory_space<vmem>>, %arg17: memref<4x32xbf16, #tpu.memory_space<vmem>>, %arg18: memref<4x1xf32, #tpu.memory_space<vmem>>, %arg19: memref<1x4x32xf32, #tpu.memory_space<vmem>>) attributes {dimension_semantics = [#tpu.dimension_semantics<parallel>], iteration_bounds = array<i64: 1>, scalar_prefetch = 0 : i64, scratch_operands = 0 : i64, tpu.core_type = #tpu.core_type<tc>, window_params = [{transform_indices = @transform_0, window_bounds = array<i64: 1, 32, 4>}, {pipeline_mode = #tpu.pipeline_mode<synchronous>, transform_indices = @transform_1, window_bounds = array<i64: 32, 32>}, {pipeline_mode = #tpu.pipeline_mode<synchronous>, transform_indices = @transform_2, window_bounds = array<i64: 32, 32>}, {pipeline_mode = #tpu.pipeline_mode<synchronous>, transform_indices = @transform_3, window_bounds = array<i64: 4, 32>}, {pipeline_mode = #tpu.pipeline_mode<synchronous>, transform_indices = @transform_4, window_bounds = array<i64: 2, 32, 96>}, {pipeline_mode = #tpu.pipeline_mode<synchronous>, transform_indices = @transform_5, window_bounds = array<i64: 2, 1, 96>}, {pipeline_mode = #tpu.pipeline_mode<synchronous>, transform_indices = @transform_6, window_bounds = array<i64: 2, 32, 32>}, {pipeline_mode = #tpu.pipeline_mode<synchronous>, transform_indices = @transform_7, window_bounds = array<i64: 2, 1, 32>}, {pipeline_mode = #tpu.pipeline_mode<synchronous>, transform_indices = @transform_8, window_bounds = array<i64: 2, 1, 32>}, {pipeline_mode = #tpu.pipeline_mode<synchronous>, transform_indices = @transform_9, window_bounds = array<i64: 2, 1, 32>}, {pipeline_mode = #tpu.pipeline_mode<synchronous>, transform_indices = @transform_10, window_bounds = array<i64: 2, 1, 32>}, {pipeline_mode = #tpu.pipeline_mode<synchronous>, transform_indices = @transform_11, window_bounds = array<i64: 2, 1, 32>}, {pipeline_mode = #tpu.pipeline_mode<synchronous>, transform_indices = @transform_12, window_bounds = array<i64: 2, 32, 64>}, {pipeline_mode = #tpu.pipeline_mode<synchronous>, transform_indices = @transform_13, window_bounds = array<i64: 2, 1, 64>}, {pipeline_mode = #tpu.pipeline_mode<synchronous>, transform_indices = @transform_14, window_bounds = array<i64: 2, 64, 32>}, {pipeline_mode = #tpu.pipeline_mode<synchronous>, transform_indices = @transform_15, window_bounds = array<i64: 2, 1, 32>}, {pipeline_mode = #tpu.pipeline_mode<synchronous>, transform_indices = @transform_16, window_bounds = array<i64: 4, 32>}, {pipeline_mode = #tpu.pipeline_mode<synchronous>, transform_indices = @transform_17, window_bounds = array<i64: 4, 1>}, {transform_indices = @transform_18, window_bounds = array<i64: 1, 4, 32>}]} {
    %c0 = arith.constant 0 : index
    %c0_0 = arith.constant 0 : index
    %c0_1 = arith.constant 0 : index
    %0 = vector.load %arg1[%c0, %c0_0, %c0_1] : memref<1x32x4xf32, #tpu.memory_space<vmem>>, vector<1x32x4xf32>
    %1 = vector.shape_cast %0 : vector<1x32x4xf32> to vector<32x4xf32>
    %2 = arith.truncf %1 : vector<32x4xf32> to vector<32x4xbf16>
    %c0_2 = arith.constant 0 : index
    %c0_3 = arith.constant 0 : index
    %3 = vector.load %arg4[%c0_2, %c0_3] : memref<4x32xbf16, #tpu.memory_space<vmem>>, vector<4x32xbf16>
    %cst = arith.constant dense<0.000000e+00> : vector<32x32xf32>
    %4 = tpu.matmul %2, %3, %cst {dimension_numbers = #tpu.dot_dimension_numbers<[1], [0], [0], [1], [0, 0, 1, 1], [], []>} : vector<32x4xbf16>, vector<4x32xbf16>, vector<32x32xf32> -> vector<32x32xf32>
    %c0_4 = arith.constant 0 : index
    %c0_5 = arith.constant 0 : index
    %5 = vector.load %arg2[%c0_4, %c0_5] : memref<32x32xf32, #tpu.memory_space<vmem>>, vector<32x32xf32>
    %6 = arith.addf %4, %5 : vector<32x32xf32>
    %c0_6 = arith.constant 0 : index
    %c0_7 = arith.constant 0 : index
    %7 = vector.load %arg3[%c0_6, %c0_7] : memref<32x32xf32, #tpu.memory_space<vmem>>, vector<32x32xf32>
    %8 = arith.truncf %6 : vector<32x32xf32> to vector<32x32xbf16>
    %c0_8 = arith.constant 0 : index
    %c0_9 = arith.constant 0 : index
    %c0_10 = arith.constant 0 : index
    %9 = vector.load %arg5[%c0_8, %c0_9, %c0_10] : memref<2x32x96xbf16, #tpu.memory_space<vmem>>, vector<1x32x96xbf16>
    %10 = vector.shape_cast %9 : vector<1x32x96xbf16> to vector<32x96xbf16>
    %cst_11 = arith.constant dense<0.000000e+00> : vector<32x96xf32>
    %11 = tpu.matmul %8, %10, %cst_11 {dimension_numbers = #tpu.dot_dimension_numbers<[1], [0], [0], [1], [0, 0, 1, 1], [], []>} : vector<32x32xbf16>, vector<32x96xbf16>, vector<32x96xf32> -> vector<32x96xf32>
    %c0_12 = arith.constant 0 : index
    %c0_13 = arith.constant 0 : index
    %c0_14 = arith.constant 0 : index
    %12 = vector.load %arg6[%c0_12, %c0_13, %c0_14] : memref<2x1x96xf32, #tpu.memory_space<vmem>>, vector<1x1x96xf32>
    %13 = vector.shape_cast %12 : vector<1x1x96xf32> to vector<1x96xf32>
    %14 = vector.broadcast %13 : vector<1x96xf32> to vector<32x96xf32>
    %15 = arith.addf %11, %14 : vector<32x96xf32>
    %c0_15 = arith.constant 0 : index
    %c0_16 = arith.constant 0 : index
    %c0_17 = arith.constant 0 : index
    %16 = vector.load %arg7[%c0_15, %c0_16, %c0_17] : memref<2x32x32xbf16, #tpu.memory_space<vmem>>, vector<1x32x32xbf16>
    %17 = vector.shape_cast %16 : vector<1x32x32xbf16> to vector<32x32xbf16>
    %cst_18 = arith.constant 0.000000e+00 : f32
    %18 = vector.broadcast %cst_18 : f32 to vector<32x32xf32>
    %19 = vector.extract_strided_slice %15 {offsets = [0, 0], sizes = [32, 8], strides = [1, 1]} : vector<32x96xf32> to vector<32x8xf32>
    %20 = arith.truncf %19 : vector<32x8xf32> to vector<32x8xbf16>
    %21 = vector.extract_strided_slice %15 {offsets = [0, 32], sizes = [32, 8], strides = [1, 1]} : vector<32x96xf32> to vector<32x8xf32>
    %22 = arith.truncf %21 : vector<32x8xf32> to vector<32x8xbf16>
    %23 = vector.extract_strided_slice %15 {offsets = [0, 64], sizes = [32, 8], strides = [1, 1]} : vector<32x96xf32> to vector<32x8xf32>
    %24 = arith.truncf %23 : vector<32x8xf32> to vector<32x8xbf16>
    %cst_19 = arith.constant dense<0.000000e+00> : vector<32x32xf32>
    %25 = tpu.matmul %20, %22, %cst_19 {dimension_numbers = #tpu.dot_dimension_numbers<[1], [1], [0], [0], [0, 0, 1, 0], [], []>} : vector<32x8xbf16>, vector<32x8xbf16>, vector<32x32xf32> -> vector<32x32xf32>
    %26 = arith.addf %25, %7 : vector<32x32xf32>
    %cst_20 = arith.constant dense<0xFF800000> : vector<32xf32>
    %27 = vector.multi_reduction <maximumf>, %26, %cst_20 [1] : vector<32x32xf32> to vector<32xf32>
    %28 = vector.shape_cast %27 : vector<32xf32> to vector<32x1xf32>
    %29 = vector.broadcast %28 : vector<32x1xf32> to vector<32x32xf32>
    %30 = arith.subf %26, %29 : vector<32x32xf32>
    %31 = math.exp %30 : vector<32x32xf32>
    %cst_21 = arith.constant dense<0.000000e+00> : vector<32xf32>
    %32 = vector.multi_reduction <add>, %31, %cst_21 [1] : vector<32x32xf32> to vector<32xf32>
    %33 = vector.shape_cast %32 : vector<32xf32> to vector<32x1xf32>
    %34 = arith.truncf %31 : vector<32x32xf32> to vector<32x32xbf16>
    %cst_22 = arith.constant dense<0.000000e+00> : vector<32x8xf32>
    %35 = tpu.matmul %34, %24, %cst_22 {dimension_numbers = #tpu.dot_dimension_numbers<[1], [0], [0], [1], [0, 0, 1, 1], [], []>} : vector<32x32xbf16>, vector<32x8xbf16>, vector<32x8xf32> -> vector<32x8xf32>
    %36 = tpu.reciprocal %33 {approx = true} : vector<32x1xf32> -> vector<32x1xf32>
    %37 = vector.broadcast %36 : vector<32x1xf32> to vector<32x8xf32>
    %38 = arith.mulf %35, %37 : vector<32x8xf32>
    %39 = arith.truncf %38 : vector<32x8xf32> to vector<32x8xbf16>
    %40 = vector.extract_strided_slice %17 {offsets = [0, 0], sizes = [8, 32], strides = [1, 1]} : vector<32x32xbf16> to vector<8x32xbf16>
    %cst_23 = arith.constant dense<0.000000e+00> : vector<32x32xf32>
    %41 = tpu.matmul %39, %40, %cst_23 {dimension_numbers = #tpu.dot_dimension_numbers<[1], [0], [0], [1], [0, 0, 1, 1], [], []>} : vector<32x8xbf16>, vector<8x32xbf16>, vector<32x32xf32> -> vector<32x32xf32>
    %42 = arith.addf %18, %41 : vector<32x32xf32>
    %43 = vector.extract_strided_slice %15 {offsets = [0, 8], sizes = [32, 8], strides = [1, 1]} : vector<32x96xf32> to vector<32x8xf32>
    %44 = arith.truncf %43 : vector<32x8xf32> to vector<32x8xbf16>
    %45 = vector.extract_strided_slice %15 {offsets = [0, 40], sizes = [32, 8], strides = [1, 1]} : vector<32x96xf32> to vector<32x8xf32>
    %46 = arith.truncf %45 : vector<32x8xf32> to vector<32x8xbf16>
    %47 = vector.extract_strided_slice %15 {offsets = [0, 72], sizes = [32, 8], strides = [1, 1]} : vector<32x96xf32> to vector<32x8xf32>
    %48 = arith.truncf %47 : vector<32x8xf32> to vector<32x8xbf16>
    %cst_24 = arith.constant dense<0.000000e+00> : vector<32x32xf32>
    %49 = tpu.matmul %44, %46, %cst_24 {dimension_numbers = #tpu.dot_dimension_numbers<[1], [1], [0], [0], [0, 0, 1, 0], [], []>} : vector<32x8xbf16>, vector<32x8xbf16>, vector<32x32xf32> -> vector<32x32xf32>
    %50 = arith.addf %49, %7 : vector<32x32xf32>
    %cst_25 = arith.constant dense<0xFF800000> : vector<32xf32>
    %51 = vector.multi_reduction <maximumf>, %50, %cst_25 [1] : vector<32x32xf32> to vector<32xf32>
    %52 = vector.shape_cast %51 : vector<32xf32> to vector<32x1xf32>
    %53 = vector.broadcast %52 : vector<32x1xf32> to vector<32x32xf32>
    %54 = arith.subf %50, %53 : vector<32x32xf32>
    %55 = math.exp %54 : vector<32x32xf32>
    %cst_26 = arith.constant dense<0.000000e+00> : vector<32xf32>
    %56 = vector.multi_reduction <add>, %55, %cst_26 [1] : vector<32x32xf32> to vector<32xf32>
    %57 = vector.shape_cast %56 : vector<32xf32> to vector<32x1xf32>
    %58 = arith.truncf %55 : vector<32x32xf32> to vector<32x32xbf16>
    %cst_27 = arith.constant dense<0.000000e+00> : vector<32x8xf32>
    %59 = tpu.matmul %58, %48, %cst_27 {dimension_numbers = #tpu.dot_dimension_numbers<[1], [0], [0], [1], [0, 0, 1, 1], [], []>} : vector<32x32xbf16>, vector<32x8xbf16>, vector<32x8xf32> -> vector<32x8xf32>
    %60 = tpu.reciprocal %57 {approx = true} : vector<32x1xf32> -> vector<32x1xf32>
    %61 = vector.broadcast %60 : vector<32x1xf32> to vector<32x8xf32>
    %62 = arith.mulf %59, %61 : vector<32x8xf32>
    %63 = arith.truncf %62 : vector<32x8xf32> to vector<32x8xbf16>
    %64 = vector.extract_strided_slice %17 {offsets = [8, 0], sizes = [8, 32], strides = [1, 1]} : vector<32x32xbf16> to vector<8x32xbf16>
    %cst_28 = arith.constant dense<0.000000e+00> : vector<32x32xf32>
    %65 = tpu.matmul %63, %64, %cst_28 {dimension_numbers = #tpu.dot_dimension_numbers<[1], [0], [0], [1], [0, 0, 1, 1], [], []>} : vector<32x8xbf16>, vector<8x32xbf16>, vector<32x32xf32> -> vector<32x32xf32>
    %66 = arith.addf %42, %65 : vector<32x32xf32>
    %67 = vector.extract_strided_slice %15 {offsets = [0, 16], sizes = [32, 8], strides = [1, 1]} : vector<32x96xf32> to vector<32x8xf32>
    %68 = arith.truncf %67 : vector<32x8xf32> to vector<32x8xbf16>
    %69 = vector.extract_strided_slice %15 {offsets = [0, 48], sizes = [32, 8], strides = [1, 1]} : vector<32x96xf32> to vector<32x8xf32>
    %70 = arith.truncf %69 : vector<32x8xf32> to vector<32x8xbf16>
    %71 = vector.extract_strided_slice %15 {offsets = [0, 80], sizes = [32, 8], strides = [1, 1]} : vector<32x96xf32> to vector<32x8xf32>
    %72 = arith.truncf %71 : vector<32x8xf32> to vector<32x8xbf16>
    %cst_29 = arith.constant dense<0.000000e+00> : vector<32x32xf32>
    %73 = tpu.matmul %68, %70, %cst_29 {dimension_numbers = #tpu.dot_dimension_numbers<[1], [1], [0], [0], [0, 0, 1, 0], [], []>} : vector<32x8xbf16>, vector<32x8xbf16>, vector<32x32xf32> -> vector<32x32xf32>
    %74 = arith.addf %73, %7 : vector<32x32xf32>
    %cst_30 = arith.constant dense<0xFF800000> : vector<32xf32>
    %75 = vector.multi_reduction <maximumf>, %74, %cst_30 [1] : vector<32x32xf32> to vector<32xf32>
    %76 = vector.shape_cast %75 : vector<32xf32> to vector<32x1xf32>
    %77 = vector.broadcast %76 : vector<32x1xf32> to vector<32x32xf32>
    %78 = arith.subf %74, %77 : vector<32x32xf32>
    %79 = math.exp %78 : vector<32x32xf32>
    %cst_31 = arith.constant dense<0.000000e+00> : vector<32xf32>
    %80 = vector.multi_reduction <add>, %79, %cst_31 [1] : vector<32x32xf32> to vector<32xf32>
    %81 = vector.shape_cast %80 : vector<32xf32> to vector<32x1xf32>
    %82 = arith.truncf %79 : vector<32x32xf32> to vector<32x32xbf16>
    %cst_32 = arith.constant dense<0.000000e+00> : vector<32x8xf32>
    %83 = tpu.matmul %82, %72, %cst_32 {dimension_numbers = #tpu.dot_dimension_numbers<[1], [0], [0], [1], [0, 0, 1, 1], [], []>} : vector<32x32xbf16>, vector<32x8xbf16>, vector<32x8xf32> -> vector<32x8xf32>
    %84 = tpu.reciprocal %81 {approx = true} : vector<32x1xf32> -> vector<32x1xf32>
    %85 = vector.broadcast %84 : vector<32x1xf32> to vector<32x8xf32>
    %86 = arith.mulf %83, %85 : vector<32x8xf32>
    %87 = arith.truncf %86 : vector<32x8xf32> to vector<32x8xbf16>
    %88 = vector.extract_strided_slice %17 {offsets = [16, 0], sizes = [8, 32], strides = [1, 1]} : vector<32x32xbf16> to vector<8x32xbf16>
    %cst_33 = arith.constant dense<0.000000e+00> : vector<32x32xf32>
    %89 = tpu.matmul %87, %88, %cst_33 {dimension_numbers = #tpu.dot_dimension_numbers<[1], [0], [0], [1], [0, 0, 1, 1], [], []>} : vector<32x8xbf16>, vector<8x32xbf16>, vector<32x32xf32> -> vector<32x32xf32>
    %90 = arith.addf %66, %89 : vector<32x32xf32>
    %91 = vector.extract_strided_slice %15 {offsets = [0, 24], sizes = [32, 8], strides = [1, 1]} : vector<32x96xf32> to vector<32x8xf32>
    %92 = arith.truncf %91 : vector<32x8xf32> to vector<32x8xbf16>
    %93 = vector.extract_strided_slice %15 {offsets = [0, 56], sizes = [32, 8], strides = [1, 1]} : vector<32x96xf32> to vector<32x8xf32>
    %94 = arith.truncf %93 : vector<32x8xf32> to vector<32x8xbf16>
    %95 = vector.extract_strided_slice %15 {offsets = [0, 88], sizes = [32, 8], strides = [1, 1]} : vector<32x96xf32> to vector<32x8xf32>
    %96 = arith.truncf %95 : vector<32x8xf32> to vector<32x8xbf16>
    %cst_34 = arith.constant dense<0.000000e+00> : vector<32x32xf32>
    %97 = tpu.matmul %92, %94, %cst_34 {dimension_numbers = #tpu.dot_dimension_numbers<[1], [1], [0], [0], [0, 0, 1, 0], [], []>} : vector<32x8xbf16>, vector<32x8xbf16>, vector<32x32xf32> -> vector<32x32xf32>
    %98 = arith.addf %97, %7 : vector<32x32xf32>
    %cst_35 = arith.constant dense<0xFF800000> : vector<32xf32>
    %99 = vector.multi_reduction <maximumf>, %98, %cst_35 [1] : vector<32x32xf32> to vector<32xf32>
    %100 = vector.shape_cast %99 : vector<32xf32> to vector<32x1xf32>
    %101 = vector.broadcast %100 : vector<32x1xf32> to vector<32x32xf32>
    %102 = arith.subf %98, %101 : vector<32x32xf32>
    %103 = math.exp %102 : vector<32x32xf32>
    %cst_36 = arith.constant dense<0.000000e+00> : vector<32xf32>
    %104 = vector.multi_reduction <add>, %103, %cst_36 [1] : vector<32x32xf32> to vector<32xf32>
    %105 = vector.shape_cast %104 : vector<32xf32> to vector<32x1xf32>
    %106 = arith.truncf %103 : vector<32x32xf32> to vector<32x32xbf16>
    %cst_37 = arith.constant dense<0.000000e+00> : vector<32x8xf32>
    %107 = tpu.matmul %106, %96, %cst_37 {dimension_numbers = #tpu.dot_dimension_numbers<[1], [0], [0], [1], [0, 0, 1, 1], [], []>} : vector<32x32xbf16>, vector<32x8xbf16>, vector<32x8xf32> -> vector<32x8xf32>
    %108 = tpu.reciprocal %105 {approx = true} : vector<32x1xf32> -> vector<32x1xf32>
    %109 = vector.broadcast %108 : vector<32x1xf32> to vector<32x8xf32>
    %110 = arith.mulf %107, %109 : vector<32x8xf32>
    %111 = arith.truncf %110 : vector<32x8xf32> to vector<32x8xbf16>
    %112 = vector.extract_strided_slice %17 {offsets = [24, 0], sizes = [8, 32], strides = [1, 1]} : vector<32x32xbf16> to vector<8x32xbf16>
    %cst_38 = arith.constant dense<0.000000e+00> : vector<32x32xf32>
    %113 = tpu.matmul %111, %112, %cst_38 {dimension_numbers = #tpu.dot_dimension_numbers<[1], [0], [0], [1], [0, 0, 1, 1], [], []>} : vector<32x8xbf16>, vector<8x32xbf16>, vector<32x32xf32> -> vector<32x32xf32>
    %114 = arith.addf %90, %113 : vector<32x32xf32>
    %c0_39 = arith.constant 0 : index
    %c0_40 = arith.constant 0 : index
    %c0_41 = arith.constant 0 : index
    %115 = vector.load %arg8[%c0_39, %c0_40, %c0_41] : memref<2x1x32xf32, #tpu.memory_space<vmem>>, vector<1x1x32xf32>
    %116 = vector.shape_cast %115 : vector<1x1x32xf32> to vector<1x32xf32>
    %117 = vector.broadcast %116 : vector<1x32xf32> to vector<32x32xf32>
    %118 = arith.addf %114, %117 : vector<32x32xf32>
    %119 = arith.addf %6, %118 : vector<32x32xf32>
    %c0_42 = arith.constant 0 : index
    %c0_43 = arith.constant 0 : index
    %c0_44 = arith.constant 0 : index
    %120 = vector.load %arg9[%c0_42, %c0_43, %c0_44] : memref<2x1x32xf32, #tpu.memory_space<vmem>>, vector<1x1x32xf32>
    %121 = vector.shape_cast %120 : vector<1x1x32xf32> to vector<1x32xf32>
    %c0_45 = arith.constant 0 : index
    %c0_46 = arith.constant 0 : index
    %c0_47 = arith.constant 0 : index
    %122 = vector.load %arg10[%c0_45, %c0_46, %c0_47] : memref<2x1x32xf32, #tpu.memory_space<vmem>>, vector<1x1x32xf32>
    %123 = vector.shape_cast %122 : vector<1x1x32xf32> to vector<1x32xf32>
    %cst_48 = arith.constant dense<0.000000e+00> : vector<32xf32>
    %124 = vector.multi_reduction <add>, %119, %cst_48 [1] : vector<32x32xf32> to vector<32xf32>
    %125 = vector.shape_cast %124 : vector<32xf32> to vector<32x1xf32>
    %cst_49 = arith.constant 3.200000e+01 : f32
    %126 = vector.broadcast %cst_49 : f32 to vector<32x1xf32>
    %127 = arith.divf %125, %126 : vector<32x1xf32>
    %128 = vector.broadcast %127 : vector<32x1xf32> to vector<32x32xf32>
    %129 = arith.subf %119, %128 : vector<32x32xf32>
    %130 = arith.mulf %129, %129 : vector<32x32xf32>
    %cst_50 = arith.constant dense<0.000000e+00> : vector<32xf32>
    %131 = vector.multi_reduction <add>, %130, %cst_50 [1] : vector<32x32xf32> to vector<32xf32>
    %132 = vector.shape_cast %131 : vector<32xf32> to vector<32x1xf32>
    %cst_51 = arith.constant 3.200000e+01 : f32
    %133 = vector.broadcast %cst_51 : f32 to vector<32x1xf32>
    %134 = arith.divf %132, %133 : vector<32x1xf32>
    %135 = vector.broadcast %127 : vector<32x1xf32> to vector<32x32xf32>
    %136 = arith.subf %119, %135 : vector<32x32xf32>
    %cst_52 = arith.constant 9.99999974E-6 : f32
    %137 = vector.broadcast %cst_52 : f32 to vector<32x1xf32>
    %138 = arith.addf %134, %137 : vector<32x1xf32>
    %139 = math.rsqrt %138 : vector<32x1xf32>
    %140 = vector.broadcast %139 : vector<32x1xf32> to vector<32x32xf32>
    %141 = arith.mulf %136, %140 : vector<32x32xf32>
    %142 = vector.broadcast %121 : vector<1x32xf32> to vector<32x32xf32>
    %143 = arith.mulf %141, %142 : vector<32x32xf32>
    %144 = vector.broadcast %123 : vector<1x32xf32> to vector<32x32xf32>
    %145 = arith.addf %143, %144 : vector<32x32xf32>
    %146 = arith.truncf %145 : vector<32x32xf32> to vector<32x32xbf16>
    %c0_53 = arith.constant 0 : index
    %c0_54 = arith.constant 0 : index
    %c0_55 = arith.constant 0 : index
    %147 = vector.load %arg13[%c0_53, %c0_54, %c0_55] : memref<2x32x64xbf16, #tpu.memory_space<vmem>>, vector<1x32x64xbf16>
    %148 = vector.shape_cast %147 : vector<1x32x64xbf16> to vector<32x64xbf16>
    %cst_56 = arith.constant dense<0.000000e+00> : vector<32x64xf32>
    %149 = tpu.matmul %146, %148, %cst_56 {dimension_numbers = #tpu.dot_dimension_numbers<[1], [0], [0], [1], [0, 0, 1, 1], [], []>} : vector<32x32xbf16>, vector<32x64xbf16>, vector<32x64xf32> -> vector<32x64xf32>
    %c0_57 = arith.constant 0 : index
    %c0_58 = arith.constant 0 : index
    %c0_59 = arith.constant 0 : index
    %150 = vector.load %arg14[%c0_57, %c0_58, %c0_59] : memref<2x1x64xf32, #tpu.memory_space<vmem>>, vector<1x1x64xf32>
    %151 = vector.shape_cast %150 : vector<1x1x64xf32> to vector<1x64xf32>
    %152 = vector.broadcast %151 : vector<1x64xf32> to vector<32x64xf32>
    %153 = arith.addf %149, %152 : vector<32x64xf32>
    %cst_60 = arith.constant 0.000000e+00 : f32
    %154 = vector.broadcast %cst_60 : f32 to vector<32x64xf32>
    %155 = arith.maximumf %153, %154 : vector<32x64xf32>
    %156 = arith.truncf %155 : vector<32x64xf32> to vector<32x64xbf16>
    %c0_61 = arith.constant 0 : index
    %c0_62 = arith.constant 0 : index
    %c0_63 = arith.constant 0 : index
    %157 = vector.load %arg15[%c0_61, %c0_62, %c0_63] : memref<2x64x32xbf16, #tpu.memory_space<vmem>>, vector<1x64x32xbf16>
    %158 = vector.shape_cast %157 : vector<1x64x32xbf16> to vector<64x32xbf16>
    %cst_64 = arith.constant dense<0.000000e+00> : vector<32x32xf32>
    %159 = tpu.matmul %156, %158, %cst_64 {dimension_numbers = #tpu.dot_dimension_numbers<[1], [0], [0], [1], [0, 0, 1, 1], [], []>} : vector<32x64xbf16>, vector<64x32xbf16>, vector<32x32xf32> -> vector<32x32xf32>
    %c0_65 = arith.constant 0 : index
    %c0_66 = arith.constant 0 : index
    %c0_67 = arith.constant 0 : index
    %160 = vector.load %arg16[%c0_65, %c0_66, %c0_67] : memref<2x1x32xf32, #tpu.memory_space<vmem>>, vector<1x1x32xf32>
    %161 = vector.shape_cast %160 : vector<1x1x32xf32> to vector<1x32xf32>
    %162 = vector.broadcast %161 : vector<1x32xf32> to vector<32x32xf32>
    %163 = arith.addf %159, %162 : vector<32x32xf32>
    %164 = arith.addf %145, %163 : vector<32x32xf32>
    %c0_68 = arith.constant 0 : index
    %c0_69 = arith.constant 0 : index
    %c0_70 = arith.constant 0 : index
    %165 = vector.load %arg11[%c0_68, %c0_69, %c0_70] : memref<2x1x32xf32, #tpu.memory_space<vmem>>, vector<1x1x32xf32>
    %166 = vector.shape_cast %165 : vector<1x1x32xf32> to vector<1x32xf32>
    %c0_71 = arith.constant 0 : index
    %c0_72 = arith.constant 0 : index
    %c0_73 = arith.constant 0 : index
    %167 = vector.load %arg12[%c0_71, %c0_72, %c0_73] : memref<2x1x32xf32, #tpu.memory_space<vmem>>, vector<1x1x32xf32>
    %168 = vector.shape_cast %167 : vector<1x1x32xf32> to vector<1x32xf32>
    %cst_74 = arith.constant dense<0.000000e+00> : vector<32xf32>
    %169 = vector.multi_reduction <add>, %164, %cst_74 [1] : vector<32x32xf32> to vector<32xf32>
    %170 = vector.shape_cast %169 : vector<32xf32> to vector<32x1xf32>
    %cst_75 = arith.constant 3.200000e+01 : f32
    %171 = vector.broadcast %cst_75 : f32 to vector<32x1xf32>
    %172 = arith.divf %170, %171 : vector<32x1xf32>
    %173 = vector.broadcast %172 : vector<32x1xf32> to vector<32x32xf32>
    %174 = arith.subf %164, %173 : vector<32x32xf32>
    %175 = arith.mulf %174, %174 : vector<32x32xf32>
    %cst_76 = arith.constant dense<0.000000e+00> : vector<32xf32>
    %176 = vector.multi_reduction <add>, %175, %cst_76 [1] : vector<32x32xf32> to vector<32xf32>
    %177 = vector.shape_cast %176 : vector<32xf32> to vector<32x1xf32>
    %cst_77 = arith.constant 3.200000e+01 : f32
    %178 = vector.broadcast %cst_77 : f32 to vector<32x1xf32>
    %179 = arith.divf %177, %178 : vector<32x1xf32>
    %180 = vector.broadcast %172 : vector<32x1xf32> to vector<32x32xf32>
    %181 = arith.subf %164, %180 : vector<32x32xf32>
    %cst_78 = arith.constant 9.99999974E-6 : f32
    %182 = vector.broadcast %cst_78 : f32 to vector<32x1xf32>
    %183 = arith.addf %179, %182 : vector<32x1xf32>
    %184 = math.rsqrt %183 : vector<32x1xf32>
    %185 = vector.broadcast %184 : vector<32x1xf32> to vector<32x32xf32>
    %186 = arith.mulf %181, %185 : vector<32x32xf32>
    %187 = vector.broadcast %166 : vector<1x32xf32> to vector<32x32xf32>
    %188 = arith.mulf %186, %187 : vector<32x32xf32>
    %189 = vector.broadcast %168 : vector<1x32xf32> to vector<32x32xf32>
    %190 = arith.addf %188, %189 : vector<32x32xf32>
    %191 = arith.truncf %190 : vector<32x32xf32> to vector<32x32xbf16>
    %c1 = arith.constant 1 : index
    %c0_79 = arith.constant 0 : index
    %c0_80 = arith.constant 0 : index
    %192 = vector.load %arg5[%c1, %c0_79, %c0_80] : memref<2x32x96xbf16, #tpu.memory_space<vmem>>, vector<1x32x96xbf16>
    %193 = vector.shape_cast %192 : vector<1x32x96xbf16> to vector<32x96xbf16>
    %cst_81 = arith.constant dense<0.000000e+00> : vector<32x96xf32>
    %194 = tpu.matmul %191, %193, %cst_81 {dimension_numbers = #tpu.dot_dimension_numbers<[1], [0], [0], [1], [0, 0, 1, 1], [], []>} : vector<32x32xbf16>, vector<32x96xbf16>, vector<32x96xf32> -> vector<32x96xf32>
    %c1_82 = arith.constant 1 : index
    %c0_83 = arith.constant 0 : index
    %c0_84 = arith.constant 0 : index
    %195 = vector.load %arg6[%c1_82, %c0_83, %c0_84] : memref<2x1x96xf32, #tpu.memory_space<vmem>>, vector<1x1x96xf32>
    %196 = vector.shape_cast %195 : vector<1x1x96xf32> to vector<1x96xf32>
    %197 = vector.broadcast %196 : vector<1x96xf32> to vector<32x96xf32>
    %198 = arith.addf %194, %197 : vector<32x96xf32>
    %c1_85 = arith.constant 1 : index
    %c0_86 = arith.constant 0 : index
    %c0_87 = arith.constant 0 : index
    %199 = vector.load %arg7[%c1_85, %c0_86, %c0_87] : memref<2x32x32xbf16, #tpu.memory_space<vmem>>, vector<1x32x32xbf16>
    %200 = vector.shape_cast %199 : vector<1x32x32xbf16> to vector<32x32xbf16>
    %cst_88 = arith.constant 0.000000e+00 : f32
    %201 = vector.broadcast %cst_88 : f32 to vector<32x32xf32>
    %202 = vector.extract_strided_slice %198 {offsets = [0, 0], sizes = [32, 8], strides = [1, 1]} : vector<32x96xf32> to vector<32x8xf32>
    %203 = arith.truncf %202 : vector<32x8xf32> to vector<32x8xbf16>
    %204 = vector.extract_strided_slice %198 {offsets = [0, 32], sizes = [32, 8], strides = [1, 1]} : vector<32x96xf32> to vector<32x8xf32>
    %205 = arith.truncf %204 : vector<32x8xf32> to vector<32x8xbf16>
    %206 = vector.extract_strided_slice %198 {offsets = [0, 64], sizes = [32, 8], strides = [1, 1]} : vector<32x96xf32> to vector<32x8xf32>
    %207 = arith.truncf %206 : vector<32x8xf32> to vector<32x8xbf16>
    %cst_89 = arith.constant dense<0.000000e+00> : vector<32x32xf32>
    %208 = tpu.matmul %203, %205, %cst_89 {dimension_numbers = #tpu.dot_dimension_numbers<[1], [1], [0], [0], [0, 0, 1, 0], [], []>} : vector<32x8xbf16>, vector<32x8xbf16>, vector<32x32xf32> -> vector<32x32xf32>
    %209 = arith.addf %208, %7 : vector<32x32xf32>
    %cst_90 = arith.constant dense<0xFF800000> : vector<32xf32>
    %210 = vector.multi_reduction <maximumf>, %209, %cst_90 [1] : vector<32x32xf32> to vector<32xf32>
    %211 = vector.shape_cast %210 : vector<32xf32> to vector<32x1xf32>
    %212 = vector.broadcast %211 : vector<32x1xf32> to vector<32x32xf32>
    %213 = arith.subf %209, %212 : vector<32x32xf32>
    %214 = math.exp %213 : vector<32x32xf32>
    %cst_91 = arith.constant dense<0.000000e+00> : vector<32xf32>
    %215 = vector.multi_reduction <add>, %214, %cst_91 [1] : vector<32x32xf32> to vector<32xf32>
    %216 = vector.shape_cast %215 : vector<32xf32> to vector<32x1xf32>
    %217 = arith.truncf %214 : vector<32x32xf32> to vector<32x32xbf16>
    %cst_92 = arith.constant dense<0.000000e+00> : vector<32x8xf32>
    %218 = tpu.matmul %217, %207, %cst_92 {dimension_numbers = #tpu.dot_dimension_numbers<[1], [0], [0], [1], [0, 0, 1, 1], [], []>} : vector<32x32xbf16>, vector<32x8xbf16>, vector<32x8xf32> -> vector<32x8xf32>
    %219 = tpu.reciprocal %216 {approx = true} : vector<32x1xf32> -> vector<32x1xf32>
    %220 = vector.broadcast %219 : vector<32x1xf32> to vector<32x8xf32>
    %221 = arith.mulf %218, %220 : vector<32x8xf32>
    %222 = arith.truncf %221 : vector<32x8xf32> to vector<32x8xbf16>
    %223 = vector.extract_strided_slice %200 {offsets = [0, 0], sizes = [8, 32], strides = [1, 1]} : vector<32x32xbf16> to vector<8x32xbf16>
    %cst_93 = arith.constant dense<0.000000e+00> : vector<32x32xf32>
    %224 = tpu.matmul %222, %223, %cst_93 {dimension_numbers = #tpu.dot_dimension_numbers<[1], [0], [0], [1], [0, 0, 1, 1], [], []>} : vector<32x8xbf16>, vector<8x32xbf16>, vector<32x32xf32> -> vector<32x32xf32>
    %225 = arith.addf %201, %224 : vector<32x32xf32>
    %226 = vector.extract_strided_slice %198 {offsets = [0, 8], sizes = [32, 8], strides = [1, 1]} : vector<32x96xf32> to vector<32x8xf32>
    %227 = arith.truncf %226 : vector<32x8xf32> to vector<32x8xbf16>
    %228 = vector.extract_strided_slice %198 {offsets = [0, 40], sizes = [32, 8], strides = [1, 1]} : vector<32x96xf32> to vector<32x8xf32>
    %229 = arith.truncf %228 : vector<32x8xf32> to vector<32x8xbf16>
    %230 = vector.extract_strided_slice %198 {offsets = [0, 72], sizes = [32, 8], strides = [1, 1]} : vector<32x96xf32> to vector<32x8xf32>
    %231 = arith.truncf %230 : vector<32x8xf32> to vector<32x8xbf16>
    %cst_94 = arith.constant dense<0.000000e+00> : vector<32x32xf32>
    %232 = tpu.matmul %227, %229, %cst_94 {dimension_numbers = #tpu.dot_dimension_numbers<[1], [1], [0], [0], [0, 0, 1, 0], [], []>} : vector<32x8xbf16>, vector<32x8xbf16>, vector<32x32xf32> -> vector<32x32xf32>
    %233 = arith.addf %232, %7 : vector<32x32xf32>
    %cst_95 = arith.constant dense<0xFF800000> : vector<32xf32>
    %234 = vector.multi_reduction <maximumf>, %233, %cst_95 [1] : vector<32x32xf32> to vector<32xf32>
    %235 = vector.shape_cast %234 : vector<32xf32> to vector<32x1xf32>
    %236 = vector.broadcast %235 : vector<32x1xf32> to vector<32x32xf32>
    %237 = arith.subf %233, %236 : vector<32x32xf32>
    %238 = math.exp %237 : vector<32x32xf32>
    %cst_96 = arith.constant dense<0.000000e+00> : vector<32xf32>
    %239 = vector.multi_reduction <add>, %238, %cst_96 [1] : vector<32x32xf32> to vector<32xf32>
    %240 = vector.shape_cast %239 : vector<32xf32> to vector<32x1xf32>
    %241 = arith.truncf %238 : vector<32x32xf32> to vector<32x32xbf16>
    %cst_97 = arith.constant dense<0.000000e+00> : vector<32x8xf32>
    %242 = tpu.matmul %241, %231, %cst_97 {dimension_numbers = #tpu.dot_dimension_numbers<[1], [0], [0], [1], [0, 0, 1, 1], [], []>} : vector<32x32xbf16>, vector<32x8xbf16>, vector<32x8xf32> -> vector<32x8xf32>
    %243 = tpu.reciprocal %240 {approx = true} : vector<32x1xf32> -> vector<32x1xf32>
    %244 = vector.broadcast %243 : vector<32x1xf32> to vector<32x8xf32>
    %245 = arith.mulf %242, %244 : vector<32x8xf32>
    %246 = arith.truncf %245 : vector<32x8xf32> to vector<32x8xbf16>
    %247 = vector.extract_strided_slice %200 {offsets = [8, 0], sizes = [8, 32], strides = [1, 1]} : vector<32x32xbf16> to vector<8x32xbf16>
    %cst_98 = arith.constant dense<0.000000e+00> : vector<32x32xf32>
    %248 = tpu.matmul %246, %247, %cst_98 {dimension_numbers = #tpu.dot_dimension_numbers<[1], [0], [0], [1], [0, 0, 1, 1], [], []>} : vector<32x8xbf16>, vector<8x32xbf16>, vector<32x32xf32> -> vector<32x32xf32>
    %249 = arith.addf %225, %248 : vector<32x32xf32>
    %250 = vector.extract_strided_slice %198 {offsets = [0, 16], sizes = [32, 8], strides = [1, 1]} : vector<32x96xf32> to vector<32x8xf32>
    %251 = arith.truncf %250 : vector<32x8xf32> to vector<32x8xbf16>
    %252 = vector.extract_strided_slice %198 {offsets = [0, 48], sizes = [32, 8], strides = [1, 1]} : vector<32x96xf32> to vector<32x8xf32>
    %253 = arith.truncf %252 : vector<32x8xf32> to vector<32x8xbf16>
    %254 = vector.extract_strided_slice %198 {offsets = [0, 80], sizes = [32, 8], strides = [1, 1]} : vector<32x96xf32> to vector<32x8xf32>
    %255 = arith.truncf %254 : vector<32x8xf32> to vector<32x8xbf16>
    %cst_99 = arith.constant dense<0.000000e+00> : vector<32x32xf32>
    %256 = tpu.matmul %251, %253, %cst_99 {dimension_numbers = #tpu.dot_dimension_numbers<[1], [1], [0], [0], [0, 0, 1, 0], [], []>} : vector<32x8xbf16>, vector<32x8xbf16>, vector<32x32xf32> -> vector<32x32xf32>
    %257 = arith.addf %256, %7 : vector<32x32xf32>
    %cst_100 = arith.constant dense<0xFF800000> : vector<32xf32>
    %258 = vector.multi_reduction <maximumf>, %257, %cst_100 [1] : vector<32x32xf32> to vector<32xf32>
    %259 = vector.shape_cast %258 : vector<32xf32> to vector<32x1xf32>
    %260 = vector.broadcast %259 : vector<32x1xf32> to vector<32x32xf32>
    %261 = arith.subf %257, %260 : vector<32x32xf32>
    %262 = math.exp %261 : vector<32x32xf32>
    %cst_101 = arith.constant dense<0.000000e+00> : vector<32xf32>
    %263 = vector.multi_reduction <add>, %262, %cst_101 [1] : vector<32x32xf32> to vector<32xf32>
    %264 = vector.shape_cast %263 : vector<32xf32> to vector<32x1xf32>
    %265 = arith.truncf %262 : vector<32x32xf32> to vector<32x32xbf16>
    %cst_102 = arith.constant dense<0.000000e+00> : vector<32x8xf32>
    %266 = tpu.matmul %265, %255, %cst_102 {dimension_numbers = #tpu.dot_dimension_numbers<[1], [0], [0], [1], [0, 0, 1, 1], [], []>} : vector<32x32xbf16>, vector<32x8xbf16>, vector<32x8xf32> -> vector<32x8xf32>
    %267 = tpu.reciprocal %264 {approx = true} : vector<32x1xf32> -> vector<32x1xf32>
    %268 = vector.broadcast %267 : vector<32x1xf32> to vector<32x8xf32>
    %269 = arith.mulf %266, %268 : vector<32x8xf32>
    %270 = arith.truncf %269 : vector<32x8xf32> to vector<32x8xbf16>
    %271 = vector.extract_strided_slice %200 {offsets = [16, 0], sizes = [8, 32], strides = [1, 1]} : vector<32x32xbf16> to vector<8x32xbf16>
    %cst_103 = arith.constant dense<0.000000e+00> : vector<32x32xf32>
    %272 = tpu.matmul %270, %271, %cst_103 {dimension_numbers = #tpu.dot_dimension_numbers<[1], [0], [0], [1], [0, 0, 1, 1], [], []>} : vector<32x8xbf16>, vector<8x32xbf16>, vector<32x32xf32> -> vector<32x32xf32>
    %273 = arith.addf %249, %272 : vector<32x32xf32>
    %274 = vector.extract_strided_slice %198 {offsets = [0, 24], sizes = [32, 8], strides = [1, 1]} : vector<32x96xf32> to vector<32x8xf32>
    %275 = arith.truncf %274 : vector<32x8xf32> to vector<32x8xbf16>
    %276 = vector.extract_strided_slice %198 {offsets = [0, 56], sizes = [32, 8], strides = [1, 1]} : vector<32x96xf32> to vector<32x8xf32>
    %277 = arith.truncf %276 : vector<32x8xf32> to vector<32x8xbf16>
    %278 = vector.extract_strided_slice %198 {offsets = [0, 88], sizes = [32, 8], strides = [1, 1]} : vector<32x96xf32> to vector<32x8xf32>
    %279 = arith.truncf %278 : vector<32x8xf32> to vector<32x8xbf16>
    %cst_104 = arith.constant dense<0.000000e+00> : vector<32x32xf32>
    %280 = tpu.matmul %275, %277, %cst_104 {dimension_numbers = #tpu.dot_dimension_numbers<[1], [1], [0], [0], [0, 0, 1, 0], [], []>} : vector<32x8xbf16>, vector<32x8xbf16>, vector<32x32xf32> -> vector<32x32xf32>
    %281 = arith.addf %280, %7 : vector<32x32xf32>
    %cst_105 = arith.constant dense<0xFF800000> : vector<32xf32>
    %282 = vector.multi_reduction <maximumf>, %281, %cst_105 [1] : vector<32x32xf32> to vector<32xf32>
    %283 = vector.shape_cast %282 : vector<32xf32> to vector<32x1xf32>
    %284 = vector.broadcast %283 : vector<32x1xf32> to vector<32x32xf32>
    %285 = arith.subf %281, %284 : vector<32x32xf32>
    %286 = math.exp %285 : vector<32x32xf32>
    %cst_106 = arith.constant dense<0.000000e+00> : vector<32xf32>
    %287 = vector.multi_reduction <add>, %286, %cst_106 [1] : vector<32x32xf32> to vector<32xf32>
    %288 = vector.shape_cast %287 : vector<32xf32> to vector<32x1xf32>
    %289 = arith.truncf %286 : vector<32x32xf32> to vector<32x32xbf16>
    %cst_107 = arith.constant dense<0.000000e+00> : vector<32x8xf32>
    %290 = tpu.matmul %289, %279, %cst_107 {dimension_numbers = #tpu.dot_dimension_numbers<[1], [0], [0], [1], [0, 0, 1, 1], [], []>} : vector<32x32xbf16>, vector<32x8xbf16>, vector<32x8xf32> -> vector<32x8xf32>
    %291 = tpu.reciprocal %288 {approx = true} : vector<32x1xf32> -> vector<32x1xf32>
    %292 = vector.broadcast %291 : vector<32x1xf32> to vector<32x8xf32>
    %293 = arith.mulf %290, %292 : vector<32x8xf32>
    %294 = arith.truncf %293 : vector<32x8xf32> to vector<32x8xbf16>
    %295 = vector.extract_strided_slice %200 {offsets = [24, 0], sizes = [8, 32], strides = [1, 1]} : vector<32x32xbf16> to vector<8x32xbf16>
    %cst_108 = arith.constant dense<0.000000e+00> : vector<32x32xf32>
    %296 = tpu.matmul %294, %295, %cst_108 {dimension_numbers = #tpu.dot_dimension_numbers<[1], [0], [0], [1], [0, 0, 1, 1], [], []>} : vector<32x8xbf16>, vector<8x32xbf16>, vector<32x32xf32> -> vector<32x32xf32>
    %297 = arith.addf %273, %296 : vector<32x32xf32>
    %c1_109 = arith.constant 1 : index
    %c0_110 = arith.constant 0 : index
    %c0_111 = arith.constant 0 : index
    %298 = vector.load %arg8[%c1_109, %c0_110, %c0_111] : memref<2x1x32xf32, #tpu.memory_space<vmem>>, vector<1x1x32xf32>
    %299 = vector.shape_cast %298 : vector<1x1x32xf32> to vector<1x32xf32>
    %300 = vector.broadcast %299 : vector<1x32xf32> to vector<32x32xf32>
    %301 = arith.addf %297, %300 : vector<32x32xf32>
    %302 = arith.addf %190, %301 : vector<32x32xf32>
    %c1_112 = arith.constant 1 : index
    %c0_113 = arith.constant 0 : index
    %c0_114 = arith.constant 0 : index
    %303 = vector.load %arg9[%c1_112, %c0_113, %c0_114] : memref<2x1x32xf32, #tpu.memory_space<vmem>>, vector<1x1x32xf32>
    %304 = vector.shape_cast %303 : vector<1x1x32xf32> to vector<1x32xf32>
    %c1_115 = arith.constant 1 : index
    %c0_116 = arith.constant 0 : index
    %c0_117 = arith.constant 0 : index
    %305 = vector.load %arg10[%c1_115, %c0_116, %c0_117] : memref<2x1x32xf32, #tpu.memory_space<vmem>>, vector<1x1x32xf32>
    %306 = vector.shape_cast %305 : vector<1x1x32xf32> to vector<1x32xf32>
    %cst_118 = arith.constant dense<0.000000e+00> : vector<32xf32>
    %307 = vector.multi_reduction <add>, %302, %cst_118 [1] : vector<32x32xf32> to vector<32xf32>
    %308 = vector.shape_cast %307 : vector<32xf32> to vector<32x1xf32>
    %cst_119 = arith.constant 3.200000e+01 : f32
    %309 = vector.broadcast %cst_119 : f32 to vector<32x1xf32>
    %310 = arith.divf %308, %309 : vector<32x1xf32>
    %311 = vector.broadcast %310 : vector<32x1xf32> to vector<32x32xf32>
    %312 = arith.subf %302, %311 : vector<32x32xf32>
    %313 = arith.mulf %312, %312 : vector<32x32xf32>
    %cst_120 = arith.constant dense<0.000000e+00> : vector<32xf32>
    %314 = vector.multi_reduction <add>, %313, %cst_120 [1] : vector<32x32xf32> to vector<32xf32>
    %315 = vector.shape_cast %314 : vector<32xf32> to vector<32x1xf32>
    %cst_121 = arith.constant 3.200000e+01 : f32
    %316 = vector.broadcast %cst_121 : f32 to vector<32x1xf32>
    %317 = arith.divf %315, %316 : vector<32x1xf32>
    %318 = vector.broadcast %310 : vector<32x1xf32> to vector<32x32xf32>
    %319 = arith.subf %302, %318 : vector<32x32xf32>
    %cst_122 = arith.constant 9.99999974E-6 : f32
    %320 = vector.broadcast %cst_122 : f32 to vector<32x1xf32>
    %321 = arith.addf %317, %320 : vector<32x1xf32>
    %322 = math.rsqrt %321 : vector<32x1xf32>
    %323 = vector.broadcast %322 : vector<32x1xf32> to vector<32x32xf32>
    %324 = arith.mulf %319, %323 : vector<32x32xf32>
    %325 = vector.broadcast %304 : vector<1x32xf32> to vector<32x32xf32>
    %326 = arith.mulf %324, %325 : vector<32x32xf32>
    %327 = vector.broadcast %306 : vector<1x32xf32> to vector<32x32xf32>
    %328 = arith.addf %326, %327 : vector<32x32xf32>
    %329 = arith.truncf %328 : vector<32x32xf32> to vector<32x32xbf16>
    %c1_123 = arith.constant 1 : index
    %c0_124 = arith.constant 0 : index
    %c0_125 = arith.constant 0 : index
    %330 = vector.load %arg13[%c1_123, %c0_124, %c0_125] : memref<2x32x64xbf16, #tpu.memory_space<vmem>>, vector<1x32x64xbf16>
    %331 = vector.shape_cast %330 : vector<1x32x64xbf16> to vector<32x64xbf16>
    %cst_126 = arith.constant dense<0.000000e+00> : vector<32x64xf32>
    %332 = tpu.matmul %329, %331, %cst_126 {dimension_numbers = #tpu.dot_dimension_numbers<[1], [0], [0], [1], [0, 0, 1, 1], [], []>} : vector<32x32xbf16>, vector<32x64xbf16>, vector<32x64xf32> -> vector<32x64xf32>
    %c1_127 = arith.constant 1 : index
    %c0_128 = arith.constant 0 : index
    %c0_129 = arith.constant 0 : index
    %333 = vector.load %arg14[%c1_127, %c0_128, %c0_129] : memref<2x1x64xf32, #tpu.memory_space<vmem>>, vector<1x1x64xf32>
    %334 = vector.shape_cast %333 : vector<1x1x64xf32> to vector<1x64xf32>
    %335 = vector.broadcast %334 : vector<1x64xf32> to vector<32x64xf32>
    %336 = arith.addf %332, %335 : vector<32x64xf32>
    %cst_130 = arith.constant 0.000000e+00 : f32
    %337 = vector.broadcast %cst_130 : f32 to vector<32x64xf32>
    %338 = arith.maximumf %336, %337 : vector<32x64xf32>
    %339 = arith.truncf %338 : vector<32x64xf32> to vector<32x64xbf16>
    %c1_131 = arith.constant 1 : index
    %c0_132 = arith.constant 0 : index
    %c0_133 = arith.constant 0 : index
    %340 = vector.load %arg15[%c1_131, %c0_132, %c0_133] : memref<2x64x32xbf16, #tpu.memory_space<vmem>>, vector<1x64x32xbf16>
    %341 = vector.shape_cast %340 : vector<1x64x32xbf16> to vector<64x32xbf16>
    %cst_134 = arith.constant dense<0.000000e+00> : vector<32x32xf32>
    %342 = tpu.matmul %339, %341, %cst_134 {dimension_numbers = #tpu.dot_dimension_numbers<[1], [0], [0], [1], [0, 0, 1, 1], [], []>} : vector<32x64xbf16>, vector<64x32xbf16>, vector<32x32xf32> -> vector<32x32xf32>
    %c1_135 = arith.constant 1 : index
    %c0_136 = arith.constant 0 : index
    %c0_137 = arith.constant 0 : index
    %343 = vector.load %arg16[%c1_135, %c0_136, %c0_137] : memref<2x1x32xf32, #tpu.memory_space<vmem>>, vector<1x1x32xf32>
    %344 = vector.shape_cast %343 : vector<1x1x32xf32> to vector<1x32xf32>
    %345 = vector.broadcast %344 : vector<1x32xf32> to vector<32x32xf32>
    %346 = arith.addf %342, %345 : vector<32x32xf32>
    %347 = arith.addf %328, %346 : vector<32x32xf32>
    %c1_138 = arith.constant 1 : index
    %c0_139 = arith.constant 0 : index
    %c0_140 = arith.constant 0 : index
    %348 = vector.load %arg11[%c1_138, %c0_139, %c0_140] : memref<2x1x32xf32, #tpu.memory_space<vmem>>, vector<1x1x32xf32>
    %349 = vector.shape_cast %348 : vector<1x1x32xf32> to vector<1x32xf32>
    %c1_141 = arith.constant 1 : index
    %c0_142 = arith.constant 0 : index
    %c0_143 = arith.constant 0 : index
    %350 = vector.load %arg12[%c1_141, %c0_142, %c0_143] : memref<2x1x32xf32, #tpu.memory_space<vmem>>, vector<1x1x32xf32>
    %351 = vector.shape_cast %350 : vector<1x1x32xf32> to vector<1x32xf32>
    %cst_144 = arith.constant dense<0.000000e+00> : vector<32xf32>
    %352 = vector.multi_reduction <add>, %347, %cst_144 [1] : vector<32x32xf32> to vector<32xf32>
    %353 = vector.shape_cast %352 : vector<32xf32> to vector<32x1xf32>
    %cst_145 = arith.constant 3.200000e+01 : f32
    %354 = vector.broadcast %cst_145 : f32 to vector<32x1xf32>
    %355 = arith.divf %353, %354 : vector<32x1xf32>
    %356 = vector.broadcast %355 : vector<32x1xf32> to vector<32x32xf32>
    %357 = arith.subf %347, %356 : vector<32x32xf32>
    %358 = arith.mulf %357, %357 : vector<32x32xf32>
    %cst_146 = arith.constant dense<0.000000e+00> : vector<32xf32>
    %359 = vector.multi_reduction <add>, %358, %cst_146 [1] : vector<32x32xf32> to vector<32xf32>
    %360 = vector.shape_cast %359 : vector<32xf32> to vector<32x1xf32>
    %cst_147 = arith.constant 3.200000e+01 : f32
    %361 = vector.broadcast %cst_147 : f32 to vector<32x1xf32>
    %362 = arith.divf %360, %361 : vector<32x1xf32>
    %363 = vector.broadcast %355 : vector<32x1xf32> to vector<32x32xf32>
    %364 = arith.subf %347, %363 : vector<32x32xf32>
    %cst_148 = arith.constant 9.99999974E-6 : f32
    %365 = vector.broadcast %cst_148 : f32 to vector<32x1xf32>
    %366 = arith.addf %362, %365 : vector<32x1xf32>
    %367 = math.rsqrt %366 : vector<32x1xf32>
    %368 = vector.broadcast %367 : vector<32x1xf32> to vector<32x32xf32>
    %369 = arith.mulf %364, %368 : vector<32x32xf32>
    %370 = vector.broadcast %349 : vector<1x32xf32> to vector<32x32xf32>
    %371 = arith.mulf %369, %370 : vector<32x32xf32>
    %372 = vector.broadcast %351 : vector<1x32xf32> to vector<32x32xf32>
    %373 = arith.addf %371, %372 : vector<32x32xf32>
    %c0_149 = arith.constant 0 : index
    %c0_150 = arith.constant 0 : index
    %374 = vector.load %arg17[%c0_149, %c0_150] : memref<4x32xbf16, #tpu.memory_space<vmem>>, vector<4x32xbf16>
    %375 = arith.truncf %373 : vector<32x32xf32> to vector<32x32xbf16>
    %cst_151 = arith.constant dense<0.000000e+00> : vector<4x32xf32>
    %376 = tpu.matmul %374, %375, %cst_151 {dimension_numbers = #tpu.dot_dimension_numbers<[1], [1], [0], [0], [0, 0, 1, 0], [], []>} : vector<4x32xbf16>, vector<32x32xbf16>, vector<4x32xf32> -> vector<4x32xf32>
    %c0_152 = arith.constant 0 : index
    %c0_153 = arith.constant 0 : index
    %377 = vector.load %arg18[%c0_152, %c0_153] : memref<4x1xf32, #tpu.memory_space<vmem>>, vector<4x1xf32>
    %378 = vector.broadcast %377 : vector<4x1xf32> to vector<4x32xf32>
    %379 = arith.addf %376, %378 : vector<4x32xf32>
    %c0_154 = arith.constant 0 : index
    %c0_155 = arith.constant 0 : index
    %c0_156 = arith.constant 0 : index
    %380 = vector.load %arg19[%c0_154, %c0_155, %c0_156] : memref<1x4x32xf32, #tpu.memory_space<vmem>>, vector<1x4x32xf32>
    %381 = vector.shape_cast %380 : vector<1x4x32xf32> to vector<4x32xf32>
    %382 = vector.shape_cast %379 : vector<4x32xf32> to vector<1x4x32xf32>
    tpu.vector_store %arg19[%c0_154, %c0_155, %c0_156], %382 {strides = array<i32>} : memref<1x4x32xf32, #tpu.memory_space<vmem>>, vector<1x4x32xf32>,
    return
  }
  func.func @transform_0(%arg0: i32) -> (i32, i32, i32) {
    %c0_i32 = arith.constant 0 : i32
    %c0_i32_0 = arith.constant 0 : i32
    %c0_i32_1 = arith.constant 0 : i32
    return %arg0, %c0_i32, %c0_i32_0 : i32, i32, i32
  }
  func.func @transform_1(%arg0: i32) -> (i32, i32) {
    %c0_i32 = arith.constant 0 : i32
    %c0_i32_0 = arith.constant 0 : i32
    %c0_i32_1 = arith.constant 0 : i32
    return %c0_i32, %c0_i32_0 : i32, i32
  }
  func.func @transform_2(%arg0: i32) -> (i32, i32) {
    %c0_i32 = arith.constant 0 : i32
    %c0_i32_0 = arith.constant 0 : i32
    %c0_i32_1 = arith.constant 0 : i32
    return %c0_i32, %c0_i32_0 : i32, i32
  }
  func.func @transform_3(%arg0: i32) -> (i32, i32) {
    %c0_i32 = arith.constant 0 : i32
    %c0_i32_0 = arith.constant 0 : i32
    %c0_i32_1 = arith.constant 0 : i32
    return %c0_i32, %c0_i32_0 : i32, i32
  }
  func.func @transform_4(%arg0: i32) -> (i32, i32, i32) {
    %c0_i32 = arith.constant 0 : i32
    %c0_i32_0 = arith.constant 0 : i32
    %c0_i32_1 = arith.constant 0 : i32
    %c0_i32_2 = arith.constant 0 : i32
    return %c0_i32, %c0_i32_0, %c0_i32_1 : i32, i32, i32
  }
  func.func @transform_5(%arg0: i32) -> (i32, i32, i32) {
    %c0_i32 = arith.constant 0 : i32
    %c0_i32_0 = arith.constant 0 : i32
    %c0_i32_1 = arith.constant 0 : i32
    %c0_i32_2 = arith.constant 0 : i32
    return %c0_i32, %c0_i32_0, %c0_i32_1 : i32, i32, i32
  }
  func.func @transform_6(%arg0: i32) -> (i32, i32, i32) {
    %c0_i32 = arith.constant 0 : i32
    %c0_i32_0 = arith.constant 0 : i32
    %c0_i32_1 = arith.constant 0 : i32
    %c0_i32_2 = arith.constant 0 : i32
    return %c0_i32, %c0_i32_0, %c0_i32_1 : i32, i32, i32
  }
  func.func @transform_7(%arg0: i32) -> (i32, i32, i32) {
    %c0_i32 = arith.constant 0 : i32
    %c0_i32_0 = arith.constant 0 : i32
    %c0_i32_1 = arith.constant 0 : i32
    %c0_i32_2 = arith.constant 0 : i32
    return %c0_i32, %c0_i32_0, %c0_i32_1 : i32, i32, i32
  }
  func.func @transform_8(%arg0: i32) -> (i32, i32, i32) {
    %c0_i32 = arith.constant 0 : i32
    %c0_i32_0 = arith.constant 0 : i32
    %c0_i32_1 = arith.constant 0 : i32
    %c0_i32_2 = arith.constant 0 : i32
    return %c0_i32, %c0_i32_0, %c0_i32_1 : i32, i32, i32
  }
  func.func @transform_9(%arg0: i32) -> (i32, i32, i32) {
    %c0_i32 = arith.constant 0 : i32
    %c0_i32_0 = arith.constant 0 : i32
    %c0_i32_1 = arith.constant 0 : i32
    %c0_i32_2 = arith.constant 0 : i32
    return %c0_i32, %c0_i32_0, %c0_i32_1 : i32, i32, i32
  }
  func.func @transform_10(%arg0: i32) -> (i32, i32, i32) {
    %c0_i32 = arith.constant 0 : i32
    %c0_i32_0 = arith.constant 0 : i32
    %c0_i32_1 = arith.constant 0 : i32
    %c0_i32_2 = arith.constant 0 : i32
    return %c0_i32, %c0_i32_0, %c0_i32_1 : i32, i32, i32
  }
  func.func @transform_11(%arg0: i32) -> (i32, i32, i32) {
    %c0_i32 = arith.constant 0 : i32
    %c0_i32_0 = arith.constant 0 : i32
    %c0_i32_1 = arith.constant 0 : i32
    %c0_i32_2 = arith.constant 0 : i32
    return %c0_i32, %c0_i32_0, %c0_i32_1 : i32, i32, i32
  }
  func.func @transform_12(%arg0: i32) -> (i32, i32, i32) {
    %c0_i32 = arith.constant 0 : i32
    %c0_i32_0 = arith.constant 0 : i32
    %c0_i32_1 = arith.constant 0 : i32
    %c0_i32_2 = arith.constant 0 : i32
    return %c0_i32, %c0_i32_0, %c0_i32_1 : i32, i32, i32
  }
  func.func @transform_13(%arg0: i32) -> (i32, i32, i32) {
    %c0_i32 = arith.constant 0 : i32
    %c0_i32_0 = arith.constant 0 : i32
    %c0_i32_1 = arith.constant 0 : i32
    %c0_i32_2 = arith.constant 0 : i32
    return %c0_i32, %c0_i32_0, %c0_i32_1 : i32, i32, i32
  }
  func.func @transform_14(%arg0: i32) -> (i32, i32, i32) {
    %c0_i32 = arith.constant 0 : i32
    %c0_i32_0 = arith.constant 0 : i32
    %c0_i32_1 = arith.constant 0 : i32
    %c0_i32_2 = arith.constant 0 : i32
    return %c0_i32, %c0_i32_0, %c0_i32_1 : i32, i32, i32
  }
  func.func @transform_15(%arg0: i32) -> (i32, i32, i32) {
    %c0_i32 = arith.constant 0 : i32
    %c0_i32_0 = arith.constant 0 : i32
    %c0_i32_1 = arith.constant 0 : i32
    %c0_i32_2 = arith.constant 0 : i32
    return %c0_i32, %c0_i32_0, %c0_i32_1 : i32, i32, i32
  }
  func.func @transform_16(%arg0: i32) -> (i32, i32) {
    %c0_i32 = arith.constant 0 : i32
    %c0_i32_0 = arith.constant 0 : i32
    %c0_i32_1 = arith.constant 0 : i32
    return %c0_i32, %c0_i32_0 : i32, i32
  }
  func.func @transform_17(%arg0: i32) -> (i32, i32) {
    %c0_i32 = arith.constant 0 : i32
    %c0_i32_0 = arith.constant 0 : i32
    %c0_i32_1 = arith.constant 0 : i32
    return %c0_i32, %c0_i32_0 : i32, i32
  }
  func.func @transform_18(%arg0: i32) -> (i32, i32, i32) {
    %c0_i32 = arith.constant 0 : i32
    %c0_i32_0 = arith.constant 0 : i32
    %c0_i32_1 = arith.constant 0 : i32
    return %arg0, %c0_i32, %c0_i32_0 : i32, i32, i32
  }
}

</mosaic_0001>

<llo_original>
// kernel: tpu_custom_call.1
$region0: #{tpu_custom_call.1}
  #allocation0 [shape = 'u32[]', space=smem, size = 0x4, offset = 0x4, fixed_abs, tag = 'smem constant byte address 0x4 - core index']
  #allocation1 [shape = 'u32[144,128]{1,0:T(1,128)}', space=vmem, size = 0x12000, scoped, tag = 'internal scratch']
  %s0 = inlined_call_operand.vmem [shape: f32[1,32,4], index: 0, kind: input, shape index: {}]
  %s1 = inlined_call_operand.vmem [shape: f32[32,32], index: 1, kind: input, shape index: {}]
  %s2 = inlined_call_operand.vmem [shape: f32[32,32], index: 2, kind: input, shape index: {}]
  %s3 = inlined_call_operand.vmem [shape: bf16[4,32], index: 3, kind: input, shape index: {}]
  %s4 = inlined_call_operand.vmem [shape: bf16[2,32,96], index: 4, kind: input, shape index: {}]
  %s5 = inlined_call_operand.hbm [shape: f32[2,1,96], index: 5, kind: input, shape index: {}]
  %s6 = inlined_call_operand.hbm [shape: bf16[2,32,32], index: 6, kind: input, shape index: {}]
  %s7 = inlined_call_operand.hbm [shape: f32[2,1,32], index: 7, kind: input, shape index: {}]
  %s8 = inlined_call_operand.vmem [shape: f32[2,1,32], index: 8, kind: input, shape index: {}]
  %s9 = inlined_call_operand.vmem [shape: f32[2,1,32], index: 9, kind: input, shape index: {}]
  %s10 = inlined_call_operand.vmem [shape: f32[2,1,32], index: 10, kind: input, shape index: {}]
  %s11 = inlined_call_operand.vmem [shape: f32[2,1,32], index: 11, kind: input, shape index: {}]
  %s12 = inlined_call_operand.vmem [shape: bf16[2,32,64], index: 12, kind: input, shape index: {}]
  %s13 = inlined_call_operand.vmem [shape: f32[2,1,64], index: 13, kind: input, shape index: {}]
  %s14 = inlined_call_operand.vmem [shape: bf16[2,64,32], index: 14, kind: input, shape index: {}]
  %s15 = inlined_call_operand.vmem [shape: f32[2,1,32], index: 15, kind: input, shape index: {}]
  %s16 = inlined_call_operand.vmem [shape: bf16[4,32], index: 16, kind: input, shape index: {}]
  %s17 = inlined_call_operand.vmem [shape: f32[4,1], index: 17, kind: input, shape index: {}]
  %s18 = inlined_call_operand.hbm [shape: f32[1,4,32], index: 18, kind: output, shape index: {}]
  %s19 = sld [smem:[#allocation0]]
  $region94: #{tpu_custom_call.1} parent=0
    _
  %s21 = ssub.s32 1, %s19
  %s22 = scalar_select 0, %s21, %s19
  $region1: #{tpu_custom_call.1} parent=0
    #allocation2 [shape = 'u8[1024]{0}', space=vmem, size = 0x400, scoped, tag = 'input window, operand 5, single buffered']
    #allocation3 [shape = 's32[1]{0}', space=sflag, size = 0x4, scoped, tag = 'scoped memory for tpu_custom_call.1']
    #allocation4 [shape = 's32[1]{0}', space=sflag, size = 0x4, scoped, tag = 'scoped memory for tpu_custom_call.1']
    #allocation5 [shape = 'u8[16384]{0}', space=vmem, size = 0x4000, scoped, tag = 'input window, operand 6, single buffered']
    #allocation6 [shape = 's32[1]{0}', space=sflag, size = 0x4, scoped, tag = 'scoped memory for tpu_custom_call.1']
    #allocation7 [shape = 'u8[1024]{0}', space=vmem, size = 0x400, scoped, tag = 'input window, operand 7, single buffered']
    #allocation8 [shape = 'u8[2048]{0}', space=vmem, size = 0x800, scoped, tag = 'output window, operand 0, single buffered']
    %23 = vsyncpa [#allocation3], 0
    %24 = vsyncpa [#allocation6], 0
    %25 = vsyncpa [#allocation4], 0
    // Predicated region
    $region2: #{tpu_custom_call.1} parent=1 // pred_check
      _
    $region3: #{tpu_custom_call.1} parent=1 // pred_check_branch
      %27 = sbr.rel (0) target = $region5
    $region4: #{tpu_custom_call.1} parent=1 // pred_region
      _
    $region5: #{tpu_custom_call.1} parent=1 // pred_fallthru
      _
    // Predicated region
    $region6: #{tpu_custom_call.1} parent=1 // pred_check
      _
    $region7: #{tpu_custom_call.1} parent=1 // pred_check_branch
      %29 = sbr.rel (0) target = $region9
    $region8: #{tpu_custom_call.1} parent=1 // pred_region
      _
    $region9: #{tpu_custom_call.1} parent=1 // pred_fallthru
      _
    // Predicated region
    $region10: #{tpu_custom_call.1} parent=1 // pred_check
      _
    $region11: #{tpu_custom_call.1} parent=1 // pred_check_branch
      %31 = sbr.rel (0) target = $region13
    $region12: #{tpu_custom_call.1} parent=1 // pred_region
      _
    $region13: #{tpu_custom_call.1} parent=1 // pred_fallthru
      _
    // Predicated region
    $region14: #{tpu_custom_call.1} parent=1 // pred_check
      _
    $region15: #{tpu_custom_call.1} parent=1 // pred_check_branch
      %33 = sbr.rel (0) target = $region17
    $region16: #{tpu_custom_call.1} parent=1 // pred_region
      _
    $region17: #{tpu_custom_call.1} parent=1 // pred_fallthru
      _
    // Predicated region
    $region18: #{tpu_custom_call.1} parent=1 // pred_check
      _
    $region19: #{tpu_custom_call.1} parent=1 // pred_check_branch
      %35 = sbr.rel (0) target = $region21
    $region20: #{tpu_custom_call.1} parent=1 // pred_region
      _
    $region21: #{tpu_custom_call.1} parent=1 // pred_fallthru
      _
    // Predicated region
    $region22: #{tpu_custom_call.1} parent=1 // pred_check
      _
    $region23: #{tpu_custom_call.1} parent=1 // pred_check_branch
      %37 = sbr.rel (0) target = $region25
    $region24: #{tpu_custom_call.1} parent=1 // pred_region
      %s39 = ssub.s32 32, 32
      %40 = vsyncadd [#allocation3], %s39
      %s41 = sshll.u32 [#allocation2], 4
      %s42 = int_to_ptr.vmem [resolvable:$true] %s41
      %47 = dma.hbm_to_vmem [thread:$0]  %s5, 32, %s42, [#allocation3], 16, 16, 1
    $region25: #{tpu_custom_call.1} parent=1 // pred_fallthru
      _
    // Predicated region
    $region26: #{tpu_custom_call.1} parent=1 // pred_check
      _
    $region27: #{tpu_custom_call.1} parent=1 // pred_check_branch
      %49 = sbr.rel (0) target = $region29
    $region28: #{tpu_custom_call.1} parent=1 // pred_region
      %s51 = ssub.s32 512, 512
      %52 = vsyncadd [#allocation6], %s51
      %s53 = sshll.u32 [#allocation5], 4
      %s54 = int_to_ptr.vmem [resolvable:$true] %s53
      %59 = dma.hbm_to_vmem [thread:$0]  %s6, 512, %s54, [#allocation6], 64, 64, 4
    $region29: #{tpu_custom_call.1} parent=1 // pred_fallthru
      _
    // Predicated region
    $region30: #{tpu_custom_call.1} parent=1 // pred_check
      _
    $region31: #{tpu_custom_call.1} parent=1 // pred_check_branch
      %61 = sbr.rel (0) target = $region33
    $region32: #{tpu_custom_call.1} parent=1 // pred_region
      %s63 = ssub.s32 32, 32
      %64 = vsyncadd [#allocation6], %s63
      %s65 = sshll.u32 [#allocation7], 4
      %s66 = int_to_ptr.vmem [resolvable:$true] %s65
      %71 = dma.hbm_to_vmem [thread:$0]  %s7, 32, %s66, [#allocation6], 16, 16, 1
    $region33: #{tpu_custom_call.1} parent=1 // pred_fallthru
      _
    // Predicated region
    $region34: #{tpu_custom_call.1} parent=1 // pred_check
      _
    $region35: #{tpu_custom_call.1} parent=1 // pred_check_branch
      %73 = sbr.rel (0) target = $region37
    $region36: #{tpu_custom_call.1} parent=1 // pred_region
      _
    $region37: #{tpu_custom_call.1} parent=1 // pred_fallthru
      _
    // Predicated region
    $region38: #{tpu_custom_call.1} parent=1 // pred_check
      _
    $region39: #{tpu_custom_call.1} parent=1 // pred_check_branch
      %75 = sbr.rel (0) target = $region41
    $region40: #{tpu_custom_call.1} parent=1 // pred_region
      _
    $region41: #{tpu_custom_call.1} parent=1 // pred_fallthru
      _
    // Predicated region
    $region42: #{tpu_custom_call.1} parent=1 // pred_check
      _
    $region43: #{tpu_custom_call.1} parent=1 // pred_check_branch
      %77 = sbr.rel (0) target = $region45
    $region44: #{tpu_custom_call.1} parent=1 // pred_region
      _
    $region45: #{tpu_custom_call.1} parent=1 // pred_fallthru
      _
    // Predicated region
    $region46: #{tpu_custom_call.1} parent=1 // pred_check
      _
    $region47: #{tpu_custom_call.1} parent=1 // pred_check_branch
      %79 = sbr.rel (0) target = $region49
    $region48: #{tpu_custom_call.1} parent=1 // pred_region
      _
    $region49: #{tpu_custom_call.1} parent=1 // pred_fallthru
      _
    // Predicated region
    $region50: #{tpu_custom_call.1} parent=1 // pred_check
      _
    $region51: #{tpu_custom_call.1} parent=1 // pred_check_branch
      %81 = sbr.rel (0) target = $region53
    $region52: #{tpu_custom_call.1} parent=1 // pred_region
      _
    $region53: #{tpu_custom_call.1} parent=1 // pred_fallthru
      _
    // Predicated region
    $region54: #{tpu_custom_call.1} parent=1 // pred_check
      _
    $region55: #{tpu_custom_call.1} parent=1 // pred_check_branch
      %83 = sbr.rel (0) target = $region57
    $region56: #{tpu_custom_call.1} parent=1 // pred_region
      _
    $region57: #{tpu_custom_call.1} parent=1 // pred_fallthru
      _
    // Predicated region
    $region58: #{tpu_custom_call.1} parent=1 // pred_check
      _
    $region59: #{tpu_custom_call.1} parent=1 // pred_check_branch
      %85 = sbr.rel (0) target = $region61
    $region60: #{tpu_custom_call.1} parent=1 // pred_region
      _
    $region61: #{tpu_custom_call.1} parent=1 // pred_fallthru
      _
    // Predicated region
    $region62: #{tpu_custom_call.1} parent=1 // pred_check
      _
    $region63: #{tpu_custom_call.1} parent=1 // pred_check_branch
      %87 = sbr.rel (0) target = $region65
    $region64: #{tpu_custom_call.1} parent=1 // pred_region
      _
    $region65: #{tpu_custom_call.1} parent=1 // pred_fallthru
      _
    // Predicated region
    $region66: #{tpu_custom_call.1} parent=1 // pred_check
      _
    $region67: #{tpu_custom_call.1} parent=1 // pred_check_branch
      %89 = sbr.rel (0) target = $region69
    $region68: #{tpu_custom_call.1} parent=1 // pred_region
      _
    $region69: #{tpu_custom_call.1} parent=1 // pred_fallthru
      _
    // Predicated region
    $region70: #{tpu_custom_call.1} parent=1 // pred_check
      _
    $region71: #{tpu_custom_call.1} parent=1 // pred_check_branch
      %91 = sbr.rel (0) target = $region73
    $region72: #{tpu_custom_call.1} parent=1 // pred_region
      _
    $region73: #{tpu_custom_call.1} parent=1 // pred_fallthru
      _
    // Predicated region
    $region74: #{tpu_custom_call.1} parent=1 // pred_check
      _
    $region75: #{tpu_custom_call.1} parent=1 // pred_check_branch
      %93 = sbr.rel (0) target = $region77
    $region76: #{tpu_custom_call.1} parent=1 // pred_region
      %94 = dma.done [#allocation3], 32
    $region77: #{tpu_custom_call.1} parent=1 // pred_fallthru
      _
    // Predicated region
    $region78: #{tpu_custom_call.1} parent=1 // pred_check
      _
    $region79: #{tpu_custom_call.1} parent=1 // pred_check_branch
      %96 = sbr.rel (0) target = $region81
    $region80: #{tpu_custom_call.1} parent=1 // pred_region
      %97 = dma.done [#allocation6], 512
    $region81: #{tpu_custom_call.1} parent=1 // pred_fallthru
      _
    // Predicated region
    $region82: #{tpu_custom_call.1} parent=1 // pred_check
      _
    $region83: #{tpu_custom_call.1} parent=1 // pred_check_branch
      %99 = sbr.rel (0) target = $region85
    $region84: #{tpu_custom_call.1} parent=1 // pred_region
      %100 = dma.done [#allocation6], 32
    $region85: #{tpu_custom_call.1} parent=1 // pred_fallthru
      _
    %v102 = vld [vmem:[%s0] sm:$0xff]
    %v103 = vld [vmem:[%s0 + $0x8] sm:$0xff]
    %v104 = vld [vmem:[%s0 + $0x10] sm:$0xff]
    %v105 = vld [vmem:[%s0 + $0x18] sm:$0xff]
    %v106 = vpack.c.bf16 %v103, %v102
    %v107 = vpack.c.bf16 %v105, %v104
    %v108 = vld [vmem:[%s3] sm:$0x3]
    %v109 = vld [vmem:[%s1] sm:$0xff]
    %v110 = vld [vmem:[%s1 + $0x8] sm:$0xff]
    %v111 = vld [vmem:[%s1 + $0x10] sm:$0xff]
    %v112 = vld [vmem:[%s1 + $0x18] sm:$0xff]
    %vm113 = vcmask 31744
    %v115 = vsel %vm113, %v106, 0
    %v118 = vsel %vm113, %v107, 0
    %vm120 = vcmask 1041408
    %v122 = vsel %vm120, %v108, 0
    %124 = vmatprep.subr.bf16.mxu0 0
    %125 = vmatpush1.bf16.msra.mxu0 %v122
    %126 = vmatprep.subr.bf16.mxu0 0
    %127 = vmatpush1.bf16.msra.mxu0 0
    %128 = vmatprep.subr.bf16.mxu0 0
    %129 = vmatpush1.bf16.msra.mxu0 0
    %130 = vmatprep.subr.bf16.mxu0 0
    %131 = vmatpush1.bf16.msra.mxu0 0
    %132 = vmatprep.subr.bf16.mxu0 0
    %133 = vmatpush1.bf16.msra.mxu0 0
    %134 = vmatprep.subr.bf16.mxu0 0
    %135 = vmatpush1.bf16.msra.mxu0 0
    %136 = vmatprep.subr.bf16.mxu0 0
    %137 = vmatpush1.bf16.msra.mxu0 0
    %138 = vmatprep.subr.bf16.mxu0 0
    %139 = vmatpush1.bf16.msra.mxu0 0
    %140 = vmatprep.subr.bf16.mxu0 0
    %141 = vmatpush1.bf16.msra.mxu0 0
    %142 = vmatprep.subr.bf16.mxu0 0
    %143 = vmatpush1.bf16.msra.mxu0 0
    %144 = vmatprep.subr.bf16.mxu0 0
    %145 = vmatpush1.bf16.msra.mxu0 0
    %146 = vmatprep.subr.bf16.mxu0 0
    %147 = vmatpush1.bf16.msra.mxu0 0
    %148 = vmatprep.subr.bf16.mxu0 0
    %149 = vmatpush1.bf16.msra.mxu0 0
    %150 = vmatprep.subr.bf16.mxu0 0
    %151 = vmatpush1.bf16.msra.mxu0 0
    %152 = vmatprep.subr.bf16.mxu0 0
    %153 = vmatpush1.bf16.msra.mxu0 0
    %154 = vmatprep.subr.bf16.mxu0 0
    %155 = vmatpush1.bf16.msra.mxu0 0
    %156 = vmatprep.mubr.bf16.mxu0 0
    %157 = vmatmul.mubr.bf16.gmra.mrb[0].mxu0 %v115
    %v158 = vpop.f32.mrb[0].mxu0
    %v159 = vadd.f32 %v109, %v158
    %v160 = vpop.f32.mrb[0].mxu0
    %v161 = vpop.f32.mrb[0].mxu0
    %v162 = vadd.f32 %v110, %v161
    %v163 = vpop.f32.mrb[0].mxu0
    %164 = vmatprep.mubr.bf16.mxu0 0
    %165 = vmatmul.mubr.bf16.gmra.mrb[0].mxu0 %v118
    %v166 = vpop.f32.mrb[0].mxu0
    %v167 = vadd.f32 %v111, %v166
    %v168 = vpop.f32.mrb[0].mxu0
    %v169 = vpop.f32.mrb[0].mxu0
    %v170 = vadd.f32 %v112, %v169
    %v171 = vpop.f32.mrb[0].mxu0
    %172 = vdwg.mxu0
    %v173 = vld [vmem:[%s2] sm:$0xff]
    %v174 = vld [vmem:[%s2 + $0x8] sm:$0xff]
    %v175 = vld [vmem:[%s2 + $0x10] sm:$0xff]
    %v176 = vld [vmem:[%s2 + $0x18] sm:$0xff]
    %v177 = vpack.c.bf16 %v162, %v159
    %v178 = vpack.c.bf16 %v170, %v167
    %v179 = vld [vmem:[%s4] sm:$0xf]
    %v180 = vld [vmem:[%s4 + $0x4] sm:$0xf]
    %v181 = vld [vmem:[%s4 + $0x8] sm:$0xf]
    %v182 = vld [vmem:[%s4 + $0xc] sm:$0xf]
    %v183 = vld [vmem:[#allocation2] sm:$0x1]
    %v185 = vlaneseq
    %v186 = vshrl.u32 %v185, 7
    %v187 = vsub.s32 0, %v186
    %v188 = vrot.slane %v183, %v187
    %v194 = vunpack.c.l.b16 %v179
    %v195 = vunpack.c.l.b16 %v180
    %v196 = vunpack.c.l.b16 %v181
    %v197 = vunpack.c.l.b16 %v182
    %v198 = vpack.c.b16 %v195, %v194
    %v199 = vpack.c.b16 %v197, %v196
    %vm202 = vcmask 261120
    %v204 = vsel %vm202, %v177, 0
    %v207 = vsel %vm202, %v178, 0
    %209 = vmatprep.subr.bf16.mxu0 0
    %210 = vmatpush1.bf16.msra.mxu0 %v198
    %211 = vmatprep.subr.bf16.mxu0 0
    %212 = vmatpush1.bf16.msra.mxu0 %v199
    %213 = vmatprep.subr.bf16.mxu0 0
    %214 = vmatpush1.bf16.msra.mxu0 0
    %215 = vmatprep.subr.bf16.mxu0 0
    %216 = vmatpush1.bf16.msra.mxu0 0
    %217 = vmatprep.subr.bf16.mxu0 0
    %218 = vmatpush1.bf16.msra.mxu0 0
    %219 = vmatprep.subr.bf16.mxu0 0
    %220 = vmatpush1.bf16.msra.mxu0 0
    %221 = vmatprep.subr.bf16.mxu0 0
    %222 = vmatpush1.bf16.msra.mxu0 0
    %223 = vmatprep.subr.bf16.mxu0 0
    %224 = vmatpush1.bf16.msra.mxu0 0
    %225 = vmatprep.subr.bf16.mxu0 0
    %226 = vmatpush1.bf16.msra.mxu0 0
    %227 = vmatprep.subr.bf16.mxu0 0
    %228 = vmatpush1.bf16.msra.mxu0 0
    %229 = vmatprep.subr.bf16.mxu0 0
    %230 = vmatpush1.bf16.msra.mxu0 0
    %231 = vmatprep.subr.bf16.mxu0 0
    %232 = vmatpush1.bf16.msra.mxu0 0
    %233 = vmatprep.subr.bf16.mxu0 0
    %234 = vmatpush1.bf16.msra.mxu0 0
    %235 = vmatprep.subr.bf16.mxu0 0
    %236 = vmatpush1.bf16.msra.mxu0 0
    %237 = vmatprep.subr.bf16.mxu0 0
    %238 = vmatpush1.bf16.msra.mxu0 0
    %239 = vmatprep.subr.bf16.mxu0 0
    %240 = vmatpush1.bf16.msra.mxu0 0
    %241 = vmatprep.mubr.bf16.mxu0 0
    %242 = vmatmul.mubr.bf16.gmra.mrb[0].mxu0 %v204
    %v243 = vpop.f32.mrb[0].mxu0
    %v244 = vadd.f32 %v188, %v243
    %v245 = vpop.f32.mrb[0].mxu0
    %v246 = vpop.f32.mrb[0].mxu0
    %v247 = vadd.f32 %v188, %v246
    %v248 = vpop.f32.mrb[0].mxu0
    %249 = vmatprep.mubr.bf16.mxu0 0
    %250 = vmatmul.mubr.bf16.gmra.mrb[0].mxu0 %v207
    %v251 = vpop.f32.mrb[0].mxu0
    %v252 = vadd.f32 %v188, %v251
    %v253 = vpop.f32.mrb[0].mxu0
    %v254 = vpop.f32.mrb[0].mxu0
    %v255 = vadd.f32 %v188, %v254
    %v256 = vpop.f32.mrb[0].mxu0
    %257 = vdwg.mxu0
    %v258 = vld [vmem:[#allocation5] sm:$0xf]
    %v259 = vld [vmem:[#allocation5 + $0x4] sm:$0xf]
    %v260 = vld [vmem:[#allocation5 + $0x8] sm:$0xf]
    %v261 = vld [vmem:[#allocation5 + $0xc] sm:$0xf]
    %v262 = vpack.c.bf16 %v247, %v244
    %v263 = vpack.c.bf16 %v255, %v252
    %266 = vrot.lane.b32.xlu0 %v262, 96
    %v267 = vpop.permute.xlu0 %266
    %268 = vrot.lane.b32.xlu0 %v263, 96
    %v269 = vpop.permute.xlu0 %268
    %vm270 = vcmask 64512
    %v272 = vsel %vm270, %v262, 0
    %v275 = vsel %vm270, %v263, 0
    %v278 = vsel %vm270, %v267, 0
    %v281 = vsel %vm270, %v269, 0
    %283 = vmatprep.subr.bf16.mxu0 0
    %284 = vmatpush1.bf16.xpose.msra.mxu0 %v278
    %285 = vmatprep.subr.bf16.mxu0 0
    %286 = vmatpush1.bf16.xpose.msra.mxu0 %v281
    %287 = vmatprep.subr.bf16.mxu0 0
    %288 = vmatpush1.bf16.xpose.msra.mxu0 0
    %289 = vmatprep.subr.bf16.mxu0 0
    %290 = vmatpush1.bf16.xpose.msra.mxu0 0
    %291 = vmatprep.subr.bf16.mxu0 0
    %292 = vmatpush1.bf16.xpose.msra.mxu0 0
    %293 = vmatprep.subr.bf16.mxu0 0
    %294 = vmatpush1.bf16.xpose.msra.mxu0 0
    %295 = vmatprep.subr.bf16.mxu0 0
    %296 = vmatpush1.bf16.xpose.msra.mxu0 0
    %297 = vmatprep.subr.bf16.mxu0 0
    %298 = vmatpush1.bf16.xpose.msra.mxu0 0
    %299 = vmatprep.subr.bf16.mxu0 0
    %300 = vmatpush1.bf16.xpose.msra.mxu0 0
    %301 = vmatprep.subr.bf16.mxu0 0
    %302 = vmatpush1.bf16.xpose.msra.mxu0 0
    %303 = vmatprep.subr.bf16.mxu0 0
    %304 = vmatpush1.bf16.xpose.msra.mxu0 0
    %305 = vmatprep.subr.bf16.mxu0 0
    %306 = vmatpush1.bf16.xpose.msra.mxu0 0
    %307 = vmatprep.subr.bf16.mxu0 0
    %308 = vmatpush1.bf16.xpose.msra.mxu0 0
    %309 = vmatprep.subr.bf16.mxu0 0
    %310 = vmatpush1.bf16.xpose.msra.mxu0 0
    %311 = vmatprep.subr.bf16.mxu0 0
    %312 = vmatpush1.bf16.xpose.msra.mxu0 0
    %313 = vmatprep.subr.bf16.mxu0 0
    %314 = vmatpush1.bf16.xpose.msra.mxu0 0
    %315 = vmatprep.mubr.bf16.mxu0 0
    %316 = vmatmul.mubr.bf16.gmra.mrb[0].mxu0 %v272
    %v317 = vpop.f32.mrb[0].mxu0
    %v318 = vadd.f32 %v173, %v317
    %v319 = vpop.f32.mrb[0].mxu0
    %v320 = vpop.f32.mrb[0].mxu0
    %v321 = vadd.f32 %v174, %v320
    %v322 = vpop.f32.mrb[0].mxu0
    %323 = vmatprep.mubr.bf16.mxu0 0
    %324 = vmatmul.mubr.bf16.gmra.mrb[0].mxu0 %v275
    %v325 = vpop.f32.mrb[0].mxu0
    %v326 = vadd.f32 %v175, %v325
    %v327 = vpop.f32.mrb[0].mxu0
    %v328 = vpop.f32.mrb[0].mxu0
    %v329 = vadd.f32 %v176, %v328
    %v330 = vpop.f32.mrb[0].mxu0
    %331 = vdwg.mxu0
    %v332 = vsel %vm202, %v318, -inf
    %333 = vmax.xlane.f32.xlu0 %v332
    %v334 = vpop.xlane.xlu0 %333
    %v335 = vsel %vm202, %v321, -inf
    %336 = vmax.xlane.f32.xlu0 %v335
    %v337 = vpop.xlane.xlu0 %336
    %v338 = vsel %vm202, %v326, -inf
    %339 = vmax.xlane.f32.xlu0 %v338
    %v340 = vpop.xlane.xlu0 %339
    %v341 = vsel %vm202, %v329, -inf
    %342 = vmax.xlane.f32.xlu0 %v341
    %v343 = vpop.xlane.xlu0 %342
    %v344 = vsub.f32 %v318, %v334
    %v345 = vsub.f32 %v321, %v337
    %v346 = vsub.f32 %v326, %v340
    %v347 = vsub.f32 %v329, %v343
    %v348 = vmul.f32 %v344, 1.442695
    %v349 = vpow.pop %v348
    %v350 = vmul.f32 %v345, 1.442695
    %v351 = vpow.pop %v350
    %v352 = vmul.f32 %v346, 1.442695
    %v353 = vpow.pop %v352
    %v354 = vmul.f32 %v347, 1.442695
    %v355 = vpow.pop %v354
    %v356 = vsel %vm202, %v349, 0.0
    %357 = vadd.xlane.f32.xlu0 %v356
    %v358 = vpop.xlane.xlu0 %357
    %v359 = vsel %vm202, %v351, 0.0
    %360 = vadd.xlane.f32.xlu0 %v359
    %v361 = vpop.xlane.xlu0 %360
    %v362 = vsel %vm202, %v353, 0.0
    %363 = vadd.xlane.f32.xlu0 %v362
    %v364 = vpop.xlane.xlu0 %363
    %v365 = vsel %vm202, %v355, 0.0
    %366 = vadd.xlane.f32.xlu0 %v365
    %v367 = vpop.xlane.xlu0 %366
    %v368 = vpack.c.bf16 %v351, %v349
    %v369 = vpack.c.bf16 %v355, %v353
    %370 = vrot.lane.b32.xlu0 %v262, 64
    %v371 = vpop.permute.xlu0 %370
    %372 = vrot.lane.b32.xlu0 %v263, 64
    %v373 = vpop.permute.xlu0 %372
    %v377 = vsel %vm202, %v368, 0
    %v380 = vsel %vm202, %v369, 0
    %382 = vmatprep.subr.bf16.mxu0 0
    %383 = vmatpush1.bf16.msra.mxu0 %v371
    %384 = vmatprep.subr.bf16.mxu0 0
    %385 = vmatpush1.bf16.msra.mxu0 %v373
    %386 = vmatprep.subr.bf16.mxu0 0
    %387 = vmatpush1.bf16.msra.mxu0 0
    %388 = vmatprep.subr.bf16.mxu0 0
    %389 = vmatpush1.bf16.msra.mxu0 0
    %390 = vmatprep.subr.bf16.mxu0 0
    %391 = vmatpush1.bf16.msra.mxu0 0
    %392 = vmatprep.subr.bf16.mxu0 0
    %393 = vmatpush1.bf16.msra.mxu0 0
    %394 = vmatprep.subr.bf16.mxu0 0
    %395 = vmatpush1.bf16.msra.mxu0 0
    %396 = vmatprep.subr.bf16.mxu0 0
    %397 = vmatpush1.bf16.msra.mxu0 0
    %398 = vmatprep.subr.bf16.mxu0 0
    %399 = vmatpush1.bf16.msra.mxu0 0
    %400 = vmatprep.subr.bf16.mxu0 0
    %401 = vmatpush1.bf16.msra.mxu0 0
    %402 = vmatprep.subr.bf16.mxu0 0
    %403 = vmatpush1.bf16.msra.mxu0 0
    %404 = vmatprep.subr.bf16.mxu0 0
    %405 = vmatpush1.bf16.msra.mxu0 0
    %406 = vmatprep.subr.bf16.mxu0 0
    %407 = vmatpush1.bf16.msra.mxu0 0
    %408 = vmatprep.subr.bf16.mxu0 0
    %409 = vmatpush1.bf16.msra.mxu0 0
    %410 = vmatprep.subr.bf16.mxu0 0
    %411 = vmatpush1.bf16.msra.mxu0 0
    %412 = vmatprep.subr.bf16.mxu0 0
    %413 = vmatpush1.bf16.msra.mxu0 0
    %414 = vmatprep.mubr.bf16.mxu0 0
    %415 = vmatmul.mubr.bf16.gmra.mrb[0].mxu0 %v377
    %v416 = vpop.f32.mrb[0].mxu0
    %v417 = vadd.f32 0.0, %v416
    %v418 = vpop.f32.mrb[0].mxu0
    %v419 = vpop.f32.mrb[0].mxu0
    %v420 = vadd.f32 0.0, %v419
    %v421 = vpop.f32.mrb[0].mxu0
    %422 = vmatprep.mubr.bf16.mxu0 0
    %423 = vmatmul.mubr.bf16.gmra.mrb[0].mxu0 %v380
    %v424 = vpop.f32.mrb[0].mxu0
    %v425 = vadd.f32 0.0, %v424
    %v426 = vpop.f32.mrb[0].mxu0
    %v427 = vpop.f32.mrb[0].mxu0
    %v428 = vadd.f32 0.0, %v427
    %v429 = vpop.f32.mrb[0].mxu0
    %430 = vdwg.mxu0
    %v431 = vrcp.pop %v358
    %v432 = vrcp.pop %v361
    %v433 = vrcp.pop %v364
    %v434 = vrcp.pop %v367
    %v435 = vmul.f32 %v417, %v431
    %v436 = vmul.f32 %v420, %v432
    %v437 = vmul.f32 %v425, %v433
    %v438 = vmul.f32 %v428, %v434
    %v439 = vpack.c.bf16 %v436, %v435
    %v440 = vpack.c.bf16 %v438, %v437
    %441 = vrot.lane.b32.xlu0 %v262, 120
    %v442 = vpop.permute.xlu0 %441
    %443 = vrot.lane.b32.xlu0 %v263, 120
    %v444 = vpop.permute.xlu0 %443
    %445 = vrot.lane.b32.xlu0 %v262, 88
    %v446 = vpop.permute.xlu0 %445
    %447 = vrot.lane.b32.xlu0 %v263, 88
    %v448 = vpop.permute.xlu0 %447
    %v450 = vsel %vm270, %v442, 0
    %v453 = vsel %vm270, %v444, 0
    %v456 = vsel %vm270, %v446, 0
    %v459 = vsel %vm270, %v448, 0
    %461 = vmatprep.subr.bf16.mxu0 0
    %462 = vmatpush1.bf16.xpose.msra.mxu0 %v456
    %463 = vmatprep.subr.bf16.mxu0 0
    %464 = vmatpush1.bf16.xpose.msra.mxu0 %v459
    %465 = vmatprep.subr.bf16.mxu0 0
    %466 = vmatpush1.bf16.xpose.msra.mxu0 0
    %467 = vmatprep.subr.bf16.mxu0 0
    %468 = vmatpush1.bf16.xpose.msra.mxu0 0
    %469 = vmatprep.subr.bf16.mxu0 0
    %470 = vmatpush1.bf16.xpose.msra.mxu0 0
    %471 = vmatprep.subr.bf16.mxu0 0
    %472 = vmatpush1.bf16.xpose.msra.mxu0 0
    %473 = vmatprep.subr.bf16.mxu0 0
    %474 = vmatpush1.bf16.xpose.msra.mxu0 0
    %475 = vmatprep.subr.bf16.mxu0 0
    %476 = vmatpush1.bf16.xpose.msra.mxu0 0
    %477 = vmatprep.subr.bf16.mxu0 0
    %478 = vmatpush1.bf16.xpose.msra.mxu0 0
    %479 = vmatprep.subr.bf16.mxu0 0
    %480 = vmatpush1.bf16.xpose.msra.mxu0 0
    %481 = vmatprep.subr.bf16.mxu0 0
    %482 = vmatpush1.bf16.xpose.msra.mxu0 0
    %483 = vmatprep.subr.bf16.mxu0 0
    %484 = vmatpush1.bf16.xpose.msra.mxu0 0
    %485 = vmatprep.subr.bf16.mxu0 0
    %486 = vmatpush1.bf16.xpose.msra.mxu0 0
    %487 = vmatprep.subr.bf16.mxu0 0
    %488 = vmatpush1.bf16.xpose.msra.mxu0 0
    %489 = vmatprep.subr.bf16.mxu0 0
    %490 = vmatpush1.bf16.xpose.msra.mxu0 0
    %491 = vmatprep.subr.bf16.mxu0 0
    %492 = vmatpush1.bf16.xpose.msra.mxu0 0
    %493 = vmatprep.mubr.bf16.mxu0 0
    %494 = vmatmul.mubr.bf16.gmra.mrb[0].mxu0 %v450
    %v495 = vpop.f32.mrb[0].mxu0
    %v496 = vadd.f32 %v173, %v495
    %v497 = vpop.f32.mrb[0].mxu0
    %v498 = vpop.f32.mrb[0].mxu0
    %v499 = vadd.f32 %v174, %v498
    %v500 = vpop.f32.mrb[0].mxu0
    %501 = vmatprep.mubr.bf16.mxu0 0
    %502 = vmatmul.mubr.bf16.gmra.mrb[0].mxu0 %v453
    %v503 = vpop.f32.mrb[0].mxu0
    %v504 = vadd.f32 %v175, %v503
    %v505 = vpop.f32.mrb[0].mxu0
    %v506 = vpop.f32.mrb[0].mxu0
    %v507 = vadd.f32 %v176, %v506
    %v508 = vpop.f32.mrb[0].mxu0
    %509 = vdwg.mxu0
    %v510 = vsel %vm202, %v496, -inf
    %511 = vmax.xlane.f32.xlu0 %v510
    %v512 = vpop.xlane.xlu0 %511
    %v513 = vsel %vm202, %v499, -inf
    %514 = vmax.xlane.f32.xlu0 %v513
    %v515 = vpop.xlane.xlu0 %514
    %v516 = vsel %vm202, %v504, -inf
    %517 = vmax.xlane.f32.xlu0 %v516
    %v518 = vpop.xlane.xlu0 %517
    %v519 = vsel %vm202, %v507, -inf
    %520 = vmax.xlane.f32.xlu0 %v519
    %v521 = vpop.xlane.xlu0 %520
    %v522 = vsub.f32 %v496, %v512
    %v523 = vsub.f32 %v499, %v515
    %v524 = vsub.f32 %v504, %v518
    %v525 = vsub.f32 %v507, %v521
    %v526 = vmul.f32 %v522, 1.442695
    %v527 = vpow.pop %v526
    %v528 = vmul.f32 %v523, 1.442695
    %v529 = vpow.pop %v528
    %v530 = vmul.f32 %v524, 1.442695
    %v531 = vpow.pop %v530
    %v532 = vmul.f32 %v525, 1.442695
    %v533 = vpow.pop %v532
    %v534 = vsel %vm202, %v527, 0.0
    %535 = vadd.xlane.f32.xlu0 %v534
    %v536 = vpop.xlane.xlu0 %535
    %v537 = vsel %vm202, %v529, 0.0
    %538 = vadd.xlane.f32.xlu0 %v537
    %v539 = vpop.xlane.xlu0 %538
    %v540 = vsel %vm202, %v531, 0.0
    %541 = vadd.xlane.f32.xlu0 %v540
    %v542 = vpop.xlane.xlu0 %541
    %v543 = vsel %vm202, %v533, 0.0
    %544 = vadd.xlane.f32.xlu0 %v543
    %v545 = vpop.xlane.xlu0 %544
    %v546 = vpack.c.bf16 %v529, %v527
    %v547 = vpack.c.bf16 %v533, %v531
    %548 = vrot.lane.b32.xlu0 %v262, 56
    %v549 = vpop.permute.xlu0 %548
    %550 = vrot.lane.b32.xlu0 %v263, 56
    %v551 = vpop.permute.xlu0 %550
    %v555 = vsel %vm202, %v546, 0
    %v558 = vsel %vm202, %v547, 0
    %560 = vmatprep.subr.bf16.mxu0 0
    %561 = vmatpush1.bf16.msra.mxu0 %v549
    %562 = vmatprep.subr.bf16.mxu0 0
    %563 = vmatpush1.bf16.msra.mxu0 %v551
    %564 = vmatprep.subr.bf16.mxu0 0
    %565 = vmatpush1.bf16.msra.mxu0 0
    %566 = vmatprep.subr.bf16.mxu0 0
    %567 = vmatpush1.bf16.msra.mxu0 0
    %568 = vmatprep.subr.bf16.mxu0 0
    %569 = vmatpush1.bf16.msra.mxu0 0
    %570 = vmatprep.subr.bf16.mxu0 0
    %571 = vmatpush1.bf16.msra.mxu0 0
    %572 = vmatprep.subr.bf16.mxu0 0
    %573 = vmatpush1.bf16.msra.mxu0 0
    %574 = vmatprep.subr.bf16.mxu0 0
    %575 = vmatpush1.bf16.msra.mxu0 0
    %576 = vmatprep.subr.bf16.mxu0 0
    %577 = vmatpush1.bf16.msra.mxu0 0
    %578 = vmatprep.subr.bf16.mxu0 0
    %579 = vmatpush1.bf16.msra.mxu0 0
    %580 = vmatprep.subr.bf16.mxu0 0
    %581 = vmatpush1.bf16.msra.mxu0 0
    %582 = vmatprep.subr.bf16.mxu0 0
    %583 = vmatpush1.bf16.msra.mxu0 0
    %584 = vmatprep.subr.bf16.mxu0 0
    %585 = vmatpush1.bf16.msra.mxu0 0
    %586 = vmatprep.subr.bf16.mxu0 0
    %587 = vmatpush1.bf16.msra.mxu0 0
    %588 = vmatprep.subr.bf16.mxu0 0
    %589 = vmatpush1.bf16.msra.mxu0 0
    %590 = vmatprep.subr.bf16.mxu0 0
    %591 = vmatpush1.bf16.msra.mxu0 0
    %592 = vmatprep.mubr.bf16.mxu0 0
    %593 = vmatmul.mubr.bf16.gmra.mrb[0].mxu0 %v555
    %v594 = vpop.f32.mrb[0].mxu0
    %v595 = vadd.f32 0.0, %v594
    %v596 = vpop.f32.mrb[0].mxu0
    %v597 = vpop.f32.mrb[0].mxu0
    %v598 = vadd.f32 0.0, %v597
    %v599 = vpop.f32.mrb[0].mxu0
    %600 = vmatprep.mubr.bf16.mxu0 0
    %601 = vmatmul.mubr.bf16.gmra.mrb[0].mxu0 %v558
    %v602 = vpop.f32.mrb[0].mxu0
    %v603 = vadd.f32 0.0, %v602
    %v604 = vpop.f32.mrb[0].mxu0
    %v605 = vpop.f32.mrb[0].mxu0
    %v606 = vadd.f32 0.0, %v605
    %v607 = vpop.f32.mrb[0].mxu0
    %608 = vdwg.mxu0
    %v609 = vrcp.pop %v536
    %v610 = vrcp.pop %v539
    %v611 = vrcp.pop %v542
    %v612 = vrcp.pop %v545
    %v613 = vmul.f32 %v595, %v609
    %v614 = vmul.f32 %v598, %v610
    %v615 = vmul.f32 %v603, %v611
    %v616 = vmul.f32 %v606, %v612
    %v617 = vpack.c.bf16 %v614, %v613
    %v618 = vpack.c.bf16 %v616, %v615
    %v620 = vsel %vm270, %v617, 0
    %v623 = vsel %vm270, %v618, 0
    %vm625 = vcmask 1043456
    %v627 = vsel %vm625, %v259, 0
    %629 = vmatprep.subr.bf16.mxu0 0
    %630 = vmatpush1.bf16.msra.mxu0 %v627
    %631 = vmatprep.subr.bf16.mxu0 0
    %632 = vmatpush1.bf16.msra.mxu0 0
    %633 = vmatprep.subr.bf16.mxu0 0
    %634 = vmatpush1.bf16.msra.mxu0 0
    %635 = vmatprep.subr.bf16.mxu0 0
    %636 = vmatpush1.bf16.msra.mxu0 0
    %637 = vmatprep.subr.bf16.mxu0 0
    %638 = vmatpush1.bf16.msra.mxu0 0
    %639 = vmatprep.subr.bf16.mxu0 0
    %640 = vmatpush1.bf16.msra.mxu0 0
    %641 = vmatprep.subr.bf16.mxu0 0
    %642 = vmatpush1.bf16.msra.mxu0 0
    %643 = vmatprep.subr.bf16.mxu0 0
    %644 = vmatpush1.bf16.msra.mxu0 0
    %645 = vmatprep.subr.bf16.mxu0 0
    %646 = vmatpush1.bf16.msra.mxu0 0
    %647 = vmatprep.subr.bf16.mxu0 0
    %648 = vmatpush1.bf16.msra.mxu0 0
    %649 = vmatprep.subr.bf16.mxu0 0
    %650 = vmatpush1.bf16.msra.mxu0 0
    %651 = vmatprep.subr.bf16.mxu0 0
    %652 = vmatpush1.bf16.msra.mxu0 0
    %653 = vmatprep.subr.bf16.mxu0 0
    %654 = vmatpush1.bf16.msra.mxu0 0
    %655 = vmatprep.subr.bf16.mxu0 0
    %656 = vmatpush1.bf16.msra.mxu0 0
    %657 = vmatprep.subr.bf16.mxu0 0
    %658 = vmatpush1.bf16.msra.mxu0 0
    %659 = vmatprep.subr.bf16.mxu0 0
    %660 = vmatpush1.bf16.msra.mxu0 0
    %661 = vmatprep.mubr.bf16.mxu0 0
    %662 = vmatmul.mubr.bf16.gmra.mrb[0].mxu0 %v620
    %v663 = vpop.f32.mrb[0].mxu0
    %v664 = vadd.f32 0.0, %v663
    %v665 = vpop.f32.mrb[0].mxu0
    %v666 = vpop.f32.mrb[0].mxu0
    %v667 = vadd.f32 0.0, %v666
    %v668 = vpop.f32.mrb[0].mxu0
    %669 = vmatprep.mubr.bf16.mxu0 0
    %670 = vmatmul.mubr.bf16.gmra.mrb[0].mxu0 %v623
    %v671 = vpop.f32.mrb[0].mxu0
    %v672 = vadd.f32 0.0, %v671
    %v673 = vpop.f32.mrb[0].mxu0
    %v674 = vpop.f32.mrb[0].mxu0
    %v675 = vadd.f32 0.0, %v674
    %v676 = vpop.f32.mrb[0].mxu0
    %677 = vdwg.mxu0
    %v679 = vsel %vm270, %v439, 0
    %v682 = vsel %vm270, %v440, 0
    %v685 = vsel %vm625, %v258, 0
    %687 = vmatprep.subr.bf16.mxu0 0
    %688 = vmatpush1.bf16.msra.mxu0 %v685
    %689 = vmatprep.subr.bf16.mxu0 0
    %690 = vmatpush1.bf16.msra.mxu0 0
    %691 = vmatprep.subr.bf16.mxu0 0
    %692 = vmatpush1.bf16.msra.mxu0 0
    %693 = vmatprep.subr.bf16.mxu0 0
    %694 = vmatpush1.bf16.msra.mxu0 0
    %695 = vmatprep.subr.bf16.mxu0 0
    %696 = vmatpush1.bf16.msra.mxu0 0
    %697 = vmatprep.subr.bf16.mxu0 0
    %698 = vmatpush1.bf16.msra.mxu0 0
    %699 = vmatprep.subr.bf16.mxu0 0
    %700 = vmatpush1.bf16.msra.mxu0 0
    %701 = vmatprep.subr.bf16.mxu0 0
    %702 = vmatpush1.bf16.msra.mxu0 0
    %703 = vmatprep.subr.bf16.mxu0 0
    %704 = vmatpush1.bf16.msra.mxu0 0
    %705 = vmatprep.subr.bf16.mxu0 0
    %706 = vmatpush1.bf16.msra.mxu0 0
    %707 = vmatprep.subr.bf16.mxu0 0
    %708 = vmatpush1.bf16.msra.mxu0 0
    %709 = vmatprep.subr.bf16.mxu0 0
    %710 = vmatpush1.bf16.msra.mxu0 0
    %711 = vmatprep.subr.bf16.mxu0 0
    %712 = vmatpush1.bf16.msra.mxu0 0
    %713 = vmatprep.subr.bf16.mxu0 0
    %714 = vmatpush1.bf16.msra.mxu0 0
    %715 = vmatprep.subr.bf16.mxu0 0
    %716 = vmatpush1.bf16.msra.mxu0 0
    %717 = vmatprep.subr.bf16.mxu0 0
    %718 = vmatpush1.bf16.msra.mxu0 0
    %719 = vmatprep.mubr.bf16.mxu0 0
    %720 = vmatmul.mubr.bf16.gmra.mrb[0].mxu0 %v679
    %v721 = vpop.f32.mrb[0].mxu0
    %v722 = vadd.f32 %v664, %v721
    %v723 = vpop.f32.mrb[0].mxu0
    %v724 = vpop.f32.mrb[0].mxu0
    %v725 = vadd.f32 %v667, %v724
    %v726 = vpop.f32.mrb[0].mxu0
    %727 = vmatprep.mubr.bf16.mxu0 0
    %728 = vmatmul.mubr.bf16.gmra.mrb[0].mxu0 %v682
    %v729 = vpop.f32.mrb[0].mxu0
    %v730 = vadd.f32 %v672, %v729
    %v731 = vpop.f32.mrb[0].mxu0
    %v732 = vpop.f32.mrb[0].mxu0
    %v733 = vadd.f32 %v675, %v732
    %v734 = vpop.f32.mrb[0].mxu0
    %735 = vdwg.mxu0
    %736 = vrot.lane.b32.xlu0 %v262, 112
    %v737 = vpop.permute.xlu0 %736
    %738 = vrot.lane.b32.xlu0 %v263, 112
    %v739 = vpop.permute.xlu0 %738
    %740 = vrot.lane.b32.xlu0 %v262, 80
    %v741 = vpop.permute.xlu0 %740
    %742 = vrot.lane.b32.xlu0 %v263, 80
    %v743 = vpop.permute.xlu0 %742
    %v745 = vsel %vm270, %v737, 0
    %v748 = vsel %vm270, %v739, 0
    %v751 = vsel %vm270, %v741, 0
    %v754 = vsel %vm270, %v743, 0
    %756 = vmatprep.subr.bf16.mxu0 0
    %757 = vmatpush1.bf16.xpose.msra.mxu0 %v751
    %758 = vmatprep.subr.bf16.mxu0 0
    %759 = vmatpush1.bf16.xpose.msra.mxu0 %v754
    %760 = vmatprep.subr.bf16.mxu0 0
    %761 = vmatpush1.bf16.xpose.msra.mxu0 0
    %762 = vmatprep.subr.bf16.mxu0 0
    %763 = vmatpush1.bf16.xpose.msra.mxu0 0
    %764 = vmatprep.subr.bf16.mxu0 0
    %765 = vmatpush1.bf16.xpose.msra.mxu0 0
    %766 = vmatprep.subr.bf16.mxu0 0
    %767 = vmatpush1.bf16.xpose.msra.mxu0 0
    %768 = vmatprep.subr.bf16.mxu0 0
    %769 = vmatpush1.bf16.xpose.msra.mxu0 0
    %770 = vmatprep.subr.bf16.mxu0 0
    %771 = vmatpush1.bf16.xpose.msra.mxu0 0
    %772 = vmatprep.subr.bf16.mxu0 0
    %773 = vmatpush1.bf16.xpose.msra.mxu0 0
    %774 = vmatprep.subr.bf16.mxu0 0
    %775 = vmatpush1.bf16.xpose.msra.mxu0 0
    %776 = vmatprep.subr.bf16.mxu0 0
    %777 = vmatpush1.bf16.xpose.msra.mxu0 0
    %778 = vmatprep.subr.bf16.mxu0 0
    %779 = vmatpush1.bf16.xpose.msra.mxu0 0
    %780 = vmatprep.subr.bf16.mxu0 0
    %781 = vmatpush1.bf16.xpose.msra.mxu0 0
    %782 = vmatprep.subr.bf16.mxu0 0
    %783 = vmatpush1.bf16.xpose.msra.mxu0 0
    %784 = vmatprep.subr.bf16.mxu0 0
    %785 = vmatpush1.bf16.xpose.msra.mxu0 0
    %786 = vmatprep.subr.bf16.mxu0 0
    %787 = vmatpush1.bf16.xpose.msra.mxu0 0
    %788 = vmatprep.mubr.bf16.mxu0 0
    %789 = vmatmul.mubr.bf16.gmra.mrb[0].mxu0 %v745
    %v790 = vpop.f32.mrb[0].mxu0
    %v791 = vadd.f32 %v173, %v790
    %v792 = vpop.f32.mrb[0].mxu0
    %v793 = vpop.f32.mrb[0].mxu0
    %v794 = vadd.f32 %v174, %v793
    %v795 = vpop.f32.mrb[0].mxu0
    %796 = vmatprep.mubr.bf16.mxu0 0
    %797 = vmatmul.mubr.bf16.gmra.mrb[0].mxu0 %v748
    %v798 = vpop.f32.mrb[0].mxu0
    %v799 = vadd.f32 %v175, %v798
    %v800 = vpop.f32.mrb[0].mxu0
    %v801 = vpop.f32.mrb[0].mxu0
    %v802 = vadd.f32 %v176, %v801
    %v803 = vpop.f32.mrb[0].mxu0
    %804 = vdwg.mxu0
    %v805 = vsel %vm202, %v791, -inf
    %806 = vmax.xlane.f32.xlu0 %v805
    %v807 = vpop.xlane.xlu0 %806
    %v808 = vsel %vm202, %v794, -inf
    %809 = vmax.xlane.f32.xlu0 %v808
    %v810 = vpop.xlane.xlu0 %809
    %v811 = vsel %vm202, %v799, -inf
    %812 = vmax.xlane.f32.xlu0 %v811
    %v813 = vpop.xlane.xlu0 %812
    %v814 = vsel %vm202, %v802, -inf
    %815 = vmax.xlane.f32.xlu0 %v814
    %v816 = vpop.xlane.xlu0 %815
    %v817 = vsub.f32 %v791, %v807
    %v818 = vsub.f32 %v794, %v810
    %v819 = vsub.f32 %v799, %v813
    %v820 = vsub.f32 %v802, %v816
    %v821 = vmul.f32 %v817, 1.442695
    %v822 = vpow.pop %v821
    %v823 = vmul.f32 %v818, 1.442695
    %v824 = vpow.pop %v823
    %v825 = vmul.f32 %v819, 1.442695
    %v826 = vpow.pop %v825
    %v827 = vmul.f32 %v820, 1.442695
    %v828 = vpow.pop %v827
    %v829 = vsel %vm202, %v822, 0.0
    %830 = vadd.xlane.f32.xlu0 %v829
    %v831 = vpop.xlane.xlu0 %830
    %v832 = vsel %vm202, %v824, 0.0
    %833 = vadd.xlane.f32.xlu0 %v832
    %v834 = vpop.xlane.xlu0 %833
    %v835 = vsel %vm202, %v826, 0.0
    %836 = vadd.xlane.f32.xlu0 %v835
    %v837 = vpop.xlane.xlu0 %836
    %v838 = vsel %vm202, %v828, 0.0
    %839 = vadd.xlane.f32.xlu0 %v838
    %v840 = vpop.xlane.xlu0 %839
    %v841 = vpack.c.bf16 %v824, %v822
    %v842 = vpack.c.bf16 %v828, %v826
    %843 = vrot.lane.b32.xlu0 %v262, 48
    %v844 = vpop.permute.xlu0 %843
    %845 = vrot.lane.b32.xlu0 %v263, 48
    %v846 = vpop.permute.xlu0 %845
    %v850 = vsel %vm202, %v841, 0
    %v853 = vsel %vm202, %v842, 0
    %855 = vmatprep.subr.bf16.mxu0 0
    %856 = vmatpush1.bf16.msra.mxu0 %v844
    %857 = vmatprep.subr.bf16.mxu0 0
    %858 = vmatpush1.bf16.msra.mxu0 %v846
    %859 = vmatprep.subr.bf16.mxu0 0
    %860 = vmatpush1.bf16.msra.mxu0 0
    %861 = vmatprep.subr.bf16.mxu0 0
    %862 = vmatpush1.bf16.msra.mxu0 0
    %863 = vmatprep.subr.bf16.mxu0 0
    %864 = vmatpush1.bf16.msra.mxu0 0
    %865 = vmatprep.subr.bf16.mxu0 0
    %866 = vmatpush1.bf16.msra.mxu0 0
    %867 = vmatprep.subr.bf16.mxu0 0
    %868 = vmatpush1.bf16.msra.mxu0 0
    %869 = vmatprep.subr.bf16.mxu0 0
    %870 = vmatpush1.bf16.msra.mxu0 0
    %871 = vmatprep.subr.bf16.mxu0 0
    %872 = vmatpush1.bf16.msra.mxu0 0
    %873 = vmatprep.subr.bf16.mxu0 0
    %874 = vmatpush1.bf16.msra.mxu0 0
    %875 = vmatprep.subr.bf16.mxu0 0
    %876 = vmatpush1.bf16.msra.mxu0 0
    %877 = vmatprep.subr.bf16.mxu0 0
    %878 = vmatpush1.bf16.msra.mxu0 0
    %879 = vmatprep.subr.bf16.mxu0 0
    %880 = vmatpush1.bf16.msra.mxu0 0
    %881 = vmatprep.subr.bf16.mxu0 0
    %882 = vmatpush1.bf16.msra.mxu0 0
    %883 = vmatprep.subr.bf16.mxu0 0
    %884 = vmatpush1.bf16.msra.mxu0 0
    %885 = vmatprep.subr.bf16.mxu0 0
    %886 = vmatpush1.bf16.msra.mxu0 0
    %887 = vmatprep.mubr.bf16.mxu0 0
    %888 = vmatmul.mubr.bf16.gmra.mrb[0].mxu0 %v850
    %v889 = vpop.f32.mrb[0].mxu0
    %v890 = vadd.f32 0.0, %v889
    %v891 = vpop.f32.mrb[0].mxu0
    %v892 = vpop.f32.mrb[0].mxu0
    %v893 = vadd.f32 0.0, %v892
    %v894 = vpop.f32.mrb[0].mxu0
    %895 = vmatprep.mubr.bf16.mxu0 0
    %896 = vmatmul.mubr.bf16.gmra.mrb[0].mxu0 %v853
    %v897 = vpop.f32.mrb[0].mxu0
    %v898 = vadd.f32 0.0, %v897
    %v899 = vpop.f32.mrb[0].mxu0
    %v900 = vpop.f32.mrb[0].mxu0
    %v901 = vadd.f32 0.0, %v900
    %v902 = vpop.f32.mrb[0].mxu0
    %903 = vdwg.mxu0
    %v904 = vrcp.pop %v831
    %v905 = vrcp.pop %v834
    %v906 = vrcp.pop %v837
    %v907 = vrcp.pop %v840
    %v908 = vmul.f32 %v890, %v904
    %v909 = vmul.f32 %v893, %v905
    %v910 = vmul.f32 %v898, %v906
    %v911 = vmul.f32 %v901, %v907
    %v912 = vpack.c.bf16 %v909, %v908
    %v913 = vpack.c.bf16 %v911, %v910
    %v915 = vsel %vm270, %v912, 0
    %v918 = vsel %vm270, %v913, 0
    %v921 = vsel %vm625, %v260, 0
    %923 = vmatprep.subr.bf16.mxu0 0
    %924 = vmatpush1.bf16.msra.mxu0 %v921
    %925 = vmatprep.subr.bf16.mxu0 0
    %926 = vmatpush1.bf16.msra.mxu0 0
    %927 = vmatprep.subr.bf16.mxu0 0
    %928 = vmatpush1.bf16.msra.mxu0 0
    %929 = vmatprep.subr.bf16.mxu0 0
    %930 = vmatpush1.bf16.msra.mxu0 0
    %931 = vmatprep.subr.bf16.mxu0 0
    %932 = vmatpush1.bf16.msra.mxu0 0
    %933 = vmatprep.subr.bf16.mxu0 0
    %934 = vmatpush1.bf16.msra.mxu0 0
    %935 = vmatprep.subr.bf16.mxu0 0
    %936 = vmatpush1.bf16.msra.mxu0 0
    %937 = vmatprep.subr.bf16.mxu0 0
    %938 = vmatpush1.bf16.msra.mxu0 0
    %939 = vmatprep.subr.bf16.mxu0 0
    %940 = vmatpush1.bf16.msra.mxu0 0
    %941 = vmatprep.subr.bf16.mxu0 0
    %942 = vmatpush1.bf16.msra.mxu0 0
    %943 = vmatprep.subr.bf16.mxu0 0
    %944 = vmatpush1.bf16.msra.mxu0 0
    %945 = vmatprep.subr.bf16.mxu0 0
    %946 = vmatpush1.bf16.msra.mxu0 0
    %947 = vmatprep.subr.bf16.mxu0 0
    %948 = vmatpush1.bf16.msra.mxu0 0
    %949 = vmatprep.subr.bf16.mxu0 0
    %950 = vmatpush1.bf16.msra.mxu0 0
    %951 = vmatprep.subr.bf16.mxu0 0
    %952 = vmatpush1.bf16.msra.mxu0 0
    %953 = vmatprep.subr.bf16.mxu0 0
    %954 = vmatpush1.bf16.msra.mxu0 0
    %955 = vmatprep.mubr.bf16.mxu0 0
    %956 = vmatmul.mubr.bf16.gmra.mrb[0].mxu0 %v915
    %v957 = vpop.f32.mrb[0].mxu0
    %v958 = vadd.f32 0.0, %v957
    %v959 = vpop.f32.mrb[0].mxu0
    %v960 = vpop.f32.mrb[0].mxu0
    %v961 = vadd.f32 0.0, %v960
    %v962 = vpop.f32.mrb[0].mxu0
    %963 = vmatprep.mubr.bf16.mxu0 0
    %964 = vmatmul.mubr.bf16.gmra.mrb[0].mxu0 %v918
    %v965 = vpop.f32.mrb[0].mxu0
    %v966 = vadd.f32 0.0, %v965
    %v967 = vpop.f32.mrb[0].mxu0
    %v968 = vpop.f32.mrb[0].mxu0
    %v969 = vadd.f32 0.0, %v968
    %v970 = vpop.f32.mrb[0].mxu0
    %971 = vdwg.mxu0
    %v972 = vadd.f32 %v722, %v958
    %v973 = vadd.f32 %v725, %v961
    %v974 = vadd.f32 %v730, %v966
    %v975 = vadd.f32 %v733, %v969
    %976 = vrot.lane.b32.xlu0 %v262, 104
    %v977 = vpop.permute.xlu0 %976
    %978 = vrot.lane.b32.xlu0 %v263, 104
    %v979 = vpop.permute.xlu0 %978
    %980 = vrot.lane.b32.xlu0 %v262, 72
    %v981 = vpop.permute.xlu0 %980
    %982 = vrot.lane.b32.xlu0 %v263, 72
    %v983 = vpop.permute.xlu0 %982
    %v985 = vsel %vm270, %v977, 0
    %v988 = vsel %vm270, %v979, 0
    %v991 = vsel %vm270, %v981, 0
    %v994 = vsel %vm270, %v983, 0
    %996 = vmatprep.subr.bf16.mxu0 0
    %997 = vmatpush1.bf16.xpose.msra.mxu0 %v991
    %998 = vmatprep.subr.bf16.mxu0 0
    %999 = vmatpush1.bf16.xpose.msra.mxu0 %v994
    %1000 = vmatprep.subr.bf16.mxu0 0
    %1001 = vmatpush1.bf16.xpose.msra.mxu0 0
    %1002 = vmatprep.subr.bf16.mxu0 0
    %1003 = vmatpush1.bf16.xpose.msra.mxu0 0
    %1004 = vmatprep.subr.bf16.mxu0 0
    %1005 = vmatpush1.bf16.xpose.msra.mxu0 0
    %1006 = vmatprep.subr.bf16.mxu0 0
    %1007 = vmatpush1.bf16.xpose.msra.mxu0 0
    %1008 = vmatprep.subr.bf16.mxu0 0
    %1009 = vmatpush1.bf16.xpose.msra.mxu0 0
    %1010 = vmatprep.subr.bf16.mxu0 0
    %1011 = vmatpush1.bf16.xpose.msra.mxu0 0
    %1012 = vmatprep.subr.bf16.mxu0 0
    %1013 = vmatpush1.bf16.xpose.msra.mxu0 0
    %1014 = vmatprep.subr.bf16.mxu0 0
    %1015 = vmatpush1.bf16.xpose.msra.mxu0 0
    %1016 = vmatprep.subr.bf16.mxu0 0
    %1017 = vmatpush1.bf16.xpose.msra.mxu0 0
    %1018 = vmatprep.subr.bf16.mxu0 0
    %1019 = vmatpush1.bf16.xpose.msra.mxu0 0
    %1020 = vmatprep.subr.bf16.mxu0 0
    %1021 = vmatpush1.bf16.xpose.msra.mxu0 0
    %1022 = vmatprep.subr.bf16.mxu0 0
    %1023 = vmatpush1.bf16.xpose.msra.mxu0 0
    %1024 = vmatprep.subr.bf16.mxu0 0
    %1025 = vmatpush1.bf16.xpose.msra.mxu0 0
    %1026 = vmatprep.subr.bf16.mxu0 0
    %1027 = vmatpush1.bf16.xpose.msra.mxu0 0
    %1028 = vmatprep.mubr.bf16.mxu0 0
    %1029 = vmatmul.mubr.bf16.gmra.mrb[0].mxu0 %v985
    %v1030 = vpop.f32.mrb[0].mxu0
    %v1031 = vadd.f32 %v173, %v1030
    %v1032 = vpop.f32.mrb[0].mxu0
    %v1033 = vpop.f32.mrb[0].mxu0
    %v1034 = vadd.f32 %v174, %v1033
    %v1035 = vpop.f32.mrb[0].mxu0
    %1036 = vmatprep.mubr.bf16.mxu0 0
    %1037 = vmatmul.mubr.bf16.gmra.mrb[0].mxu0 %v988
    %v1038 = vpop.f32.mrb[0].mxu0
    %v1039 = vadd.f32 %v175, %v1038
    %v1040 = vpop.f32.mrb[0].mxu0
    %v1041 = vpop.f32.mrb[0].mxu0
    %v1042 = vadd.f32 %v176, %v1041
    %v1043 = vpop.f32.mrb[0].mxu0
    %1044 = vdwg.mxu0
    %v1045 = vsel %vm202, %v1031, -inf
    %1046 = vmax.xlane.f32.xlu0 %v1045
    %v1047 = vpop.xlane.xlu0 %1046
    %v1048 = vsel %vm202, %v1034, -inf
    %1049 = vmax.xlane.f32.xlu0 %v1048
    %v1050 = vpop.xlane.xlu0 %1049
    %v1051 = vsel %vm202, %v1039, -inf
    %1052 = vmax.xlane.f32.xlu0 %v1051
    %v1053 = vpop.xlane.xlu0 %1052
    %v1054 = vsel %vm202, %v1042, -inf
    %1055 = vmax.xlane.f32.xlu0 %v1054
    %v1056 = vpop.xlane.xlu0 %1055
    %v1057 = vsub.f32 %v1031, %v1047
    %v1058 = vsub.f32 %v1034, %v1050
    %v1059 = vsub.f32 %v1039, %v1053
    %v1060 = vsub.f32 %v1042, %v1056
    %v1061 = vmul.f32 %v1057, 1.442695
    %v1062 = vpow.pop %v1061
    %v1063 = vmul.f32 %v1058, 1.442695
    %v1064 = vpow.pop %v1063
    %v1065 = vmul.f32 %v1059, 1.442695
    %v1066 = vpow.pop %v1065
    %v1067 = vmul.f32 %v1060, 1.442695
    %v1068 = vpow.pop %v1067
    %v1069 = vsel %vm202, %v1062, 0.0
    %1070 = vadd.xlane.f32.xlu0 %v1069
    %v1071 = vpop.xlane.xlu0 %1070
    %v1072 = vsel %vm202, %v1064, 0.0
    %1073 = vadd.xlane.f32.xlu0 %v1072
    %v1074 = vpop.xlane.xlu0 %1073
    %v1075 = vsel %vm202, %v1066, 0.0
    %1076 = vadd.xlane.f32.xlu0 %v1075
    %v1077 = vpop.xlane.xlu0 %1076
    %v1078 = vsel %vm202, %v1068, 0.0
    %1079 = vadd.xlane.f32.xlu0 %v1078
    %v1080 = vpop.xlane.xlu0 %1079
    %v1081 = vpack.c.bf16 %v1064, %v1062
    %v1082 = vpack.c.bf16 %v1068, %v1066
    %1083 = vrot.lane.b32.xlu0 %v262, 40
    %v1084 = vpop.permute.xlu0 %1083
    %1085 = vrot.lane.b32.xlu0 %v263, 40
    %v1086 = vpop.permute.xlu0 %1085
    %v1090 = vsel %vm202, %v1081, 0
    %v1093 = vsel %vm202, %v1082, 0
    %1095 = vmatprep.subr.bf16.mxu0 0
    %1096 = vmatpush1.bf16.msra.mxu0 %v1084
    %1097 = vmatprep.subr.bf16.mxu0 0
    %1098 = vmatpush1.bf16.msra.mxu0 %v1086
    %1099 = vmatprep.subr.bf16.mxu0 0
    %1100 = vmatpush1.bf16.msra.mxu0 0
    %1101 = vmatprep.subr.bf16.mxu0 0
    %1102 = vmatpush1.bf16.msra.mxu0 0
    %1103 = vmatprep.subr.bf16.mxu0 0
    %1104 = vmatpush1.bf16.msra.mxu0 0
    %1105 = vmatprep.subr.bf16.mxu0 0
    %1106 = vmatpush1.bf16.msra.mxu0 0
    %1107 = vmatprep.subr.bf16.mxu0 0
    %1108 = vmatpush1.bf16.msra.mxu0 0
    %1109 = vmatprep.subr.bf16.mxu0 0
    %1110 = vmatpush1.bf16.msra.mxu0 0
    %1111 = vmatprep.subr.bf16.mxu0 0
    %1112 = vmatpush1.bf16.msra.mxu0 0
    %1113 = vmatprep.subr.bf16.mxu0 0
    %1114 = vmatpush1.bf16.msra.mxu0 0
    %1115 = vmatprep.subr.bf16.mxu0 0
    %1116 = vmatpush1.bf16.msra.mxu0 0
    %1117 = vmatprep.subr.bf16.mxu0 0
    %1118 = vmatpush1.bf16.msra.mxu0 0
    %1119 = vmatprep.subr.bf16.mxu0 0
    %1120 = vmatpush1.bf16.msra.mxu0 0
    %1121 = vmatprep.subr.bf16.mxu0 0
    %1122 = vmatpush1.bf16.msra.mxu0 0
    %1123 = vmatprep.subr.bf16.mxu0 0
    %1124 = vmatpush1.bf16.msra.mxu0 0
    %1125 = vmatprep.subr.bf16.mxu0 0
    %1126 = vmatpush1.bf16.msra.mxu0 0
    %1127 = vmatprep.mubr.bf16.mxu0 0
    %1128 = vmatmul.mubr.bf16.gmra.mrb[0].mxu0 %v1090
    %v1129 = vpop.f32.mrb[0].mxu0
    %v1130 = vadd.f32 0.0, %v1129
    %v1131 = vpop.f32.mrb[0].mxu0
    %v1132 = vpop.f32.mrb[0].mxu0
    %v1133 = vadd.f32 0.0, %v1132
    %v1134 = vpop.f32.mrb[0].mxu0
    %1135 = vmatprep.mubr.bf16.mxu0 0
    %1136 = vmatmul.mubr.bf16.gmra.mrb[0].mxu0 %v1093
    %v1137 = vpop.f32.mrb[0].mxu0
    %v1138 = vadd.f32 0.0, %v1137
    %v1139 = vpop.f32.mrb[0].mxu0
    %v1140 = vpop.f32.mrb[0].mxu0
    %v1141 = vadd.f32 0.0, %v1140
    %v1142 = vpop.f32.mrb[0].mxu0
    %1143 = vdwg.mxu0
    %v1144 = vrcp.pop %v1071
    %v1145 = vrcp.pop %v1074
    %v1146 = vrcp.pop %v1077
    %v1147 = vrcp.pop %v1080
    %v1148 = vmul.f32 %v1130, %v1144
    %v1149 = vmul.f32 %v1133, %v1145
    %v1150 = vmul.f32 %v1138, %v1146
    %v1151 = vmul.f32 %v1141, %v1147
    %v1152 = vpack.c.bf16 %v1149, %v1148
    %v1153 = vpack.c.bf16 %v1151, %v1150
    %v1155 = vsel %vm270, %v1152, 0
    %v1158 = vsel %vm270, %v1153, 0
    %v1161 = vsel %vm625, %v261, 0
    %1163 = vmatprep.subr.bf16.mxu0 0
    %1164 = vmatpush1.bf16.msra.mxu0 %v1161
    %1165 = vmatprep.subr.bf16.mxu0 0
    %1166 = vmatpush1.bf16.msra.mxu0 0
    %1167 = vmatprep.subr.bf16.mxu0 0
    %1168 = vmatpush1.bf16.msra.mxu0 0
    %1169 = vmatprep.subr.bf16.mxu0 0
    %1170 = vmatpush1.bf16.msra.mxu0 0
    %1171 = vmatprep.subr.bf16.mxu0 0
    %1172 = vmatpush1.bf16.msra.mxu0 0
    %1173 = vmatprep.subr.bf16.mxu0 0
    %1174 = vmatpush1.bf16.msra.mxu0 0
    %1175 = vmatprep.subr.bf16.mxu0 0
    %1176 = vmatpush1.bf16.msra.mxu0 0
    %1177 = vmatprep.subr.bf16.mxu0 0
    %1178 = vmatpush1.bf16.msra.mxu0 0
    %1179 = vmatprep.subr.bf16.mxu0 0
    %1180 = vmatpush1.bf16.msra.mxu0 0
    %1181 = vmatprep.subr.bf16.mxu0 0
    %1182 = vmatpush1.bf16.msra.mxu0 0
    %1183 = vmatprep.subr.bf16.mxu0 0
    %1184 = vmatpush1.bf16.msra.mxu0 0
    %1185 = vmatprep.subr.bf16.mxu0 0
    %1186 = vmatpush1.bf16.msra.mxu0 0
    %1187 = vmatprep.subr.bf16.mxu0 0
    %1188 = vmatpush1.bf16.msra.mxu0 0
    %1189 = vmatprep.subr.bf16.mxu0 0
    %1190 = vmatpush1.bf16.msra.mxu0 0
    %1191 = vmatprep.subr.bf16.mxu0 0
    %1192 = vmatpush1.bf16.msra.mxu0 0
    %1193 = vmatprep.subr.bf16.mxu0 0
    %1194 = vmatpush1.bf16.msra.mxu0 0
    %1195 = vmatprep.mubr.bf16.mxu0 0
    %1196 = vmatmul.mubr.bf16.gmra.mrb[0].mxu0 %v1155
    %v1197 = vpop.f32.mrb[0].mxu0
    %v1198 = vadd.f32 0.0, %v1197
    %v1199 = vpop.f32.mrb[0].mxu0
    %v1200 = vpop.f32.mrb[0].mxu0
    %v1201 = vadd.f32 0.0, %v1200
    %v1202 = vpop.f32.mrb[0].mxu0
    %1203 = vmatprep.mubr.bf16.mxu0 0
    %1204 = vmatmul.mubr.bf16.gmra.mrb[0].mxu0 %v1158
    %v1205 = vpop.f32.mrb[0].mxu0
    %v1206 = vadd.f32 0.0, %v1205
    %v1207 = vpop.f32.mrb[0].mxu0
    %v1208 = vpop.f32.mrb[0].mxu0
    %v1209 = vadd.f32 0.0, %v1208
    %v1210 = vpop.f32.mrb[0].mxu0
    %1211 = vdwg.mxu0
    %v1212 = vadd.f32 %v972, %v1198
    %v1213 = vadd.f32 %v973, %v1201
    %v1214 = vadd.f32 %v974, %v1206
    %v1215 = vadd.f32 %v975, %v1209
    %v1216 = vld [vmem:[#allocation7] sm:$0x1]
    %v1218 = vlaneseq
    %v1219 = vshrl.u32 %v1218, 7
    %v1220 = vsub.s32 0, %v1219
    %v1221 = vrot.slane %v1216, %v1220
    %v1223 = vadd.f32 %v1212, %v1221
    %v1224 = vadd.f32 %v1213, %v1221
    %v1225 = vadd.f32 %v1214, %v1221
    %v1226 = vadd.f32 %v1215, %v1221
    %v1227 = vadd.f32 %v159, %v1223
    %v1228 = vadd.f32 %v162, %v1224
    %v1229 = vadd.f32 %v167, %v1225
    %v1230 = vadd.f32 %v170, %v1226
    %v1231 = vld [vmem:[%s8] sm:$0x1]
    %v1232 = vld [vmem:[%s9] sm:$0x1]
    %v1233 = vsel %vm202, %v1227, 0.0
    %1234 = vadd.xlane.f32.xlu0 %v1233
    %v1235 = vpop.xlane.xlu0 %1234
    %v1236 = vsel %vm202, %v1228, 0.0
    %1237 = vadd.xlane.f32.xlu0 %v1236
    %v1238 = vpop.xlane.xlu0 %1237
    %v1239 = vsel %vm202, %v1229, 0.0
    %1240 = vadd.xlane.f32.xlu0 %v1239
    %v1241 = vpop.xlane.xlu0 %1240
    %v1242 = vsel %vm202, %v1230, 0.0
    %1243 = vadd.xlane.f32.xlu0 %v1242
    %v1244 = vpop.xlane.xlu0 %1243
    %v1245 = vrcp.pop 32.0
    %v1246 = vmul.f32 %v1235, %v1245
    %v1247 = vmul.f32 %v1238, %v1245
    %v1248 = vmul.f32 %v1241, %v1245
    %v1249 = vmul.f32 %v1244, %v1245
    %v1250 = vsub.f32 %v1227, %v1246
    %v1251 = vsub.f32 %v1228, %v1247
    %v1252 = vsub.f32 %v1229, %v1248
    %v1253 = vsub.f32 %v1230, %v1249
    %v1254 = vmul.f32 %v1250, %v1250
    %v1255 = vmul.f32 %v1251, %v1251
    %v1256 = vmul.f32 %v1252, %v1252
    %v1257 = vmul.f32 %v1253, %v1253
    %v1258 = vsel %vm202, %v1254, 0.0
    %1259 = vadd.xlane.f32.xlu0 %v1258
    %v1260 = vpop.xlane.xlu0 %1259
    %v1261 = vsel %vm202, %v1255, 0.0
    %1262 = vadd.xlane.f32.xlu0 %v1261
    %v1263 = vpop.xlane.xlu0 %1262
    %v1264 = vsel %vm202, %v1256, 0.0
    %1265 = vadd.xlane.f32.xlu0 %v1264
    %v1266 = vpop.xlane.xlu0 %1265
    %v1267 = vsel %vm202, %v1257, 0.0
    %1268 = vadd.xlane.f32.xlu0 %v1267
    %v1269 = vpop.xlane.xlu0 %1268
    %v1270 = vmul.f32 %v1260, %v1245
    %v1271 = vmul.f32 %v1263, %v1245
    %v1272 = vmul.f32 %v1266, %v1245
    %v1273 = vmul.f32 %v1269, %v1245
    %v1274 = vadd.f32 %v1270, 1e-05
    %v1275 = vadd.f32 %v1271, 1e-05
    %v1276 = vadd.f32 %v1272, 1e-05
    %v1277 = vadd.f32 %v1273, 1e-05
    %v1278 = vrsqrt.pop %v1274
    %v1279 = vrsqrt.pop %v1275
    %v1280 = vrsqrt.pop %v1276
    %v1281 = vrsqrt.pop %v1277
    %v1282 = vmul.f32 %v1250, %v1278
    %v1283 = vmul.f32 %v1251, %v1279
    %v1284 = vmul.f32 %v1252, %v1280
    %v1285 = vmul.f32 %v1253, %v1281
    %v1287 = vlaneseq
    %v1288 = vshrl.u32 %v1287, 7
    %v1289 = vsub.s32 0, %v1288
    %v1290 = vrot.slane %v1231, %v1289
    %v1292 = vmul.f32 %v1282, %v1290
    %v1293 = vmul.f32 %v1283, %v1290
    %v1294 = vmul.f32 %v1284, %v1290
    %v1295 = vmul.f32 %v1285, %v1290
    %v1297 = vlaneseq
    %v1298 = vshrl.u32 %v1297, 7
    %v1299 = vsub.s32 0, %v1298
    %v1300 = vrot.slane %v1232, %v1299
    %v1302 = vadd.f32 %v1292, %v1300
    %v1303 = vadd.f32 %v1293, %v1300
    %v1304 = vadd.f32 %v1294, %v1300
    %v1305 = vadd.f32 %v1295, %v1300
    %v1306 = vpack.c.bf16 %v1303, %v1302
    %v1307 = vpack.c.bf16 %v1305, %v1304
    %v1308 = vld [vmem:[%s12] sm:$0xf]
    %v1309 = vld [vmem:[%s12 + $0x4] sm:$0xf]
    %v1310 = vld [vmem:[%s12 + $0x8] sm:$0xf]
    %v1311 = vld [vmem:[%s12 + $0xc] sm:$0xf]
    %v1312 = vld [vmem:[%s13] sm:$0x1]
    %v1314 = vlaneseq
    %v1315 = vshrl.u32 %v1314, 7
    %v1316 = vsub.s32 0, %v1315
    %v1317 = vrot.slane %v1312, %v1316
    %v1323 = vunpack.c.l.b16 %v1308
    %v1324 = vunpack.c.l.b16 %v1309
    %v1325 = vunpack.c.l.b16 %v1310
    %v1326 = vunpack.c.l.b16 %v1311
    %v1327 = vpack.c.b16 %v1324, %v1323
    %v1328 = vpack.c.b16 %v1326, %v1325
    %v1332 = vsel %vm202, %v1306, 0
    %v1335 = vsel %vm202, %v1307, 0
    %1337 = vmatprep.subr.bf16.mxu0 0
    %1338 = vmatpush1.bf16.msra.mxu0 %v1327
    %1339 = vmatprep.subr.bf16.mxu0 0
    %1340 = vmatpush1.bf16.msra.mxu0 %v1328
    %1341 = vmatprep.subr.bf16.mxu0 0
    %1342 = vmatpush1.bf16.msra.mxu0 0
    %1343 = vmatprep.subr.bf16.mxu0 0
    %1344 = vmatpush1.bf16.msra.mxu0 0
    %1345 = vmatprep.subr.bf16.mxu0 0
    %1346 = vmatpush1.bf16.msra.mxu0 0
    %1347 = vmatprep.subr.bf16.mxu0 0
    %1348 = vmatpush1.bf16.msra.mxu0 0
    %1349 = vmatprep.subr.bf16.mxu0 0
    %1350 = vmatpush1.bf16.msra.mxu0 0
    %1351 = vmatprep.subr.bf16.mxu0 0
    %1352 = vmatpush1.bf16.msra.mxu0 0
    %1353 = vmatprep.subr.bf16.mxu0 0
    %1354 = vmatpush1.bf16.msra.mxu0 0
    %1355 = vmatprep.subr.bf16.mxu0 0
    %1356 = vmatpush1.bf16.msra.mxu0 0
    %1357 = vmatprep.subr.bf16.mxu0 0
    %1358 = vmatpush1.bf16.msra.mxu0 0
    %1359 = vmatprep.subr.bf16.mxu0 0
    %1360 = vmatpush1.bf16.msra.mxu0 0
    %1361 = vmatprep.subr.bf16.mxu0 0
    %1362 = vmatpush1.bf16.msra.mxu0 0
    %1363 = vmatprep.subr.bf16.mxu0 0
    %1364 = vmatpush1.bf16.msra.mxu0 0
    %1365 = vmatprep.subr.bf16.mxu0 0
    %1366 = vmatpush1.bf16.msra.mxu0 0
    %1367 = vmatprep.subr.bf16.mxu0 0
    %1368 = vmatpush1.bf16.msra.mxu0 0
    %1369 = vmatprep.mubr.bf16.mxu0 0
    %1370 = vmatmul.mubr.bf16.gmra.mrb[0].mxu0 %v1332
    %v1371 = vpop.f32.mrb[0].mxu0
    %v1372 = vadd.f32 %v1317, %v1371
    %v1373 = vpop.f32.mrb[0].mxu0
    %v1374 = vpop.f32.mrb[0].mxu0
    %v1375 = vadd.f32 %v1317, %v1374
    %v1376 = vpop.f32.mrb[0].mxu0
    %1377 = vmatprep.mubr.bf16.mxu0 0
    %1378 = vmatmul.mubr.bf16.gmra.mrb[0].mxu0 %v1335
    %v1379 = vpop.f32.mrb[0].mxu0
    %v1380 = vadd.f32 %v1317, %v1379
    %v1381 = vpop.f32.mrb[0].mxu0
    %v1382 = vpop.f32.mrb[0].mxu0
    %v1383 = vadd.f32 %v1317, %v1382
    %v1384 = vpop.f32.mrb[0].mxu0
    %1385 = vdwg.mxu0
    %v1386 = vmax.f32 %v1372, 0.0
    %v1387 = vmax.f32 %v1375, 0.0
    %v1388 = vmax.f32 %v1380, 0.0
    %v1389 = vmax.f32 %v1383, 0.0
    %v1390 = vpack.c.bf16 %v1387, %v1386
    %v1391 = vpack.c.bf16 %v1389, %v1388
    %v1392 = vld [vmem:[%s14] sm:$0xf]
    %v1393 = vld [vmem:[%s14 + $0x4] sm:$0xf]
    %v1394 = vld [vmem:[%s14 + $0x8] sm:$0xf]
    %v1395 = vld [vmem:[%s14 + $0xc] sm:$0xf]
    %v1396 = vld [vmem:[%s14 + $0x10] sm:$0xf]
    %v1397 = vld [vmem:[%s14 + $0x14] sm:$0xf]
    %v1398 = vld [vmem:[%s14 + $0x18] sm:$0xf]
    %v1399 = vld [vmem:[%s14 + $0x1c] sm:$0xf]
    %v1400 = vld [vmem:[%s15] sm:$0x1]
    %v1402 = vlaneseq
    %v1403 = vshrl.u32 %v1402, 7
    %v1404 = vsub.s32 0, %v1403
    %v1405 = vrot.slane %v1400, %v1404
    %v1415 = vunpack.c.l.b16 %v1392
    %v1416 = vunpack.c.l.b16 %v1393
    %v1417 = vunpack.c.l.b16 %v1394
    %v1418 = vunpack.c.l.b16 %v1395
    %v1419 = vunpack.c.l.b16 %v1396
    %v1420 = vunpack.c.l.b16 %v1397
    %v1421 = vunpack.c.l.b16 %v1398
    %v1422 = vunpack.c.l.b16 %v1399
    %v1423 = vpack.c.b16 %v1416, %v1415
    %v1424 = vpack.c.b16 %v1418, %v1417
    %v1425 = vpack.c.b16 %v1420, %v1419
    %v1426 = vpack.c.b16 %v1422, %v1421
    %vm1431 = vcmask 523264
    %v1433 = vsel %vm1431, %v1390, 0
    %v1436 = vsel %vm1431, %v1391, 0
    %1438 = vmatprep.subr.bf16.mxu0 0
    %1439 = vmatpush1.bf16.msra.mxu0 %v1423
    %1440 = vmatprep.subr.bf16.mxu0 0
    %1441 = vmatpush1.bf16.msra.mxu0 %v1424
    %1442 = vmatprep.subr.bf16.mxu0 0
    %1443 = vmatpush1.bf16.msra.mxu0 %v1425
    %1444 = vmatprep.subr.bf16.mxu0 0
    %1445 = vmatpush1.bf16.msra.mxu0 %v1426
    %1446 = vmatprep.subr.bf16.mxu0 0
    %1447 = vmatpush1.bf16.msra.mxu0 0
    %1448 = vmatprep.subr.bf16.mxu0 0
    %1449 = vmatpush1.bf16.msra.mxu0 0
    %1450 = vmatprep.subr.bf16.mxu0 0
    %1451 = vmatpush1.bf16.msra.mxu0 0
    %1452 = vmatprep.subr.bf16.mxu0 0
    %1453 = vmatpush1.bf16.msra.mxu0 0
    %1454 = vmatprep.subr.bf16.mxu0 0
    %1455 = vmatpush1.bf16.msra.mxu0 0
    %1456 = vmatprep.subr.bf16.mxu0 0
    %1457 = vmatpush1.bf16.msra.mxu0 0
    %1458 = vmatprep.subr.bf16.mxu0 0
    %1459 = vmatpush1.bf16.msra.mxu0 0
    %1460 = vmatprep.subr.bf16.mxu0 0
    %1461 = vmatpush1.bf16.msra.mxu0 0
    %1462 = vmatprep.subr.bf16.mxu0 0
    %1463 = vmatpush1.bf16.msra.mxu0 0
    %1464 = vmatprep.subr.bf16.mxu0 0
    %1465 = vmatpush1.bf16.msra.mxu0 0
    %1466 = vmatprep.subr.bf16.mxu0 0
    %1467 = vmatpush1.bf16.msra.mxu0 0
    %1468 = vmatprep.subr.bf16.mxu0 0
    %1469 = vmatpush1.bf16.msra.mxu0 0
    %1470 = vmatprep.mubr.bf16.mxu0 0
    %1471 = vmatmul.mubr.bf16.gmra.mrb[0].mxu0 %v1433
    %v1472 = vpop.f32.mrb[0].mxu0
    %v1473 = vadd.f32 %v1405, %v1472
    %v1474 = vpop.f32.mrb[0].mxu0
    %v1475 = vpop.f32.mrb[0].mxu0
    %v1476 = vadd.f32 %v1405, %v1475
    %v1477 = vpop.f32.mrb[0].mxu0
    %1478 = vmatprep.mubr.bf16.mxu0 0
    %1479 = vmatmul.mubr.bf16.gmra.mrb[0].mxu0 %v1436
    %v1480 = vpop.f32.mrb[0].mxu0
    %v1481 = vadd.f32 %v1405, %v1480
    %v1482 = vpop.f32.mrb[0].mxu0
    %v1483 = vpop.f32.mrb[0].mxu0
    %v1484 = vadd.f32 %v1405, %v1483
    %v1485 = vpop.f32.mrb[0].mxu0
    %1486 = vdwg.mxu0
    %v1487 = vadd.f32 %v1302, %v1473
    %v1488 = vadd.f32 %v1303, %v1476
    %v1489 = vadd.f32 %v1304, %v1481
    %v1490 = vadd.f32 %v1305, %v1484
    %v1491 = vld [vmem:[%s10] sm:$0x1]
    %v1492 = vld [vmem:[%s11] sm:$0x1]
    %v1493 = vsel %vm202, %v1487, 0.0
    %1494 = vadd.xlane.f32.xlu0 %v1493
    %v1495 = vpop.xlane.xlu0 %1494
    %v1496 = vsel %vm202, %v1488, 0.0
    %1497 = vadd.xlane.f32.xlu0 %v1496
    %v1498 = vpop.xlane.xlu0 %1497
    %v1499 = vsel %vm202, %v1489, 0.0
    %1500 = vadd.xlane.f32.xlu0 %v1499
    %v1501 = vpop.xlane.xlu0 %1500
    %v1502 = vsel %vm202, %v1490, 0.0
    %1503 = vadd.xlane.f32.xlu0 %v1502
    %v1504 = vpop.xlane.xlu0 %1503
    %v1505 = vmul.f32 %v1495, %v1245
    %v1506 = vmul.f32 %v1498, %v1245
    %v1507 = vmul.f32 %v1501, %v1245
    %v1508 = vmul.f32 %v1504, %v1245
    %v1509 = vsub.f32 %v1487, %v1505
    %v1510 = vsub.f32 %v1488, %v1506
    %v1511 = vsub.f32 %v1489, %v1507
    %v1512 = vsub.f32 %v1490, %v1508
    %v1513 = vmul.f32 %v1509, %v1509
    %v1514 = vmul.f32 %v1510, %v1510
    %v1515 = vmul.f32 %v1511, %v1511
    %v1516 = vmul.f32 %v1512, %v1512
    %v1517 = vsel %vm202, %v1513, 0.0
    %1518 = vadd.xlane.f32.xlu0 %v1517
    %v1519 = vpop.xlane.xlu0 %1518
    %v1520 = vsel %vm202, %v1514, 0.0
    %1521 = vadd.xlane.f32.xlu0 %v1520
    %v1522 = vpop.xlane.xlu0 %1521
    %v1523 = vsel %vm202, %v1515, 0.0
    %1524 = vadd.xlane.f32.xlu0 %v1523
    %v1525 = vpop.xlane.xlu0 %1524
    %v1526 = vsel %vm202, %v1516, 0.0
    %1527 = vadd.xlane.f32.xlu0 %v1526
    %v1528 = vpop.xlane.xlu0 %1527
    %v1529 = vmul.f32 %v1519, %v1245
    %v1530 = vmul.f32 %v1522, %v1245
    %v1531 = vmul.f32 %v1525, %v1245
    %v1532 = vmul.f32 %v1528, %v1245
    %v1533 = vadd.f32 %v1529, 1e-05
    %v1534 = vadd.f32 %v1530, 1e-05
    %v1535 = vadd.f32 %v1531, 1e-05
    %v1536 = vadd.f32 %v1532, 1e-05
    %v1537 = vrsqrt.pop %v1533
    %v1538 = vrsqrt.pop %v1534
    %v1539 = vrsqrt.pop %v1535
    %v1540 = vrsqrt.pop %v1536
    %v1541 = vmul.f32 %v1509, %v1537
    %v1542 = vmul.f32 %v1510, %v1538
    %v1543 = vmul.f32 %v1511, %v1539
    %v1544 = vmul.f32 %v1512, %v1540
    %v1546 = vlaneseq
    %v1547 = vshrl.u32 %v1546, 7
    %v1548 = vsub.s32 0, %v1547
    %v1549 = vrot.slane %v1491, %v1548
    %v1551 = vmul.f32 %v1541, %v1549
    %v1552 = vmul.f32 %v1542, %v1549
    %v1553 = vmul.f32 %v1543, %v1549
    %v1554 = vmul.f32 %v1544, %v1549
    %v1556 = vlaneseq
    %v1557 = vshrl.u32 %v1556, 7
    %v1558 = vsub.s32 0, %v1557
    %v1559 = vrot.slane %v1492, %v1558
    %v1561 = vadd.f32 %v1551, %v1559
    %v1562 = vadd.f32 %v1552, %v1559
    %v1563 = vadd.f32 %v1553, %v1559
    %v1564 = vadd.f32 %v1554, %v1559
    %v1565 = vpack.c.bf16 %v1562, %v1561
    %v1566 = vpack.c.bf16 %v1564, %v1563
    %s1567 = scalar_lea.vmem %s4, 16
    %v1568 = vld [vmem:[%s1567] sm:$0xf]
    %v1569 = vld [vmem:[%s1567 + $0x4] sm:$0xf]
    %v1570 = vld [vmem:[%s1567 + $0x8] sm:$0xf]
    %v1571 = vld [vmem:[%s1567 + $0xc] sm:$0xf]
    %s1572 = scalar_lea.vmem [#allocation2], 1
    %v1573 = vld [vmem:[%s1572] sm:$0x1]
    %v1575 = vlaneseq
    %v1576 = vshrl.u32 %v1575, 7
    %v1577 = vsub.s32 0, %v1576
    %v1578 = vrot.slane %v1573, %v1577
    %v1584 = vunpack.c.l.b16 %v1568
    %v1585 = vunpack.c.l.b16 %v1569
    %v1586 = vunpack.c.l.b16 %v1570
    %v1587 = vunpack.c.l.b16 %v1571
    %v1588 = vpack.c.b16 %v1585, %v1584
    %v1589 = vpack.c.b16 %v1587, %v1586
    %v1593 = vsel %vm202, %v1565, 0
    %v1596 = vsel %vm202, %v1566, 0
    %1598 = vmatprep.subr.bf16.mxu0 0
    %1599 = vmatpush1.bf16.msra.mxu0 %v1588
    %1600 = vmatprep.subr.bf16.mxu0 0
    %1601 = vmatpush1.bf16.msra.mxu0 %v1589
    %1602 = vmatprep.subr.bf16.mxu0 0
    %1603 = vmatpush1.bf16.msra.mxu0 0
    %1604 = vmatprep.subr.bf16.mxu0 0
    %1605 = vmatpush1.bf16.msra.mxu0 0
    %1606 = vmatprep.subr.bf16.mxu0 0
    %1607 = vmatpush1.bf16.msra.mxu0 0
    %1608 = vmatprep.subr.bf16.mxu0 0
    %1609 = vmatpush1.bf16.msra.mxu0 0
    %1610 = vmatprep.subr.bf16.mxu0 0
    %1611 = vmatpush1.bf16.msra.mxu0 0
    %1612 = vmatprep.subr.bf16.mxu0 0
    %1613 = vmatpush1.bf16.msra.mxu0 0
    %1614 = vmatprep.subr.bf16.mxu0 0
    %1615 = vmatpush1.bf16.msra.mxu0 0
    %1616 = vmatprep.subr.bf16.mxu0 0
    %1617 = vmatpush1.bf16.msra.mxu0 0
    %1618 = vmatprep.subr.bf16.mxu0 0
    %1619 = vmatpush1.bf16.msra.mxu0 0
    %1620 = vmatprep.subr.bf16.mxu0 0
    %1621 = vmatpush1.bf16.msra.mxu0 0
    %1622 = vmatprep.subr.bf16.mxu0 0
    %1623 = vmatpush1.bf16.msra.mxu0 0
    %1624 = vmatprep.subr.bf16.mxu0 0
    %1625 = vmatpush1.bf16.msra.mxu0 0
    %1626 = vmatprep.subr.bf16.mxu0 0
    %1627 = vmatpush1.bf16.msra.mxu0 0
    %1628 = vmatprep.subr.bf16.mxu0 0
    %1629 = vmatpush1.bf16.msra.mxu0 0
    %1630 = vmatprep.mubr.bf16.mxu0 0
    %1631 = vmatmul.mubr.bf16.gmra.mrb[0].mxu0 %v1593
    %v1632 = vpop.f32.mrb[0].mxu0
    %v1633 = vadd.f32 %v1578, %v1632
    %v1634 = vpop.f32.mrb[0].mxu0
    %v1635 = vpop.f32.mrb[0].mxu0
    %v1636 = vadd.f32 %v1578, %v1635
    %v1637 = vpop.f32.mrb[0].mxu0
    %1638 = vmatprep.mubr.bf16.mxu0 0
    %1639 = vmatmul.mubr.bf16.gmra.mrb[0].mxu0 %v1596
    %v1640 = vpop.f32.mrb[0].mxu0
    %v1641 = vadd.f32 %v1578, %v1640
    %v1642 = vpop.f32.mrb[0].mxu0
    %v1643 = vpop.f32.mrb[0].mxu0
    %v1644 = vadd.f32 %v1578, %v1643
    %v1645 = vpop.f32.mrb[0].mxu0
    %1646 = vdwg.mxu0
    %s1647 = scalar_lea.vmem [#allocation5], 16
    %v1648 = vld [vmem:[%s1647] sm:$0xf]
    %v1649 = vld [vmem:[%s1647 + $0x4] sm:$0xf]
    %v1650 = vld [vmem:[%s1647 + $0x8] sm:$0xf]
    %v1651 = vld [vmem:[%s1647 + $0xc] sm:$0xf]
    %v1652 = vpack.c.bf16 %v1636, %v1633
    %v1653 = vpack.c.bf16 %v1644, %v1641
    %1656 = vrot.lane.b32.xlu0 %v1652, 96
    %v1657 = vpop.permute.xlu0 %1656
    %1658 = vrot.lane.b32.xlu0 %v1653, 96
    %v1659 = vpop.permute.xlu0 %1658
    %v1661 = vsel %vm270, %v1652, 0
    %v1664 = vsel %vm270, %v1653, 0
    %v1667 = vsel %vm270, %v1657, 0
    %v1670 = vsel %vm270, %v1659, 0
    %1672 = vmatprep.subr.bf16.mxu0 0
    %1673 = vmatpush1.bf16.xpose.msra.mxu0 %v1667
    %1674 = vmatprep.subr.bf16.mxu0 0
    %1675 = vmatpush1.bf16.xpose.msra.mxu0 %v1670
    %1676 = vmatprep.subr.bf16.mxu0 0
    %1677 = vmatpush1.bf16.xpose.msra.mxu0 0
    %1678 = vmatprep.subr.bf16.mxu0 0
    %1679 = vmatpush1.bf16.xpose.msra.mxu0 0
    %1680 = vmatprep.subr.bf16.mxu0 0
    %1681 = vmatpush1.bf16.xpose.msra.mxu0 0
    %1682 = vmatprep.subr.bf16.mxu0 0
    %1683 = vmatpush1.bf16.xpose.msra.mxu0 0
    %1684 = vmatprep.subr.bf16.mxu0 0
    %1685 = vmatpush1.bf16.xpose.msra.mxu0 0
    %1686 = vmatprep.subr.bf16.mxu0 0
    %1687 = vmatpush1.bf16.xpose.msra.mxu0 0
    %1688 = vmatprep.subr.bf16.mxu0 0
    %1689 = vmatpush1.bf16.xpose.msra.mxu0 0
    %1690 = vmatprep.subr.bf16.mxu0 0
    %1691 = vmatpush1.bf16.xpose.msra.mxu0 0
    %1692 = vmatprep.subr.bf16.mxu0 0
    %1693 = vmatpush1.bf16.xpose.msra.mxu0 0
    %1694 = vmatprep.subr.bf16.mxu0 0
    %1695 = vmatpush1.bf16.xpose.msra.mxu0 0
    %1696 = vmatprep.subr.bf16.mxu0 0
    %1697 = vmatpush1.bf16.xpose.msra.mxu0 0
    %1698 = vmatprep.subr.bf16.mxu0 0
    %1699 = vmatpush1.bf16.xpose.msra.mxu0 0
    %1700 = vmatprep.subr.bf16.mxu0 0
    %1701 = vmatpush1.bf16.xpose.msra.mxu0 0
    %1702 = vmatprep.subr.bf16.mxu0 0
    %1703 = vmatpush1.bf16.xpose.msra.mxu0 0
    %1704 = vmatprep.mubr.bf16.mxu0 0
    %1705 = vmatmul.mubr.bf16.gmra.mrb[0].mxu0 %v1661
    %v1706 = vpop.f32.mrb[0].mxu0
    %v1707 = vadd.f32 %v173, %v1706
    %v1708 = vpop.f32.mrb[0].mxu0
    %v1709 = vpop.f32.mrb[0].mxu0
    %v1710 = vadd.f32 %v174, %v1709
    %v1711 = vpop.f32.mrb[0].mxu0
    %1712 = vmatprep.mubr.bf16.mxu0 0
    %1713 = vmatmul.mubr.bf16.gmra.mrb[0].mxu0 %v1664
    %v1714 = vpop.f32.mrb[0].mxu0
    %v1715 = vadd.f32 %v175, %v1714
    %v1716 = vpop.f32.mrb[0].mxu0
    %v1717 = vpop.f32.mrb[0].mxu0
    %v1718 = vadd.f32 %v176, %v1717
    %v1719 = vpop.f32.mrb[0].mxu0
    %1720 = vdwg.mxu0
    %v1721 = vsel %vm202, %v1707, -inf
    %1722 = vmax.xlane.f32.xlu0 %v1721
    %v1723 = vpop.xlane.xlu0 %1722
    %v1724 = vsel %vm202, %v1710, -inf
    %1725 = vmax.xlane.f32.xlu0 %v1724
    %v1726 = vpop.xlane.xlu0 %1725
    %v1727 = vsel %vm202, %v1715, -inf
    %1728 = vmax.xlane.f32.xlu0 %v1727
    %v1729 = vpop.xlane.xlu0 %1728
    %v1730 = vsel %vm202, %v1718, -inf
    %1731 = vmax.xlane.f32.xlu0 %v1730
    %v1732 = vpop.xlane.xlu0 %1731
    %v1733 = vsub.f32 %v1707, %v1723
    %v1734 = vsub.f32 %v1710, %v1726
    %v1735 = vsub.f32 %v1715, %v1729
    %v1736 = vsub.f32 %v1718, %v1732
    %v1737 = vmul.f32 %v1733, 1.442695
    %v1738 = vpow.pop %v1737
    %v1739 = vmul.f32 %v1734, 1.442695
    %v1740 = vpow.pop %v1739
    %v1741 = vmul.f32 %v1735, 1.442695
    %v1742 = vpow.pop %v1741
    %v1743 = vmul.f32 %v1736, 1.442695
    %v1744 = vpow.pop %v1743
    %v1745 = vsel %vm202, %v1738, 0.0
    %1746 = vadd.xlane.f32.xlu0 %v1745
    %v1747 = vpop.xlane.xlu0 %1746
    %v1748 = vsel %vm202, %v1740, 0.0
    %1749 = vadd.xlane.f32.xlu0 %v1748
    %v1750 = vpop.xlane.xlu0 %1749
    %v1751 = vsel %vm202, %v1742, 0.0
    %1752 = vadd.xlane.f32.xlu0 %v1751
    %v1753 = vpop.xlane.xlu0 %1752
    %v1754 = vsel %vm202, %v1744, 0.0
    %1755 = vadd.xlane.f32.xlu0 %v1754
    %v1756 = vpop.xlane.xlu0 %1755
    %v1757 = vpack.c.bf16 %v1740, %v1738
    %v1758 = vpack.c.bf16 %v1744, %v1742
    %1759 = vrot.lane.b32.xlu0 %v1652, 64
    %v1760 = vpop.permute.xlu0 %1759
    %1761 = vrot.lane.b32.xlu0 %v1653, 64
    %v1762 = vpop.permute.xlu0 %1761
    %v1766 = vsel %vm202, %v1757, 0
    %v1769 = vsel %vm202, %v1758, 0
    %1771 = vmatprep.subr.bf16.mxu0 0
    %1772 = vmatpush1.bf16.msra.mxu0 %v1760
    %1773 = vmatprep.subr.bf16.mxu0 0
    %1774 = vmatpush1.bf16.msra.mxu0 %v1762
    %1775 = vmatprep.subr.bf16.mxu0 0
    %1776 = vmatpush1.bf16.msra.mxu0 0
    %1777 = vmatprep.subr.bf16.mxu0 0
    %1778 = vmatpush1.bf16.msra.mxu0 0
    %1779 = vmatprep.subr.bf16.mxu0 0
    %1780 = vmatpush1.bf16.msra.mxu0 0
    %1781 = vmatprep.subr.bf16.mxu0 0
    %1782 = vmatpush1.bf16.msra.mxu0 0
    %1783 = vmatprep.subr.bf16.mxu0 0
    %1784 = vmatpush1.bf16.msra.mxu0 0
    %1785 = vmatprep.subr.bf16.mxu0 0
    %1786 = vmatpush1.bf16.msra.mxu0 0
    %1787 = vmatprep.subr.bf16.mxu0 0
    %1788 = vmatpush1.bf16.msra.mxu0 0
    %1789 = vmatprep.subr.bf16.mxu0 0
    %1790 = vmatpush1.bf16.msra.mxu0 0
    %1791 = vmatprep.subr.bf16.mxu0 0
    %1792 = vmatpush1.bf16.msra.mxu0 0
    %1793 = vmatprep.subr.bf16.mxu0 0
    %1794 = vmatpush1.bf16.msra.mxu0 0
    %1795 = vmatprep.subr.bf16.mxu0 0
    %1796 = vmatpush1.bf16.msra.mxu0 0
    %1797 = vmatprep.subr.bf16.mxu0 0
    %1798 = vmatpush1.bf16.msra.mxu0 0
    %1799 = vmatprep.subr.bf16.mxu0 0
    %1800 = vmatpush1.bf16.msra.mxu0 0
    %1801 = vmatprep.subr.bf16.mxu0 0
    %1802 = vmatpush1.bf16.msra.mxu0 0
    %1803 = vmatprep.mubr.bf16.mxu0 0
    %1804 = vmatmul.mubr.bf16.gmra.mrb[0].mxu0 %v1766
    %v1805 = vpop.f32.mrb[0].mxu0
    %v1806 = vadd.f32 0.0, %v1805
    %v1807 = vpop.f32.mrb[0].mxu0
    %v1808 = vpop.f32.mrb[0].mxu0
    %v1809 = vadd.f32 0.0, %v1808
    %v1810 = vpop.f32.mrb[0].mxu0
    %1811 = vmatprep.mubr.bf16.mxu0 0
    %1812 = vmatmul.mubr.bf16.gmra.mrb[0].mxu0 %v1769
    %v1813 = vpop.f32.mrb[0].mxu0
    %v1814 = vadd.f32 0.0, %v1813
    %v1815 = vpop.f32.mrb[0].mxu0
    %v1816 = vpop.f32.mrb[0].mxu0
    %v1817 = vadd.f32 0.0, %v1816
    %v1818 = vpop.f32.mrb[0].mxu0
    %1819 = vdwg.mxu0
    %v1820 = vrcp.pop %v1747
    %v1821 = vrcp.pop %v1750
    %v1822 = vrcp.pop %v1753
    %v1823 = vrcp.pop %v1756
    %v1824 = vmul.f32 %v1806, %v1820
    %v1825 = vmul.f32 %v1809, %v1821
    %v1826 = vmul.f32 %v1814, %v1822
    %v1827 = vmul.f32 %v1817, %v1823
    %v1828 = vpack.c.bf16 %v1825, %v1824
    %v1829 = vpack.c.bf16 %v1827, %v1826
    %1830 = vrot.lane.b32.xlu0 %v1652, 120
    %v1831 = vpop.permute.xlu0 %1830
    %1832 = vrot.lane.b32.xlu0 %v1653, 120
    %v1833 = vpop.permute.xlu0 %1832
    %1834 = vrot.lane.b32.xlu0 %v1652, 88
    %v1835 = vpop.permute.xlu0 %1834
    %1836 = vrot.lane.b32.xlu0 %v1653, 88
    %v1837 = vpop.permute.xlu0 %1836
    %v1839 = vsel %vm270, %v1831, 0
    %v1842 = vsel %vm270, %v1833, 0
    %v1845 = vsel %vm270, %v1835, 0
    %v1848 = vsel %vm270, %v1837, 0
    %1850 = vmatprep.subr.bf16.mxu0 0
    %1851 = vmatpush1.bf16.xpose.msra.mxu0 %v1845
    %1852 = vmatprep.subr.bf16.mxu0 0
    %1853 = vmatpush1.bf16.xpose.msra.mxu0 %v1848
    %1854 = vmatprep.subr.bf16.mxu0 0
    %1855 = vmatpush1.bf16.xpose.msra.mxu0 0
    %1856 = vmatprep.subr.bf16.mxu0 0
    %1857 = vmatpush1.bf16.xpose.msra.mxu0 0
    %1858 = vmatprep.subr.bf16.mxu0 0
    %1859 = vmatpush1.bf16.xpose.msra.mxu0 0
    %1860 = vmatprep.subr.bf16.mxu0 0
    %1861 = vmatpush1.bf16.xpose.msra.mxu0 0
    %1862 = vmatprep.subr.bf16.mxu0 0
    %1863 = vmatpush1.bf16.xpose.msra.mxu0 0
    %1864 = vmatprep.subr.bf16.mxu0 0
    %1865 = vmatpush1.bf16.xpose.msra.mxu0 0
    %1866 = vmatprep.subr.bf16.mxu0 0
    %1867 = vmatpush1.bf16.xpose.msra.mxu0 0
    %1868 = vmatprep.subr.bf16.mxu0 0
    %1869 = vmatpush1.bf16.xpose.msra.mxu0 0
    %1870 = vmatprep.subr.bf16.mxu0 0
    %1871 = vmatpush1.bf16.xpose.msra.mxu0 0
    %1872 = vmatprep.subr.bf16.mxu0 0
    %1873 = vmatpush1.bf16.xpose.msra.mxu0 0
    %1874 = vmatprep.subr.bf16.mxu0 0
    %1875 = vmatpush1.bf16.xpose.msra.mxu0 0
    %1876 = vmatprep.subr.bf16.mxu0 0
    %1877 = vmatpush1.bf16.xpose.msra.mxu0 0
    %1878 = vmatprep.subr.bf16.mxu0 0
    %1879 = vmatpush1.bf16.xpose.msra.mxu0 0
    %1880 = vmatprep.subr.bf16.mxu0 0
    %1881 = vmatpush1.bf16.xpose.msra.mxu0 0
    %1882 = vmatprep.mubr.bf16.mxu0 0
    %1883 = vmatmul.mubr.bf16.gmra.mrb[0].mxu0 %v1839
    %v1884 = vpop.f32.mrb[0].mxu0
    %v1885 = vadd.f32 %v173, %v1884
    %v1886 = vpop.f32.mrb[0].mxu0
    %v1887 = vpop.f32.mrb[0].mxu0
    %v1888 = vadd.f32 %v174, %v1887
    %v1889 = vpop.f32.mrb[0].mxu0
    %1890 = vmatprep.mubr.bf16.mxu0 0
    %1891 = vmatmul.mubr.bf16.gmra.mrb[0].mxu0 %v1842
    %v1892 = vpop.f32.mrb[0].mxu0
    %v1893 = vadd.f32 %v175, %v1892
    %v1894 = vpop.f32.mrb[0].mxu0
    %v1895 = vpop.f32.mrb[0].mxu0
    %v1896 = vadd.f32 %v176, %v1895
    %v1897 = vpop.f32.mrb[0].mxu0
    %1898 = vdwg.mxu0
    %v1899 = vsel %vm202, %v1885, -inf
    %1900 = vmax.xlane.f32.xlu0 %v1899
    %v1901 = vpop.xlane.xlu0 %1900
    %v1902 = vsel %vm202, %v1888, -inf
    %1903 = vmax.xlane.f32.xlu0 %v1902
    %v1904 = vpop.xlane.xlu0 %1903
    %v1905 = vsel %vm202, %v1893, -inf
    %1906 = vmax.xlane.f32.xlu0 %v1905
    %v1907 = vpop.xlane.xlu0 %1906
    %v1908 = vsel %vm202, %v1896, -inf
    %1909 = vmax.xlane.f32.xlu0 %v1908
    %v1910 = vpop.xlane.xlu0 %1909
    %v1911 = vsub.f32 %v1885, %v1901
    %v1912 = vsub.f32 %v1888, %v1904
    %v1913 = vsub.f32 %v1893, %v1907
    %v1914 = vsub.f32 %v1896, %v1910
    %v1915 = vmul.f32 %v1911, 1.442695
    %v1916 = vpow.pop %v1915
    %v1917 = vmul.f32 %v1912, 1.442695
    %v1918 = vpow.pop %v1917
    %v1919 = vmul.f32 %v1913, 1.442695
    %v1920 = vpow.pop %v1919
    %v1921 = vmul.f32 %v1914, 1.442695
    %v1922 = vpow.pop %v1921
    %v1923 = vsel %vm202, %v1916, 0.0
    %1924 = vadd.xlane.f32.xlu0 %v1923
    %v1925 = vpop.xlane.xlu0 %1924
    %v1926 = vsel %vm202, %v1918, 0.0
    %1927 = vadd.xlane.f32.xlu0 %v1926
    %v1928 = vpop.xlane.xlu0 %1927
    %v1929 = vsel %vm202, %v1920, 0.0
    %1930 = vadd.xlane.f32.xlu0 %v1929
    %v1931 = vpop.xlane.xlu0 %1930
    %v1932 = vsel %vm202, %v1922, 0.0
    %1933 = vadd.xlane.f32.xlu0 %v1932
    %v1934 = vpop.xlane.xlu0 %1933
    %v1935 = vpack.c.bf16 %v1918, %v1916
    %v1936 = vpack.c.bf16 %v1922, %v1920
    %1937 = vrot.lane.b32.xlu0 %v1652, 56
    %v1938 = vpop.permute.xlu0 %1937
    %1939 = vrot.lane.b32.xlu0 %v1653, 56
    %v1940 = vpop.permute.xlu0 %1939
    %v1944 = vsel %vm202, %v1935, 0
    %v1947 = vsel %vm202, %v1936, 0
    %1949 = vmatprep.subr.bf16.mxu0 0
    %1950 = vmatpush1.bf16.msra.mxu0 %v1938
    %1951 = vmatprep.subr.bf16.mxu0 0
    %1952 = vmatpush1.bf16.msra.mxu0 %v1940
    %1953 = vmatprep.subr.bf16.mxu0 0
    %1954 = vmatpush1.bf16.msra.mxu0 0
    %1955 = vmatprep.subr.bf16.mxu0 0
    %1956 = vmatpush1.bf16.msra.mxu0 0
    %1957 = vmatprep.subr.bf16.mxu0 0
    %1958 = vmatpush1.bf16.msra.mxu0 0
    %1959 = vmatprep.subr.bf16.mxu0 0
    %1960 = vmatpush1.bf16.msra.mxu0 0
    %1961 = vmatprep.subr.bf16.mxu0 0
    %1962 = vmatpush1.bf16.msra.mxu0 0
    %1963 = vmatprep.subr.bf16.mxu0 0
    %1964 = vmatpush1.bf16.msra.mxu0 0
    %1965 = vmatprep.subr.bf16.mxu0 0
    %1966 = vmatpush1.bf16.msra.mxu0 0
    %1967 = vmatprep.subr.bf16.mxu0 0
    %1968 = vmatpush1.bf16.msra.mxu0 0
    %1969 = vmatprep.subr.bf16.mxu0 0
    %1970 = vmatpush1.bf16.msra.mxu0 0
    %1971 = vmatprep.subr.bf16.mxu0 0
    %1972 = vmatpush1.bf16.msra.mxu0 0
    %1973 = vmatprep.subr.bf16.mxu0 0
    %1974 = vmatpush1.bf16.msra.mxu0 0
    %1975 = vmatprep.subr.bf16.mxu0 0
    %1976 = vmatpush1.bf16.msra.mxu0 0
    %1977 = vmatprep.subr.bf16.mxu0 0
    %1978 = vmatpush1.bf16.msra.mxu0 0
    %1979 = vmatprep.subr.bf16.mxu0 0
    %1980 = vmatpush1.bf16.msra.mxu0 0
    %1981 = vmatprep.mubr.bf16.mxu0 0
    %1982 = vmatmul.mubr.bf16.gmra.mrb[0].mxu0 %v1944
    %v1983 = vpop.f32.mrb[0].mxu0
    %v1984 = vadd.f32 0.0, %v1983
    %v1985 = vpop.f32.mrb[0].mxu0
    %v1986 = vpop.f32.mrb[0].mxu0
    %v1987 = vadd.f32 0.0, %v1986
    %v1988 = vpop.f32.mrb[0].mxu0
    %1989 = vmatprep.mubr.bf16.mxu0 0
    %1990 = vmatmul.mubr.bf16.gmra.mrb[0].mxu0 %v1947
    %v1991 = vpop.f32.mrb[0].mxu0
    %v1992 = vadd.f32 0.0, %v1991
    %v1993 = vpop.f32.mrb[0].mxu0
    %v1994 = vpop.f32.mrb[0].mxu0
    %v1995 = vadd.f32 0.0, %v1994
    %v1996 = vpop.f32.mrb[0].mxu0
    %1997 = vdwg.mxu0
    %v1998 = vrcp.pop %v1925
    %v1999 = vrcp.pop %v1928
    %v2000 = vrcp.pop %v1931
    %v2001 = vrcp.pop %v1934
    %v2002 = vmul.f32 %v1984, %v1998
    %v2003 = vmul.f32 %v1987, %v1999
    %v2004 = vmul.f32 %v1992, %v2000
    %v2005 = vmul.f32 %v1995, %v2001
    %v2006 = vpack.c.bf16 %v2003, %v2002
    %v2007 = vpack.c.bf16 %v2005, %v2004
    %v2009 = vsel %vm270, %v2006, 0
    %v2012 = vsel %vm270, %v2007, 0
    %v2015 = vsel %vm625, %v1649, 0
    %2017 = vmatprep.subr.bf16.mxu0 0
    %2018 = vmatpush1.bf16.msra.mxu0 %v2015
    %2019 = vmatprep.subr.bf16.mxu0 0
    %2020 = vmatpush1.bf16.msra.mxu0 0
    %2021 = vmatprep.subr.bf16.mxu0 0
    %2022 = vmatpush1.bf16.msra.mxu0 0
    %2023 = vmatprep.subr.bf16.mxu0 0
    %2024 = vmatpush1.bf16.msra.mxu0 0
    %2025 = vmatprep.subr.bf16.mxu0 0
    %2026 = vmatpush1.bf16.msra.mxu0 0
    %2027 = vmatprep.subr.bf16.mxu0 0
    %2028 = vmatpush1.bf16.msra.mxu0 0
    %2029 = vmatprep.subr.bf16.mxu0 0
    %2030 = vmatpush1.bf16.msra.mxu0 0
    %2031 = vmatprep.subr.bf16.mxu0 0
    %2032 = vmatpush1.bf16.msra.mxu0 0
    %2033 = vmatprep.subr.bf16.mxu0 0
    %2034 = vmatpush1.bf16.msra.mxu0 0
    %2035 = vmatprep.subr.bf16.mxu0 0
    %2036 = vmatpush1.bf16.msra.mxu0 0
    %2037 = vmatprep.subr.bf16.mxu0 0
    %2038 = vmatpush1.bf16.msra.mxu0 0
    %2039 = vmatprep.subr.bf16.mxu0 0
    %2040 = vmatpush1.bf16.msra.mxu0 0
    %2041 = vmatprep.subr.bf16.mxu0 0
    %2042 = vmatpush1.bf16.msra.mxu0 0
    %2043 = vmatprep.subr.bf16.mxu0 0
    %2044 = vmatpush1.bf16.msra.mxu0 0
    %2045 = vmatprep.subr.bf16.mxu0 0
    %2046 = vmatpush1.bf16.msra.mxu0 0
    %2047 = vmatprep.subr.bf16.mxu0 0
    %2048 = vmatpush1.bf16.msra.mxu0 0
    %2049 = vmatprep.mubr.bf16.mxu0 0
    %2050 = vmatmul.mubr.bf16.gmra.mrb[0].mxu0 %v2009
    %v2051 = vpop.f32.mrb[0].mxu0
    %v2052 = vadd.f32 0.0, %v2051
    %v2053 = vpop.f32.mrb[0].mxu0
    %v2054 = vpop.f32.mrb[0].mxu0
    %v2055 = vadd.f32 0.0, %v2054
    %v2056 = vpop.f32.mrb[0].mxu0
    %2057 = vmatprep.mubr.bf16.mxu0 0
    %2058 = vmatmul.mubr.bf16.gmra.mrb[0].mxu0 %v2012
    %v2059 = vpop.f32.mrb[0].mxu0
    %v2060 = vadd.f32 0.0, %v2059
    %v2061 = vpop.f32.mrb[0].mxu0
    %v2062 = vpop.f32.mrb[0].mxu0
    %v2063 = vadd.f32 0.0, %v2062
    %v2064 = vpop.f32.mrb[0].mxu0
    %2065 = vdwg.mxu0
    %v2067 = vsel %vm270, %v1828, 0
    %v2070 = vsel %vm270, %v1829, 0
    %v2073 = vsel %vm625, %v1648, 0
    %2075 = vmatprep.subr.bf16.mxu0 0
    %2076 = vmatpush1.bf16.msra.mxu0 %v2073
    %2077 = vmatprep.subr.bf16.mxu0 0
    %2078 = vmatpush1.bf16.msra.mxu0 0
    %2079 = vmatprep.subr.bf16.mxu0 0
    %2080 = vmatpush1.bf16.msra.mxu0 0
    %2081 = vmatprep.subr.bf16.mxu0 0
    %2082 = vmatpush1.bf16.msra.mxu0 0
    %2083 = vmatprep.subr.bf16.mxu0 0
    %2084 = vmatpush1.bf16.msra.mxu0 0
    %2085 = vmatprep.subr.bf16.mxu0 0
    %2086 = vmatpush1.bf16.msra.mxu0 0
    %2087 = vmatprep.subr.bf16.mxu0 0
    %2088 = vmatpush1.bf16.msra.mxu0 0
    %2089 = vmatprep.subr.bf16.mxu0 0
    %2090 = vmatpush1.bf16.msra.mxu0 0
    %2091 = vmatprep.subr.bf16.mxu0 0
    %2092 = vmatpush1.bf16.msra.mxu0 0
    %2093 = vmatprep.subr.bf16.mxu0 0
    %2094 = vmatpush1.bf16.msra.mxu0 0
    %2095 = vmatprep.subr.bf16.mxu0 0
    %2096 = vmatpush1.bf16.msra.mxu0 0
    %2097 = vmatprep.subr.bf16.mxu0 0
    %2098 = vmatpush1.bf16.msra.mxu0 0
    %2099 = vmatprep.subr.bf16.mxu0 0
    %2100 = vmatpush1.bf16.msra.mxu0 0
    %2101 = vmatprep.subr.bf16.mxu0 0
    %2102 = vmatpush1.bf16.msra.mxu0 0
    %2103 = vmatprep.subr.bf16.mxu0 0
    %2104 = vmatpush1.bf16.msra.mxu0 0
    %2105 = vmatprep.subr.bf16.mxu0 0
    %2106 = vmatpush1.bf16.msra.mxu0 0
    %2107 = vmatprep.mubr.bf16.mxu0 0
    %2108 = vmatmul.mubr.bf16.gmra.mrb[0].mxu0 %v2067
    %v2109 = vpop.f32.mrb[0].mxu0
    %v2110 = vadd.f32 %v2052, %v2109
    %v2111 = vpop.f32.mrb[0].mxu0
    %v2112 = vpop.f32.mrb[0].mxu0
    %v2113 = vadd.f32 %v2055, %v2112
    %v2114 = vpop.f32.mrb[0].mxu0
    %2115 = vmatprep.mubr.bf16.mxu0 0
    %2116 = vmatmul.mubr.bf16.gmra.mrb[0].mxu0 %v2070
    %v2117 = vpop.f32.mrb[0].mxu0
    %v2118 = vadd.f32 %v2060, %v2117
    %v2119 = vpop.f32.mrb[0].mxu0
    %v2120 = vpop.f32.mrb[0].mxu0
    %v2121 = vadd.f32 %v2063, %v2120
    %v2122 = vpop.f32.mrb[0].mxu0
    %2123 = vdwg.mxu0
    %2124 = vrot.lane.b32.xlu0 %v1652, 112
    %v2125 = vpop.permute.xlu0 %2124
    %2126 = vrot.lane.b32.xlu0 %v1653, 112
    %v2127 = vpop.permute.xlu0 %2126
    %2128 = vrot.lane.b32.xlu0 %v1652, 80
    %v2129 = vpop.permute.xlu0 %2128
    %2130 = vrot.lane.b32.xlu0 %v1653, 80
    %v2131 = vpop.permute.xlu0 %2130
    %v2133 = vsel %vm270, %v2125, 0
    %v2136 = vsel %vm270, %v2127, 0
    %v2139 = vsel %vm270, %v2129, 0
    %v2142 = vsel %vm270, %v2131, 0
    %2144 = vmatprep.subr.bf16.mxu0 0
    %2145 = vmatpush1.bf16.xpose.msra.mxu0 %v2139
    %2146 = vmatprep.subr.bf16.mxu0 0
    %2147 = vmatpush1.bf16.xpose.msra.mxu0 %v2142
    %2148 = vmatprep.subr.bf16.mxu0 0
    %2149 = vmatpush1.bf16.xpose.msra.mxu0 0
    %2150 = vmatprep.subr.bf16.mxu0 0
    %2151 = vmatpush1.bf16.xpose.msra.mxu0 0
    %2152 = vmatprep.subr.bf16.mxu0 0
    %2153 = vmatpush1.bf16.xpose.msra.mxu0 0
    %2154 = vmatprep.subr.bf16.mxu0 0
    %2155 = vmatpush1.bf16.xpose.msra.mxu0 0
    %2156 = vmatprep.subr.bf16.mxu0 0
    %2157 = vmatpush1.bf16.xpose.msra.mxu0 0
    %2158 = vmatprep.subr.bf16.mxu0 0
    %2159 = vmatpush1.bf16.xpose.msra.mxu0 0
    %2160 = vmatprep.subr.bf16.mxu0 0
    %2161 = vmatpush1.bf16.xpose.msra.mxu0 0
    %2162 = vmatprep.subr.bf16.mxu0 0
    %2163 = vmatpush1.bf16.xpose.msra.mxu0 0
    %2164 = vmatprep.subr.bf16.mxu0 0
    %2165 = vmatpush1.bf16.xpose.msra.mxu0 0
    %2166 = vmatprep.subr.bf16.mxu0 0
    %2167 = vmatpush1.bf16.xpose.msra.mxu0 0
    %2168 = vmatprep.subr.bf16.mxu0 0
    %2169 = vmatpush1.bf16.xpose.msra.mxu0 0
    %2170 = vmatprep.subr.bf16.mxu0 0
    %2171 = vmatpush1.bf16.xpose.msra.mxu0 0
    %2172 = vmatprep.subr.bf16.mxu0 0
    %2173 = vmatpush1.bf16.xpose.msra.mxu0 0
    %2174 = vmatprep.subr.bf16.mxu0 0
    %2175 = vmatpush1.bf16.xpose.msra.mxu0 0
    %2176 = vmatprep.mubr.bf16.mxu0 0
    %2177 = vmatmul.mubr.bf16.gmra.mrb[0].mxu0 %v2133
    %v2178 = vpop.f32.mrb[0].mxu0
    %v2179 = vadd.f32 %v173, %v2178
    %v2180 = vpop.f32.mrb[0].mxu0
    %v2181 = vpop.f32.mrb[0].mxu0
    %v2182 = vadd.f32 %v174, %v2181
    %v2183 = vpop.f32.mrb[0].mxu0
    %2184 = vmatprep.mubr.bf16.mxu0 0
    %2185 = vmatmul.mubr.bf16.gmra.mrb[0].mxu0 %v2136
    %v2186 = vpop.f32.mrb[0].mxu0
    %v2187 = vadd.f32 %v175, %v2186
    %v2188 = vpop.f32.mrb[0].mxu0
    %v2189 = vpop.f32.mrb[0].mxu0
    %v2190 = vadd.f32 %v176, %v2189
    %v2191 = vpop.f32.mrb[0].mxu0
    %2192 = vdwg.mxu0
    %v2193 = vsel %vm202, %v2179, -inf
    %2194 = vmax.xlane.f32.xlu0 %v2193
    %v2195 = vpop.xlane.xlu0 %2194
    %v2196 = vsel %vm202, %v2182, -inf
    %2197 = vmax.xlane.f32.xlu0 %v2196
    %v2198 = vpop.xlane.xlu0 %2197
    %v2199 = vsel %vm202, %v2187, -inf
    %2200 = vmax.xlane.f32.xlu0 %v2199
    %v2201 = vpop.xlane.xlu0 %2200
    %v2202 = vsel %vm202, %v2190, -inf
    %2203 = vmax.xlane.f32.xlu0 %v2202
    %v2204 = vpop.xlane.xlu0 %2203
    %v2205 = vsub.f32 %v2179, %v2195
    %v2206 = vsub.f32 %v2182, %v2198
    %v2207 = vsub.f32 %v2187, %v2201
    %v2208 = vsub.f32 %v2190, %v2204
    %v2209 = vmul.f32 %v2205, 1.442695
    %v2210 = vpow.pop %v2209
    %v2211 = vmul.f32 %v2206, 1.442695
    %v2212 = vpow.pop %v2211
    %v2213 = vmul.f32 %v2207, 1.442695
    %v2214 = vpow.pop %v2213
    %v2215 = vmul.f32 %v2208, 1.442695
    %v2216 = vpow.pop %v2215
    %v2217 = vsel %vm202, %v2210, 0.0
    %2218 = vadd.xlane.f32.xlu0 %v2217
    %v2219 = vpop.xlane.xlu0 %2218
    %v2220 = vsel %vm202, %v2212, 0.0
    %2221 = vadd.xlane.f32.xlu0 %v2220
    %v2222 = vpop.xlane.xlu0 %2221
    %v2223 = vsel %vm202, %v2214, 0.0
    %2224 = vadd.xlane.f32.xlu0 %v2223
    %v2225 = vpop.xlane.xlu0 %2224
    %v2226 = vsel %vm202, %v2216, 0.0
    %2227 = vadd.xlane.f32.xlu0 %v2226
    %v2228 = vpop.xlane.xlu0 %2227
    %v2229 = vpack.c.bf16 %v2212, %v2210
    %v2230 = vpack.c.bf16 %v2216, %v2214
    %2231 = vrot.lane.b32.xlu0 %v1652, 48
    %v2232 = vpop.permute.xlu0 %2231
    %2233 = vrot.lane.b32.xlu0 %v1653, 48
    %v2234 = vpop.permute.xlu0 %2233
    %v2238 = vsel %vm202, %v2229, 0
    %v2241 = vsel %vm202, %v2230, 0
    %2243 = vmatprep.subr.bf16.mxu0 0
    %2244 = vmatpush1.bf16.msra.mxu0 %v2232
    %2245 = vmatprep.subr.bf16.mxu0 0
    %2246 = vmatpush1.bf16.msra.mxu0 %v2234
    %2247 = vmatprep.subr.bf16.mxu0 0
    %2248 = vmatpush1.bf16.msra.mxu0 0
    %2249 = vmatprep.subr.bf16.mxu0 0
    %2250 = vmatpush1.bf16.msra.mxu0 0
    %2251 = vmatprep.subr.bf16.mxu0 0
    %2252 = vmatpush1.bf16.msra.mxu0 0
    %2253 = vmatprep.subr.bf16.mxu0 0
    %2254 = vmatpush1.bf16.msra.mxu0 0
    %2255 = vmatprep.subr.bf16.mxu0 0
    %2256 = vmatpush1.bf16.msra.mxu0 0
    %2257 = vmatprep.subr.bf16.mxu0 0
    %2258 = vmatpush1.bf16.msra.mxu0 0
    %2259 = vmatprep.subr.bf16.mxu0 0
    %2260 = vmatpush1.bf16.msra.mxu0 0
    %2261 = vmatprep.subr.bf16.mxu0 0
    %2262 = vmatpush1.bf16.msra.mxu0 0
    %2263 = vmatprep.subr.bf16.mxu0 0
    %2264 = vmatpush1.bf16.msra.mxu0 0
    %2265 = vmatprep.subr.bf16.mxu0 0
    %2266 = vmatpush1.bf16.msra.mxu0 0
    %2267 = vmatprep.subr.bf16.mxu0 0
    %2268 = vmatpush1.bf16.msra.mxu0 0
    %2269 = vmatprep.subr.bf16.mxu0 0
    %2270 = vmatpush1.bf16.msra.mxu0 0
    %2271 = vmatprep.subr.bf16.mxu0 0
    %2272 = vmatpush1.bf16.msra.mxu0 0
    %2273 = vmatprep.subr.bf16.mxu0 0
    %2274 = vmatpush1.bf16.msra.mxu0 0
    %2275 = vmatprep.mubr.bf16.mxu0 0
    %2276 = vmatmul.mubr.bf16.gmra.mrb[0].mxu0 %v2238
    %v2277 = vpop.f32.mrb[0].mxu0
    %v2278 = vadd.f32 0.0, %v2277
    %v2279 = vpop.f32.mrb[0].mxu0
    %v2280 = vpop.f32.mrb[0].mxu0
    %v2281 = vadd.f32 0.0, %v2280
    %v2282 = vpop.f32.mrb[0].mxu0
    %2283 = vmatprep.mubr.bf16.mxu0 0
    %2284 = vmatmul.mubr.bf16.gmra.mrb[0].mxu0 %v2241
    %v2285 = vpop.f32.mrb[0].mxu0
    %v2286 = vadd.f32 0.0, %v2285
    %v2287 = vpop.f32.mrb[0].mxu0
    %v2288 = vpop.f32.mrb[0].mxu0
    %v2289 = vadd.f32 0.0, %v2288
    %v2290 = vpop.f32.mrb[0].mxu0
    %2291 = vdwg.mxu0
    %v2292 = vrcp.pop %v2219
    %v2293 = vrcp.pop %v2222
    %v2294 = vrcp.pop %v2225
    %v2295 = vrcp.pop %v2228
    %v2296 = vmul.f32 %v2278, %v2292
    %v2297 = vmul.f32 %v2281, %v2293
    %v2298 = vmul.f32 %v2286, %v2294
    %v2299 = vmul.f32 %v2289, %v2295
    %v2300 = vpack.c.bf16 %v2297, %v2296
    %v2301 = vpack.c.bf16 %v2299, %v2298
    %v2303 = vsel %vm270, %v2300, 0
    %v2306 = vsel %vm270, %v2301, 0
    %v2309 = vsel %vm625, %v1650, 0
    %2311 = vmatprep.subr.bf16.mxu0 0
    %2312 = vmatpush1.bf16.msra.mxu0 %v2309
    %2313 = vmatprep.subr.bf16.mxu0 0
    %2314 = vmatpush1.bf16.msra.mxu0 0
    %2315 = vmatprep.subr.bf16.mxu0 0
    %2316 = vmatpush1.bf16.msra.mxu0 0
    %2317 = vmatprep.subr.bf16.mxu0 0
    %2318 = vmatpush1.bf16.msra.mxu0 0
    %2319 = vmatprep.subr.bf16.mxu0 0
    %2320 = vmatpush1.bf16.msra.mxu0 0
    %2321 = vmatprep.subr.bf16.mxu0 0
    %2322 = vmatpush1.bf16.msra.mxu0 0
    %2323 = vmatprep.subr.bf16.mxu0 0
    %2324 = vmatpush1.bf16.msra.mxu0 0
    %2325 = vmatprep.subr.bf16.mxu0 0
    %2326 = vmatpush1.bf16.msra.mxu0 0
    %2327 = vmatprep.subr.bf16.mxu0 0
    %2328 = vmatpush1.bf16.msra.mxu0 0
    %2329 = vmatprep.subr.bf16.mxu0 0
    %2330 = vmatpush1.bf16.msra.mxu0 0
    %2331 = vmatprep.subr.bf16.mxu0 0
    %2332 = vmatpush1.bf16.msra.mxu0 0
    %2333 = vmatprep.subr.bf16.mxu0 0
    %2334 = vmatpush1.bf16.msra.mxu0 0
    %2335 = vmatprep.subr.bf16.mxu0 0
    %2336 = vmatpush1.bf16.msra.mxu0 0
    %2337 = vmatprep.subr.bf16.mxu0 0
    %2338 = vmatpush1.bf16.msra.mxu0 0
    %2339 = vmatprep.subr.bf16.mxu0 0
    %2340 = vmatpush1.bf16.msra.mxu0 0
    %2341 = vmatprep.subr.bf16.mxu0 0
    %2342 = vmatpush1.bf16.msra.mxu0 0
    %2343 = vmatprep.mubr.bf16.mxu0 0
    %2344 = vmatmul.mubr.bf16.gmra.mrb[0].mxu0 %v2303
    %v2345 = vpop.f32.mrb[0].mxu0
    %v2346 = vadd.f32 0.0, %v2345
    %v2347 = vpop.f32.mrb[0].mxu0
    %v2348 = vpop.f32.mrb[0].mxu0
    %v2349 = vadd.f32 0.0, %v2348
    %v2350 = vpop.f32.mrb[0].mxu0
    %2351 = vmatprep.mubr.bf16.mxu0 0
    %2352 = vmatmul.mubr.bf16.gmra.mrb[0].mxu0 %v2306
    %v2353 = vpop.f32.mrb[0].mxu0
    %v2354 = vadd.f32 0.0, %v2353
    %v2355 = vpop.f32.mrb[0].mxu0
    %v2356 = vpop.f32.mrb[0].mxu0
    %v2357 = vadd.f32 0.0, %v2356
    %v2358 = vpop.f32.mrb[0].mxu0
    %2359 = vdwg.mxu0
    %v2360 = vadd.f32 %v2110, %v2346
    %v2361 = vadd.f32 %v2113, %v2349
    %v2362 = vadd.f32 %v2118, %v2354
    %v2363 = vadd.f32 %v2121, %v2357
    %2364 = vrot.lane.b32.xlu0 %v1652, 104
    %v2365 = vpop.permute.xlu0 %2364
    %2366 = vrot.lane.b32.xlu0 %v1653, 104
    %v2367 = vpop.permute.xlu0 %2366
    %2368 = vrot.lane.b32.xlu0 %v1652, 72
    %v2369 = vpop.permute.xlu0 %2368
    %2370 = vrot.lane.b32.xlu0 %v1653, 72
    %v2371 = vpop.permute.xlu0 %2370
    %v2373 = vsel %vm270, %v2365, 0
    %v2376 = vsel %vm270, %v2367, 0
    %v2379 = vsel %vm270, %v2369, 0
    %v2382 = vsel %vm270, %v2371, 0
    %2384 = vmatprep.subr.bf16.mxu0 0
    %2385 = vmatpush1.bf16.xpose.msra.mxu0 %v2379
    %2386 = vmatprep.subr.bf16.mxu0 0
    %2387 = vmatpush1.bf16.xpose.msra.mxu0 %v2382
    %2388 = vmatprep.subr.bf16.mxu0 0
    %2389 = vmatpush1.bf16.xpose.msra.mxu0 0
    %2390 = vmatprep.subr.bf16.mxu0 0
    %2391 = vmatpush1.bf16.xpose.msra.mxu0 0
    %2392 = vmatprep.subr.bf16.mxu0 0
    %2393 = vmatpush1.bf16.xpose.msra.mxu0 0
    %2394 = vmatprep.subr.bf16.mxu0 0
    %2395 = vmatpush1.bf16.xpose.msra.mxu0 0
    %2396 = vmatprep.subr.bf16.mxu0 0
    %2397 = vmatpush1.bf16.xpose.msra.mxu0 0
    %2398 = vmatprep.subr.bf16.mxu0 0
    %2399 = vmatpush1.bf16.xpose.msra.mxu0 0
    %2400 = vmatprep.subr.bf16.mxu0 0
    %2401 = vmatpush1.bf16.xpose.msra.mxu0 0
    %2402 = vmatprep.subr.bf16.mxu0 0
    %2403 = vmatpush1.bf16.xpose.msra.mxu0 0
    %2404 = vmatprep.subr.bf16.mxu0 0
    %2405 = vmatpush1.bf16.xpose.msra.mxu0 0
    %2406 = vmatprep.subr.bf16.mxu0 0
    %2407 = vmatpush1.bf16.xpose.msra.mxu0 0
    %2408 = vmatprep.subr.bf16.mxu0 0
    %2409 = vmatpush1.bf16.xpose.msra.mxu0 0
    %2410 = vmatprep.subr.bf16.mxu0 0
    %2411 = vmatpush1.bf16.xpose.msra.mxu0 0
    %2412 = vmatprep.subr.bf16.mxu0 0
    %2413 = vmatpush1.bf16.xpose.msra.mxu0 0
    %2414 = vmatprep.subr.bf16.mxu0 0
    %2415 = vmatpush1.bf16.xpose.msra.mxu0 0
    %2416 = vmatprep.mubr.bf16.mxu0 0
    %2417 = vmatmul.mubr.bf16.gmra.mrb[0].mxu0 %v2373
    %v2418 = vpop.f32.mrb[0].mxu0
    %v2419 = vadd.f32 %v173, %v2418
    %v2420 = vpop.f32.mrb[0].mxu0
    %v2421 = vpop.f32.mrb[0].mxu0
    %v2422 = vadd.f32 %v174, %v2421
    %v2423 = vpop.f32.mrb[0].mxu0
    %2424 = vmatprep.mubr.bf16.mxu0 0
    %2425 = vmatmul.mubr.bf16.gmra.mrb[0].mxu0 %v2376
    %v2426 = vpop.f32.mrb[0].mxu0
    %v2427 = vadd.f32 %v175, %v2426
    %v2428 = vpop.f32.mrb[0].mxu0
    %v2429 = vpop.f32.mrb[0].mxu0
    %v2430 = vadd.f32 %v176, %v2429
    %v2431 = vpop.f32.mrb[0].mxu0
    %2432 = vdwg.mxu0
    %v2433 = vsel %vm202, %v2419, -inf
    %2434 = vmax.xlane.f32.xlu0 %v2433
    %v2435 = vpop.xlane.xlu0 %2434
    %v2436 = vsel %vm202, %v2422, -inf
    %2437 = vmax.xlane.f32.xlu0 %v2436
    %v2438 = vpop.xlane.xlu0 %2437
    %v2439 = vsel %vm202, %v2427, -inf
    %2440 = vmax.xlane.f32.xlu0 %v2439
    %v2441 = vpop.xlane.xlu0 %2440
    %v2442 = vsel %vm202, %v2430, -inf
    %2443 = vmax.xlane.f32.xlu0 %v2442
    %v2444 = vpop.xlane.xlu0 %2443
    %v2445 = vsub.f32 %v2419, %v2435
    %v2446 = vsub.f32 %v2422, %v2438
    %v2447 = vsub.f32 %v2427, %v2441
    %v2448 = vsub.f32 %v2430, %v2444
    %v2449 = vmul.f32 %v2445, 1.442695
    %v2450 = vpow.pop %v2449
    %v2451 = vmul.f32 %v2446, 1.442695
    %v2452 = vpow.pop %v2451
    %v2453 = vmul.f32 %v2447, 1.442695
    %v2454 = vpow.pop %v2453
    %v2455 = vmul.f32 %v2448, 1.442695
    %v2456 = vpow.pop %v2455
    %v2457 = vsel %vm202, %v2450, 0.0
    %2458 = vadd.xlane.f32.xlu0 %v2457
    %v2459 = vpop.xlane.xlu0 %2458
    %v2460 = vsel %vm202, %v2452, 0.0
    %2461 = vadd.xlane.f32.xlu0 %v2460
    %v2462 = vpop.xlane.xlu0 %2461
    %v2463 = vsel %vm202, %v2454, 0.0
    %2464 = vadd.xlane.f32.xlu0 %v2463
    %v2465 = vpop.xlane.xlu0 %2464
    %v2466 = vsel %vm202, %v2456, 0.0
    %2467 = vadd.xlane.f32.xlu0 %v2466
    %v2468 = vpop.xlane.xlu0 %2467
    %v2469 = vpack.c.bf16 %v2452, %v2450
    %v2470 = vpack.c.bf16 %v2456, %v2454
    %2471 = vrot.lane.b32.xlu0 %v1652, 40
    %v2472 = vpop.permute.xlu0 %2471
    %2473 = vrot.lane.b32.xlu0 %v1653, 40
    %v2474 = vpop.permute.xlu0 %2473
    %v2478 = vsel %vm202, %v2469, 0
    %v2481 = vsel %vm202, %v2470, 0
    %2483 = vmatprep.subr.bf16.mxu0 0
    %2484 = vmatpush1.bf16.msra.mxu0 %v2472
    %2485 = vmatprep.subr.bf16.mxu0 0
    %2486 = vmatpush1.bf16.msra.mxu0 %v2474
    %2487 = vmatprep.subr.bf16.mxu0 0
    %2488 = vmatpush1.bf16.msra.mxu0 0
    %2489 = vmatprep.subr.bf16.mxu0 0
    %2490 = vmatpush1.bf16.msra.mxu0 0
    %2491 = vmatprep.subr.bf16.mxu0 0
    %2492 = vmatpush1.bf16.msra.mxu0 0
    %2493 = vmatprep.subr.bf16.mxu0 0
    %2494 = vmatpush1.bf16.msra.mxu0 0
    %2495 = vmatprep.subr.bf16.mxu0 0
    %2496 = vmatpush1.bf16.msra.mxu0 0
    %2497 = vmatprep.subr.bf16.mxu0 0
    %2498 = vmatpush1.bf16.msra.mxu0 0
    %2499 = vmatprep.subr.bf16.mxu0 0
    %2500 = vmatpush1.bf16.msra.mxu0 0
    %2501 = vmatprep.subr.bf16.mxu0 0
    %2502 = vmatpush1.bf16.msra.mxu0 0
    %2503 = vmatprep.subr.bf16.mxu0 0
    %2504 = vmatpush1.bf16.msra.mxu0 0
    %2505 = vmatprep.subr.bf16.mxu0 0
    %2506 = vmatpush1.bf16.msra.mxu0 0
    %2507 = vmatprep.subr.bf16.mxu0 0
    %2508 = vmatpush1.bf16.msra.mxu0 0
    %2509 = vmatprep.subr.bf16.mxu0 0
    %2510 = vmatpush1.bf16.msra.mxu0 0
    %2511 = vmatprep.subr.bf16.mxu0 0
    %2512 = vmatpush1.bf16.msra.mxu0 0
    %2513 = vmatprep.subr.bf16.mxu0 0
    %2514 = vmatpush1.bf16.msra.mxu0 0
    %2515 = vmatprep.mubr.bf16.mxu0 0
    %2516 = vmatmul.mubr.bf16.gmra.mrb[0].mxu0 %v2478
    %v2517 = vpop.f32.mrb[0].mxu0
    %v2518 = vadd.f32 0.0, %v2517
    %v2519 = vpop.f32.mrb[0].mxu0
    %v2520 = vpop.f32.mrb[0].mxu0
    %v2521 = vadd.f32 0.0, %v2520
    %v2522 = vpop.f32.mrb[0].mxu0
    %2523 = vmatprep.mubr.bf16.mxu0 0
    %2524 = vmatmul.mubr.bf16.gmra.mrb[0].mxu0 %v2481
    %v2525 = vpop.f32.mrb[0].mxu0
    %v2526 = vadd.f32 0.0, %v2525
    %v2527 = vpop.f32.mrb[0].mxu0
    %v2528 = vpop.f32.mrb[0].mxu0
    %v2529 = vadd.f32 0.0, %v2528
    %v2530 = vpop.f32.mrb[0].mxu0
    %2531 = vdwg.mxu0
    %v2532 = vrcp.pop %v2459
    %v2533 = vrcp.pop %v2462
    %v2534 = vrcp.pop %v2465
    %v2535 = vrcp.pop %v2468
    %v2536 = vmul.f32 %v2518, %v2532
    %v2537 = vmul.f32 %v2521, %v2533
    %v2538 = vmul.f32 %v2526, %v2534
    %v2539 = vmul.f32 %v2529, %v2535
    %v2540 = vpack.c.bf16 %v2537, %v2536
    %v2541 = vpack.c.bf16 %v2539, %v2538
    %v2543 = vsel %vm270, %v2540, 0
    %v2546 = vsel %vm270, %v2541, 0
    %v2549 = vsel %vm625, %v1651, 0
    %2551 = vmatprep.subr.bf16.mxu0 0
    %2552 = vmatpush1.bf16.msra.mxu0 %v2549
    %2553 = vmatprep.subr.bf16.mxu0 0
    %2554 = vmatpush1.bf16.msra.mxu0 0
    %2555 = vmatprep.subr.bf16.mxu0 0
    %2556 = vmatpush1.bf16.msra.mxu0 0
    %2557 = vmatprep.subr.bf16.mxu0 0
    %2558 = vmatpush1.bf16.msra.mxu0 0
    %2559 = vmatprep.subr.bf16.mxu0 0
    %2560 = vmatpush1.bf16.msra.mxu0 0
    %2561 = vmatprep.subr.bf16.mxu0 0
    %2562 = vmatpush1.bf16.msra.mxu0 0
    %2563 = vmatprep.subr.bf16.mxu0 0
    %2564 = vmatpush1.bf16.msra.mxu0 0
    %2565 = vmatprep.subr.bf16.mxu0 0
    %2566 = vmatpush1.bf16.msra.mxu0 0
    %2567 = vmatprep.subr.bf16.mxu0 0
    %2568 = vmatpush1.bf16.msra.mxu0 0
    %2569 = vmatprep.subr.bf16.mxu0 0
    %2570 = vmatpush1.bf16.msra.mxu0 0
    %2571 = vmatprep.subr.bf16.mxu0 0
    %2572 = vmatpush1.bf16.msra.mxu0 0
    %2573 = vmatprep.subr.bf16.mxu0 0
    %2574 = vmatpush1.bf16.msra.mxu0 0
    %2575 = vmatprep.subr.bf16.mxu0 0
    %2576 = vmatpush1.bf16.msra.mxu0 0
    %2577 = vmatprep.subr.bf16.mxu0 0
    %2578 = vmatpush1.bf16.msra.mxu0 0
    %2579 = vmatprep.subr.bf16.mxu0 0
    %2580 = vmatpush1.bf16.msra.mxu0 0
    %2581 = vmatprep.subr.bf16.mxu0 0
    %2582 = vmatpush1.bf16.msra.mxu0 0
    %2583 = vmatprep.mubr.bf16.mxu0 0
    %2584 = vmatmul.mubr.bf16.gmra.mrb[0].mxu0 %v2543
    %v2585 = vpop.f32.mrb[0].mxu0
    %v2586 = vadd.f32 0.0, %v2585
    %v2587 = vpop.f32.mrb[0].mxu0
    %v2588 = vpop.f32.mrb[0].mxu0
    %v2589 = vadd.f32 0.0, %v2588
    %v2590 = vpop.f32.mrb[0].mxu0
    %2591 = vmatprep.mubr.bf16.mxu0 0
    %2592 = vmatmul.mubr.bf16.gmra.mrb[0].mxu0 %v2546
    %v2593 = vpop.f32.mrb[0].mxu0
    %v2594 = vadd.f32 0.0, %v2593
    %v2595 = vpop.f32.mrb[0].mxu0
    %v2596 = vpop.f32.mrb[0].mxu0
    %v2597 = vadd.f32 0.0, %v2596
    %v2598 = vpop.f32.mrb[0].mxu0
    %2599 = vdwg.mxu0
    %v2600 = vadd.f32 %v2360, %v2586
    %v2601 = vadd.f32 %v2361, %v2589
    %v2602 = vadd.f32 %v2362, %v2594
    %v2603 = vadd.f32 %v2363, %v2597
    %s2604 = scalar_lea.vmem [#allocation7], 1
    %v2605 = vld [vmem:[%s2604] sm:$0x1]
    %v2607 = vlaneseq
    %v2608 = vshrl.u32 %v2607, 7
    %v2609 = vsub.s32 0, %v2608
    %v2610 = vrot.slane %v2605, %v2609
    %v2612 = vadd.f32 %v2600, %v2610
    %v2613 = vadd.f32 %v2601, %v2610
    %v2614 = vadd.f32 %v2602, %v2610
    %v2615 = vadd.f32 %v2603, %v2610
    %v2616 = vadd.f32 %v1561, %v2612
    %v2617 = vadd.f32 %v1562, %v2613
    %v2618 = vadd.f32 %v1563, %v2614
    %v2619 = vadd.f32 %v1564, %v2615
    %s2620 = scalar_lea.vmem %s8, 1
    %v2621 = vld [vmem:[%s2620] sm:$0x1]
    %s2622 = scalar_lea.vmem %s9, 1
    %v2623 = vld [vmem:[%s2622] sm:$0x1]
    %v2624 = vsel %vm202, %v2616, 0.0
    %2625 = vadd.xlane.f32.xlu0 %v2624
    %v2626 = vpop.xlane.xlu0 %2625
    %v2627 = vsel %vm202, %v2617, 0.0
    %2628 = vadd.xlane.f32.xlu0 %v2627
    %v2629 = vpop.xlane.xlu0 %2628
    %v2630 = vsel %vm202, %v2618, 0.0
    %2631 = vadd.xlane.f32.xlu0 %v2630
    %v2632 = vpop.xlane.xlu0 %2631
    %v2633 = vsel %vm202, %v2619, 0.0
    %2634 = vadd.xlane.f32.xlu0 %v2633
    %v2635 = vpop.xlane.xlu0 %2634
    %v2636 = vmul.f32 %v2626, %v1245
    %v2637 = vmul.f32 %v2629, %v1245
    %v2638 = vmul.f32 %v2632, %v1245
    %v2639 = vmul.f32 %v2635, %v1245
    %v2640 = vsub.f32 %v2616, %v2636
    %v2641 = vsub.f32 %v2617, %v2637
    %v2642 = vsub.f32 %v2618, %v2638
    %v2643 = vsub.f32 %v2619, %v2639
    %v2644 = vmul.f32 %v2640, %v2640
    %v2645 = vmul.f32 %v2641, %v2641
    %v2646 = vmul.f32 %v2642, %v2642
    %v2647 = vmul.f32 %v2643, %v2643
    %v2648 = vsel %vm202, %v2644, 0.0
    %2649 = vadd.xlane.f32.xlu0 %v2648
    %v2650 = vpop.xlane.xlu0 %2649
    %v2651 = vsel %vm202, %v2645, 0.0
    %2652 = vadd.xlane.f32.xlu0 %v2651
    %v2653 = vpop.xlane.xlu0 %2652
    %v2654 = vsel %vm202, %v2646, 0.0
    %2655 = vadd.xlane.f32.xlu0 %v2654
    %v2656 = vpop.xlane.xlu0 %2655
    %v2657 = vsel %vm202, %v2647, 0.0
    %2658 = vadd.xlane.f32.xlu0 %v2657
    %v2659 = vpop.xlane.xlu0 %2658
    %v2660 = vmul.f32 %v2650, %v1245
    %v2661 = vmul.f32 %v2653, %v1245
    %v2662 = vmul.f32 %v2656, %v1245
    %v2663 = vmul.f32 %v2659, %v1245
    %v2664 = vadd.f32 %v2660, 1e-05
    %v2665 = vadd.f32 %v2661, 1e-05
    %v2666 = vadd.f32 %v2662, 1e-05
    %v2667 = vadd.f32 %v2663, 1e-05
    %v2668 = vrsqrt.pop %v2664
    %v2669 = vrsqrt.pop %v2665
    %v2670 = vrsqrt.pop %v2666
    %v2671 = vrsqrt.pop %v2667
    %v2672 = vmul.f32 %v2640, %v2668
    %v2673 = vmul.f32 %v2641, %v2669
    %v2674 = vmul.f32 %v2642, %v2670
    %v2675 = vmul.f32 %v2643, %v2671
    %v2677 = vlaneseq
    %v2678 = vshrl.u32 %v2677, 7
    %v2679 = vsub.s32 0, %v2678
    %v2680 = vrot.slane %v2621, %v2679
    %v2682 = vmul.f32 %v2672, %v2680
    %v2683 = vmul.f32 %v2673, %v2680
    %v2684 = vmul.f32 %v2674, %v2680
    %v2685 = vmul.f32 %v2675, %v2680
    %v2687 = vlaneseq
    %v2688 = vshrl.u32 %v2687, 7
    %v2689 = vsub.s32 0, %v2688
    %v2690 = vrot.slane %v2623, %v2689
    %v2692 = vadd.f32 %v2682, %v2690
    %v2693 = vadd.f32 %v2683, %v2690
    %v2694 = vadd.f32 %v2684, %v2690
    %v2695 = vadd.f32 %v2685, %v2690
    %v2696 = vpack.c.bf16 %v2693, %v2692
    %v2697 = vpack.c.bf16 %v2695, %v2694
    %s2698 = scalar_lea.vmem %s12, 16
    %v2699 = vld [vmem:[%s2698] sm:$0xf]
    %v2700 = vld [vmem:[%s2698 + $0x4] sm:$0xf]
    %v2701 = vld [vmem:[%s2698 + $0x8] sm:$0xf]
    %v2702 = vld [vmem:[%s2698 + $0xc] sm:$0xf]
    %s2703 = scalar_lea.vmem %s13, 1
    %v2704 = vld [vmem:[%s2703] sm:$0x1]
    %v2706 = vlaneseq
    %v2707 = vshrl.u32 %v2706, 7
    %v2708 = vsub.s32 0, %v2707
    %v2709 = vrot.slane %v2704, %v2708
    %v2715 = vunpack.c.l.b16 %v2699
    %v2716 = vunpack.c.l.b16 %v2700
    %v2717 = vunpack.c.l.b16 %v2701
    %v2718 = vunpack.c.l.b16 %v2702
    %v2719 = vpack.c.b16 %v2716, %v2715
    %v2720 = vpack.c.b16 %v2718, %v2717
    %v2724 = vsel %vm202, %v2696, 0
    %v2727 = vsel %vm202, %v2697, 0
    %2729 = vmatprep.subr.bf16.mxu0 0
    %2730 = vmatpush1.bf16.msra.mxu0 %v2719
    %2731 = vmatprep.subr.bf16.mxu0 0
    %2732 = vmatpush1.bf16.msra.mxu0 %v2720
    %2733 = vmatprep.subr.bf16.mxu0 0
    %2734 = vmatpush1.bf16.msra.mxu0 0
    %2735 = vmatprep.subr.bf16.mxu0 0
    %2736 = vmatpush1.bf16.msra.mxu0 0
    %2737 = vmatprep.subr.bf16.mxu0 0
    %2738 = vmatpush1.bf16.msra.mxu0 0
    %2739 = vmatprep.subr.bf16.mxu0 0
    %2740 = vmatpush1.bf16.msra.mxu0 0
    %2741 = vmatprep.subr.bf16.mxu0 0
    %2742 = vmatpush1.bf16.msra.mxu0 0
    %2743 = vmatprep.subr.bf16.mxu0 0
    %2744 = vmatpush1.bf16.msra.mxu0 0
    %2745 = vmatprep.subr.bf16.mxu0 0
    %2746 = vmatpush1.bf16.msra.mxu0 0
    %2747 = vmatprep.subr.bf16.mxu0 0
    %2748 = vmatpush1.bf16.msra.mxu0 0
    %2749 = vmatprep.subr.bf16.mxu0 0
    %2750 = vmatpush1.bf16.msra.mxu0 0
    %2751 = vmatprep.subr.bf16.mxu0 0
    %2752 = vmatpush1.bf16.msra.mxu0 0
    %2753 = vmatprep.subr.bf16.mxu0 0
    %2754 = vmatpush1.bf16.msra.mxu0 0
    %2755 = vmatprep.subr.bf16.mxu0 0
    %2756 = vmatpush1.bf16.msra.mxu0 0
    %2757 = vmatprep.subr.bf16.mxu0 0
    %2758 = vmatpush1.bf16.msra.mxu0 0
    %2759 = vmatprep.subr.bf16.mxu0 0
    %2760 = vmatpush1.bf16.msra.mxu0 0
    %2761 = vmatprep.mubr.bf16.mxu0 0
    %2762 = vmatmul.mubr.bf16.gmra.mrb[0].mxu0 %v2724
    %v2763 = vpop.f32.mrb[0].mxu0
    %v2764 = vadd.f32 %v2709, %v2763
    %v2765 = vpop.f32.mrb[0].mxu0
    %v2766 = vpop.f32.mrb[0].mxu0
    %v2767 = vadd.f32 %v2709, %v2766
    %v2768 = vpop.f32.mrb[0].mxu0
    %2769 = vmatprep.mubr.bf16.mxu0 0
    %2770 = vmatmul.mubr.bf16.gmra.mrb[0].mxu0 %v2727
    %v2771 = vpop.f32.mrb[0].mxu0
    %v2772 = vadd.f32 %v2709, %v2771
    %v2773 = vpop.f32.mrb[0].mxu0
    %v2774 = vpop.f32.mrb[0].mxu0
    %v2775 = vadd.f32 %v2709, %v2774
    %v2776 = vpop.f32.mrb[0].mxu0
    %2777 = vdwg.mxu0
    %v2778 = vmax.f32 %v2764, 0.0
    %v2779 = vmax.f32 %v2767, 0.0
    %v2780 = vmax.f32 %v2772, 0.0
    %v2781 = vmax.f32 %v2775, 0.0
    %v2782 = vpack.c.bf16 %v2779, %v2778
    %v2783 = vpack.c.bf16 %v2781, %v2780
    %s2784 = scalar_lea.vmem %s14, 32
    %v2785 = vld [vmem:[%s2784] sm:$0xf]
    %v2786 = vld [vmem:[%s2784 + $0x4] sm:$0xf]
    %v2787 = vld [vmem:[%s2784 + $0x8] sm:$0xf]
    %v2788 = vld [vmem:[%s2784 + $0xc] sm:$0xf]
    %v2789 = vld [vmem:[%s2784 + $0x10] sm:$0xf]
    %v2790 = vld [vmem:[%s2784 + $0x14] sm:$0xf]
    %v2791 = vld [vmem:[%s2784 + $0x18] sm:$0xf]
    %v2792 = vld [vmem:[%s2784 + $0x1c] sm:$0xf]
    %s2793 = scalar_lea.vmem %s15, 1
    %v2794 = vld [vmem:[%s2793] sm:$0x1]
    %v2796 = vlaneseq
    %v2797 = vshrl.u32 %v2796, 7
    %v2798 = vsub.s32 0, %v2797
    %v2799 = vrot.slane %v2794, %v2798
    %v2809 = vunpack.c.l.b16 %v2785
    %v2810 = vunpack.c.l.b16 %v2786
    %v2811 = vunpack.c.l.b16 %v2787
    %v2812 = vunpack.c.l.b16 %v2788
    %v2813 = vunpack.c.l.b16 %v2789
    %v2814 = vunpack.c.l.b16 %v2790
    %v2815 = vunpack.c.l.b16 %v2791
    %v2816 = vunpack.c.l.b16 %v2792
    %v2817 = vpack.c.b16 %v2810, %v2809
    %v2818 = vpack.c.b16 %v2812, %v2811
    %v2819 = vpack.c.b16 %v2814, %v2813
    %v2820 = vpack.c.b16 %v2816, %v2815
    %v2826 = vsel %vm1431, %v2782, 0
    %v2829 = vsel %vm1431, %v2783, 0
    %2831 = vmatprep.subr.bf16.mxu0 0
    %2832 = vmatpush1.bf16.msra.mxu0 %v2817
    %2833 = vmatprep.subr.bf16.mxu0 0
    %2834 = vmatpush1.bf16.msra.mxu0 %v2818
    %2835 = vmatprep.subr.bf16.mxu0 0
    %2836 = vmatpush1.bf16.msra.mxu0 %v2819
    %2837 = vmatprep.subr.bf16.mxu0 0
    %2838 = vmatpush1.bf16.msra.mxu0 %v2820
    %2839 = vmatprep.subr.bf16.mxu0 0
    %2840 = vmatpush1.bf16.msra.mxu0 0
    %2841 = vmatprep.subr.bf16.mxu0 0
    %2842 = vmatpush1.bf16.msra.mxu0 0
    %2843 = vmatprep.subr.bf16.mxu0 0
    %2844 = vmatpush1.bf16.msra.mxu0 0
    %2845 = vmatprep.subr.bf16.mxu0 0
    %2846 = vmatpush1.bf16.msra.mxu0 0
    %2847 = vmatprep.subr.bf16.mxu0 0
    %2848 = vmatpush1.bf16.msra.mxu0 0
    %2849 = vmatprep.subr.bf16.mxu0 0
    %2850 = vmatpush1.bf16.msra.mxu0 0
    %2851 = vmatprep.subr.bf16.mxu0 0
    %2852 = vmatpush1.bf16.msra.mxu0 0
    %2853 = vmatprep.subr.bf16.mxu0 0
    %2854 = vmatpush1.bf16.msra.mxu0 0
    %2855 = vmatprep.subr.bf16.mxu0 0
    %2856 = vmatpush1.bf16.msra.mxu0 0
    %2857 = vmatprep.subr.bf16.mxu0 0
    %2858 = vmatpush1.bf16.msra.mxu0 0
    %2859 = vmatprep.subr.bf16.mxu0 0
    %2860 = vmatpush1.bf16.msra.mxu0 0
    %2861 = vmatprep.subr.bf16.mxu0 0
    %2862 = vmatpush1.bf16.msra.mxu0 0
    %2863 = vmatprep.mubr.bf16.mxu0 0
    %2864 = vmatmul.mubr.bf16.gmra.mrb[0].mxu0 %v2826
    %v2865 = vpop.f32.mrb[0].mxu0
    %v2866 = vadd.f32 %v2799, %v2865
    %v2867 = vpop.f32.mrb[0].mxu0
    %v2868 = vpop.f32.mrb[0].mxu0
    %v2869 = vadd.f32 %v2799, %v2868
    %v2870 = vpop.f32.mrb[0].mxu0
    %2871 = vmatprep.mubr.bf16.mxu0 0
    %2872 = vmatmul.mubr.bf16.gmra.mrb[0].mxu0 %v2829
    %v2873 = vpop.f32.mrb[0].mxu0
    %v2874 = vadd.f32 %v2799, %v2873
    %v2875 = vpop.f32.mrb[0].mxu0
    %v2876 = vpop.f32.mrb[0].mxu0
    %v2877 = vadd.f32 %v2799, %v2876
    %v2878 = vpop.f32.mrb[0].mxu0
    %2879 = vdwg.mxu0
    %v2880 = vadd.f32 %v2692, %v2866
    %v2881 = vadd.f32 %v2693, %v2869
    %v2882 = vadd.f32 %v2694, %v2874
    %v2883 = vadd.f32 %v2695, %v2877
    %s2884 = scalar_lea.vmem %s10, 1
    %v2885 = vld [vmem:[%s2884] sm:$0x1]
    %s2886 = scalar_lea.vmem %s11, 1
    %v2887 = vld [vmem:[%s2886] sm:$0x1]
    %v2888 = vsel %vm202, %v2880, 0.0
    %2889 = vadd.xlane.f32.xlu0 %v2888
    %v2890 = vpop.xlane.xlu0 %2889
    %v2891 = vsel %vm202, %v2881, 0.0
    %2892 = vadd.xlane.f32.xlu0 %v2891
    %v2893 = vpop.xlane.xlu0 %2892
    %v2894 = vsel %vm202, %v2882, 0.0
    %2895 = vadd.xlane.f32.xlu0 %v2894
    %v2896 = vpop.xlane.xlu0 %2895
    %v2897 = vsel %vm202, %v2883, 0.0
    %2898 = vadd.xlane.f32.xlu0 %v2897
    %v2899 = vpop.xlane.xlu0 %2898
    %v2900 = vmul.f32 %v2890, %v1245
    %v2901 = vmul.f32 %v2893, %v1245
    %v2902 = vmul.f32 %v2896, %v1245
    %v2903 = vmul.f32 %v2899, %v1245
    %v2904 = vsub.f32 %v2880, %v2900
    %v2905 = vsub.f32 %v2881, %v2901
    %v2906 = vsub.f32 %v2882, %v2902
    %v2907 = vsub.f32 %v2883, %v2903
    %v2908 = vmul.f32 %v2904, %v2904
    %v2909 = vmul.f32 %v2905, %v2905
    %v2910 = vmul.f32 %v2906, %v2906
    %v2911 = vmul.f32 %v2907, %v2907
    %v2912 = vsel %vm202, %v2908, 0.0
    %2913 = vadd.xlane.f32.xlu0 %v2912
    %v2914 = vpop.xlane.xlu0 %2913
    %v2915 = vsel %vm202, %v2909, 0.0
    %2916 = vadd.xlane.f32.xlu0 %v2915
    %v2917 = vpop.xlane.xlu0 %2916
    %v2918 = vsel %vm202, %v2910, 0.0
    %2919 = vadd.xlane.f32.xlu0 %v2918
    %v2920 = vpop.xlane.xlu0 %2919
    %v2921 = vsel %vm202, %v2911, 0.0
    %2922 = vadd.xlane.f32.xlu0 %v2921
    %v2923 = vpop.xlane.xlu0 %2922
    %v2924 = vmul.f32 %v2914, %v1245
    %v2925 = vmul.f32 %v2917, %v1245
    %v2926 = vmul.f32 %v2920, %v1245
    %v2927 = vmul.f32 %v2923, %v1245
    %v2928 = vadd.f32 %v2924, 1e-05
    %v2929 = vadd.f32 %v2925, 1e-05
    %v2930 = vadd.f32 %v2926, 1e-05
    %v2931 = vadd.f32 %v2927, 1e-05
    %v2932 = vrsqrt.pop %v2928
    %v2933 = vrsqrt.pop %v2929
    %v2934 = vrsqrt.pop %v2930
    %v2935 = vrsqrt.pop %v2931
    %v2936 = vmul.f32 %v2904, %v2932
    %v2937 = vmul.f32 %v2905, %v2933
    %v2938 = vmul.f32 %v2906, %v2934
    %v2939 = vmul.f32 %v2907, %v2935
    %v2941 = vlaneseq
    %v2942 = vshrl.u32 %v2941, 7
    %v2943 = vsub.s32 0, %v2942
    %v2944 = vrot.slane %v2885, %v2943
    %v2946 = vmul.f32 %v2936, %v2944
    %v2947 = vmul.f32 %v2937, %v2944
    %v2948 = vmul.f32 %v2938, %v2944
    %v2949 = vmul.f32 %v2939, %v2944
    %v2951 = vlaneseq
    %v2952 = vshrl.u32 %v2951, 7
    %v2953 = vsub.s32 0, %v2952
    %v2954 = vrot.slane %v2887, %v2953
    %v2956 = vadd.f32 %v2946, %v2954
    %v2957 = vadd.f32 %v2947, %v2954
    %v2958 = vadd.f32 %v2948, %v2954
    %v2959 = vadd.f32 %v2949, %v2954
    %v2960 = vld [vmem:[%s16] sm:$0x3]
    %v2961 = vpack.c.bf16 %v2957, %v2956
    %v2962 = vpack.c.bf16 %v2959, %v2958
    %v2963 = vld [vmem:[%s17] sm:$0xf]
    %2965 = vset.pattern.permute.xlu0 0
    %2966 = vperm.xlu0 %2965, %v2963
    %v2967 = vpop.permute.xlu0 %2966
    %v2970 = vsel %vm202, %v2960, 0
    %v2973 = vsel %vm202, %v2961, 0
    %v2976 = vsel %vm202, %v2962, 0
    %2978 = vmatprep.subr.bf16.mxu0 0
    %2979 = vmatpush1.bf16.xpose.msra.mxu0 %v2973
    %2980 = vmatprep.subr.bf16.mxu0 0
    %2981 = vmatpush1.bf16.xpose.msra.mxu0 %v2976
    %2982 = vmatprep.subr.bf16.mxu0 0
    %2983 = vmatpush1.bf16.xpose.msra.mxu0 0
    %2984 = vmatprep.subr.bf16.mxu0 0
    %2985 = vmatpush1.bf16.xpose.msra.mxu0 0
    %2986 = vmatprep.subr.bf16.mxu0 0
    %2987 = vmatpush1.bf16.xpose.msra.mxu0 0
    %2988 = vmatprep.subr.bf16.mxu0 0
    %2989 = vmatpush1.bf16.xpose.msra.mxu0 0
    %2990 = vmatprep.subr.bf16.mxu0 0
    %2991 = vmatpush1.bf16.xpose.msra.mxu0 0
    %2992 = vmatprep.subr.bf16.mxu0 0
    %2993 = vmatpush1.bf16.xpose.msra.mxu0 0
    %2994 = vmatprep.subr.bf16.mxu0 0
    %2995 = vmatpush1.bf16.xpose.msra.mxu0 0
    %2996 = vmatprep.subr.bf16.mxu0 0
    %2997 = vmatpush1.bf16.xpose.msra.mxu0 0
    %2998 = vmatprep.subr.bf16.mxu0 0
    %2999 = vmatpush1.bf16.xpose.msra.mxu0 0
    %3000 = vmatprep.subr.bf16.mxu0 0
    %3001 = vmatpush1.bf16.xpose.msra.mxu0 0
    %3002 = vmatprep.subr.bf16.mxu0 0
    %3003 = vmatpush1.bf16.xpose.msra.mxu0 0
    %3004 = vmatprep.subr.bf16.mxu0 0
    %3005 = vmatpush1.bf16.xpose.msra.mxu0 0
    %3006 = vmatprep.subr.bf16.mxu0 0
    %3007 = vmatpush1.bf16.xpose.msra.mxu0 0
    %3008 = vmatprep.subr.bf16.mxu0 0
    %3009 = vmatpush1.bf16.xpose.msra.mxu0 0
    %3010 = vmatprep.mubr.bf16.mxu0 0
    %3011 = vmatmul.mubr.bf16.gmra.mrb[0].mxu0 %v2970
    %v3012 = vpop.f32.mrb[0].mxu0
    %v3013 = vadd.f32 %v2967, %v3012
    %v3014 = vpop.f32.mrb[0].mxu0
    %v3015 = vpop.f32.mrb[0].mxu0
    %v3016 = vpop.f32.mrb[0].mxu0
    %3017 = vdwg.mxu0
    %vm3018 = vcmask 257024
    %3019 = vst.msk [vmem:[#allocation8] sm:$0xf] %vm3018, %v3013
    // Predicated region
    $region86: #{tpu_custom_call.1} parent=1 // pred_check
      _
    $region87: #{tpu_custom_call.1} parent=1 // pred_check_branch
      %3021 = sbr.rel (0) target = $region89
    $region88: #{tpu_custom_call.1} parent=1 // pred_region
      %s3023 = ssub.s32 64, 64
      %3024 = vsyncadd [#allocation4], %s3023
      %s3026 = sshll.u32 [#allocation8], 4
      %s3027 = int_to_ptr.vmem [resolvable:$true] %s3026
      %3029 = dma.vmem_to_hbm [thread:$0]  %s3027, 64, %s18, [#allocation4]
    $region89: #{tpu_custom_call.1} parent=1 // pred_fallthru
      _
    // Predicated region
    $region90: #{tpu_custom_call.1} parent=1 // pred_check
      _
    $region91: #{tpu_custom_call.1} parent=1 // pred_check_branch
      %3031 = sbr.rel (0) target = $region93
    $region92: #{tpu_custom_call.1} parent=1 // pred_region
      %3032 = dma.done [#allocation4], 64
    $region93: #{tpu_custom_call.1} parent=1 // pred_fallthru
      _
    %3033 = vsyncpa [#allocation3], 1
    %3034 = vsyncpa [#allocation6], 1
    %3035 = vsyncpa [#allocation4], 1

</llo_original>
